<compile_context>
chip_gen: v7x
topology: tpu7x:2x2x1
jax: 0.10.0
libtpu: 0.0.40
codegen_flags: <defaults>
</compile_context>

<pallas_src>
import functools

import jax
import jax.numpy as jnp
from jax import lax
from jax.experimental import pallas as pl
from jax.experimental.pallas import tpu as pltpu

HASH_SIZE = 8
HIGHFREQ_FACTOR = 4
IMG_SIZE = HASH_SIZE * HIGHFREQ_FACTOR          # 32
IMG_FLAT = IMG_SIZE * IMG_SIZE                  # 1024 pixels per image
N_FLAT = HASH_SIZE * HASH_SIZE                  # 64 low-frequency coefficients
LANES = 128                                     # one vreg lane width
PI = 3.1415927410125732                         # exact constant used by the torch module
BIG = 1e30                                      # Python float (never a jnp constant)

TB_MAX = 256                                    # images per grid step (~3.5 MiB VMEM total)

# f32-exact DCT (multi-pass MXU emulation).  On v5e consider lax.Precision.HIGH
# (roughly halves MXU cost of the batched matmul) only after verifying hash-bit
# exactness on representative data — near-median ties can flip bits.
DCT_PRECISION = lax.Precision.HIGHEST


def _round_up(x, m):
    return (x + m - 1) // m * m


def _dct_matrix(rows, n):
    """C[k, m] = 2*cos(pi*k*(2m+1)/(2n)) — unnormalized DCT-II, identical to the
    torch FFT-based dct() in the module (x2 factor included)."""
    k = jnp.arange(rows, dtype=jnp.float32)[:, None]
    m = jnp.arange(n, dtype=jnp.float32)[None, :]
    return 2.0 * jnp.cos(PI * k * (2.0 * m + 1.0) / (2.0 * n))


def _kron_dct_operator():
    """(1024, 128) Kronecker 2-D DCT operator.

    Column n = i*8+j (n < 64) holds K[r*32+c, n] = C8[i, r] * C8[j, c], so
    x_flat @ K == (C8 @ X @ C8^T).reshape(64) for every image row.  Lanes
    64..127 duplicate lanes 0..63 (2x lane tiling) for the wraparound-median
    roll trick in the kernel."""
    c8 = _dct_matrix(HASH_SIZE, IMG_SIZE)                           # (8, 32)
    k = jnp.einsum('ir,jc->rcij', c8, c8).reshape(IMG_FLAT, N_FLAT)  # (1024, 64)
    return jnp.tile(k, (1, LANES // N_FLAT))                        # (1024, 128)


def _phash_impl(x_ref, k2_ref, bits_ref, vals_ref):
    # ---- batched low-frequency 2-D DCT: one MXU matmul per block --------------
    # low2[b, n] = 8x8 DCT block of image b flattened into lanes 0..63 and
    # duplicated into lanes 64..127.
    low2 = jnp.dot(x_ref[...], k2_ref[...],
                   precision=DCT_PRECISION,
                   preferred_element_type=jnp.float32)              # (TB, 128)

    if vals_ref is not None:
        vals_ref[...] = low2[:, :N_FLAT]                            # dense (TB, 64)

    # ---- exact per-image lower median (torch.median) via shared rank count ----
    # Because lanes 64..127 duplicate lanes 0..63, rolling the full 128-lane
    # register by dl = 1..63 delivers, at every lane, the coefficient at cyclic
    # offset dl *within the same image's 64-coefficient group*.  So 63 rolls
    # (shared across all TB images in the block) cover every ordered coefficient
    # pair exactly once.  Two accumulators keep the VALU add chains short.
    acc0 = (low2 <= low2).astype(jnp.int32)          # dl = 0: self-compare (all ones)
    acc1 = jnp.zeros_like(acc0)
    for dl in range(1, N_FLAT):                      # 63 lane rolls per block
        cmp = (pltpu.roll(low2, dl, axis=1) <= low2).astype(jnp.int32)
        if dl & 1:
            acc1 = acc1 + cmp
        else:
            acc0 = acc0 + cmp
    counts = acc0 + acc1                             # counts[b, j] = rank (incl. self)

    # lower median of 64 values = smallest value whose rank >= 32, reduced
    # per image row (per-sublane scalar med of shape (TB, 1), not block-wide).
    cand = jnp.where(counts >= N_FLAT // 2, low2, BIG)
    med = jnp.min(cand, axis=1, keepdims=True)                      # (TB, 1)
    bits_ref[...] = (low2[:, :N_FLAT] > med).astype(jnp.int8)       # dctlowfreq > median


def _phash_kernel_bits(x_ref, k2_ref, bits_ref):
    _phash_impl(x_ref, k2_ref, bits_ref, None)


def _phash_kernel_bits_vals(x_ref, k2_ref, bits_ref, vals_ref):
    _phash_impl(x_ref, k2_ref, bits_ref, vals_ref)


@functools.partial(jax.jit, static_argnames=("return_dct",))
def phash_pallas(x, return_dct=False):
    """x: (B, 32, 32) or (B, 1024) float32 grayscale images (already L-converted
    and ANTIALIAS-resized host-side).  Returns hash bits bool (B, 8, 8); with
    return_dct=True also returns the 8x8 low-frequency DCT block f32 (B, 8, 8)."""
    if x.ndim == 2:
        x = x[None]
    B = x.shape[0]
    xf = x.reshape(B, IMG_FLAT).astype(jnp.float32)   # lane-dense rows for the DMA

    # Batch tile: multiple of 32 (int8 output sublane tiling), >= 2 grid steps
    # whenever the batch allows (megacore on v7x), capped for VMEM headroom
    # (TB=256 block is ~1 MiB in, ~80 KiB out; fits v5e's 16 MiB default easily).
    bp = _round_up(B, 32)
    tb = min(TB_MAX, max(32, _round_up((bp + 1) // 2, 32)))
    bp = _round_up(bp, tb)
    if bp != B:
        xf = jnp.pad(xf, ((0, bp - B), (0, 0)))       # zero images: bits all-false, discarded

    k2 = _kron_dct_operator()                         # (1024, 128), constant index map

    out_shape = [jax.ShapeDtypeStruct((bp, N_FLAT), jnp.int8)]
    out_specs = [pl.BlockSpec((tb, N_FLAT), lambda b: (b, 0))]
    kernel = _phash_kernel_bits
    if return_dct:
        out_shape.append(jax.ShapeDtypeStruct((bp, N_FLAT), jnp.float32))
        out_specs.append(pl.BlockSpec((tb, N_FLAT), lambda b: (b, 0)))
        kernel = _phash_kernel_bits_vals

    outs = pl.pallas_call(
        kernel,
        out_shape=tuple(out_shape),
        grid=(bp // tb,),
        in_specs=[pl.BlockSpec((tb, IMG_FLAT), lambda b: (b, 0)),     # images (lane-dense)
                  pl.BlockSpec((IMG_FLAT, LANES), lambda b: (0, 0))], # DCT operator (once)
        out_specs=tuple(out_specs),
        compiler_params=pltpu.CompilerParams(
            dimension_semantics=("parallel",)),       # batch axis sharded across TCs (v7x)
    )(xf, k2)

    bits = (outs[0][:B] > 0).reshape(B, HASH_SIZE, HASH_SIZE)         # bool (B, 8, 8)
    if return_dct:
        return bits, outs[1][:B].reshape(B, HASH_SIZE, HASH_SIZE)
    return bits


def phash_reference(x):
    """Pure-JAX reference mirroring the torch module: dct(dct(X, axis=0), axis=1),
    take [:8, :8], compare against torch.median (lower median)."""
    c = _dct_matrix(IMG_SIZE, IMG_SIZE)
    d = jnp.matmul(jnp.matmul(c, x, precision=lax.Precision.HIGHEST), c.T,
                   precision=lax.Precision.HIGHEST)
    low = d[:HASH_SIZE, :HASH_SIZE]
    med = jnp.sort(low.reshape(-1))[(N_FLAT - 1) // 2]   # lower median of 64 values
    return low > med, low


if __name__ == "__main__":
    # TODO(synk): PIL .convert('L') + ANTIALIAS resize to 32x32 (and PILToTensor)
    # is host-side image preprocessing with no Pallas equivalent; the kernel
    # consumes the already-resized float32 grayscale image(s).
    key = jax.random.PRNGKey(0)
    B = 4
    # Integer-valued pixels 0..255, emulating PILToTensor().float() output.
    x = jnp.round(jax.random.uniform(key, (B, IMG_SIZE, IMG_SIZE),
                                     jnp.float32, 0.0, 255.0))

    bits, dct_low = phash_pallas(x, return_dct=True)
    jax.block_until_ready(bits)

    for b in range(B):
        ref_bits, ref_low = phash_reference(x[b])
        assert jnp.allclose(dct_low[b], ref_low, rtol=1e-3, atol=0.5), \
            f"DCT lowfreq mismatch at batch {b}"
        assert bool(jnp.array_equal(bits[b], ref_bits)), \
            f"hash bits mismatch at batch {b}"
    print("KERNEL_OK")
</pallas_src>

<mosaic_0001>
module attributes {stable_mosaic.version = 11 : i64} {
  func.func @_phash_kernel_bits_vals(%arg0: i32, %arg1: memref<32x1024xf32, #tpu.memory_space<vmem>>, %arg2: memref<1024x128xf32, #tpu.memory_space<vmem>>, %arg3: memref<32x64xi8, #tpu.memory_space<vmem>>, %arg4: memref<32x64xf32, #tpu.memory_space<vmem>>) attributes {dimension_semantics = [#tpu.dimension_semantics<parallel>], iteration_bounds = array<i64: 1>, scalar_prefetch = 0 : i64, scratch_operands = 0 : i64, tpu.core_type = #tpu.core_type<tc>, window_params = [{transform_indices = @transform_0, window_bounds = array<i64: 32, 1024>}, {pipeline_mode = #tpu.pipeline_mode<synchronous>, transform_indices = @transform_1, window_bounds = array<i64: 1024, 128>}, {transform_indices = @transform_2, window_bounds = array<i64: 32, 64>}, {transform_indices = @transform_3, window_bounds = array<i64: 32, 64>}]} {
    %c0 = arith.constant 0 : index
    %c0_0 = arith.constant 0 : index
    %0 = vector.load %arg1[%c0, %c0_0] : memref<32x1024xf32, #tpu.memory_space<vmem>>, vector<32x1024xf32>
    %c0_1 = arith.constant 0 : index
    %c0_2 = arith.constant 0 : index
    %1 = vector.load %arg2[%c0_1, %c0_2] : memref<1024x128xf32, #tpu.memory_space<vmem>>, vector<1024x128xf32>
    %cst = arith.constant dense<0.000000e+00> : vector<32x128xf32>
    %2 = tpu.matmul %0, %1, %cst {dimension_numbers = #tpu.dot_dimension_numbers<[1], [0], [0], [1], [0, 0, 1, 1], [], []>, precision = #tpu.contract_precision<fp32>} : vector<32x1024xf32>, vector<1024x128xf32>, vector<32x128xf32> -> vector<32x128xf32>
    %3 = vector.extract_strided_slice %2 {offsets = [0, 0], sizes = [32, 64], strides = [1, 1]} : vector<32x128xf32> to vector<32x64xf32>
    %c0_3 = arith.constant 0 : index
    %c0_4 = arith.constant 0 : index
    %4 = vector.load %arg4[%c0_3, %c0_4] : memref<32x64xf32, #tpu.memory_space<vmem>>, vector<32x64xf32>
    tpu.vector_store %arg4[%c0_3, %c0_4], %3 {strides = array<i32>} : memref<32x64xf32, #tpu.memory_space<vmem>>, vector<32x64xf32>,
    %5 = arith.cmpf ole, %2, %2 : vector<32x128xf32>
    %6 = arith.extui %5 : vector<32x128xi1> to vector<32x128xi32>
    %c0_i32 = arith.constant 0 : i32
    %7 = vector.broadcast %c0_i32 : i32 to vector<32x128xi32>
    %c1_i32 = arith.constant 1 : i32
    %8 = tpu.dynamic_rotate %2 by %c1_i32 dim 1 : vector<32x128xf32>, i32 -> vector<32x128xf32>
    %9 = arith.cmpf ole, %8, %2 : vector<32x128xf32>
    %10 = arith.extui %9 : vector<32x128xi1> to vector<32x128xi32>
    %11 = arith.addi %7, %10 : vector<32x128xi32>
    %c2_i32 = arith.constant 2 : i32
    %12 = tpu.dynamic_rotate %2 by %c2_i32 dim 1 : vector<32x128xf32>, i32 -> vector<32x128xf32>
    %13 = arith.cmpf ole, %12, %2 : vector<32x128xf32>
    %14 = arith.extui %13 : vector<32x128xi1> to vector<32x128xi32>
    %15 = arith.addi %6, %14 : vector<32x128xi32>
    %c3_i32 = arith.constant 3 : i32
    %16 = tpu.dynamic_rotate %2 by %c3_i32 dim 1 : vector<32x128xf32>, i32 -> vector<32x128xf32>
    %17 = arith.cmpf ole, %16, %2 : vector<32x128xf32>
    %18 = arith.extui %17 : vector<32x128xi1> to vector<32x128xi32>
    %19 = arith.addi %11, %18 : vector<32x128xi32>
    %c4_i32 = arith.constant 4 : i32
    %20 = tpu.dynamic_rotate %2 by %c4_i32 dim 1 : vector<32x128xf32>, i32 -> vector<32x128xf32>
    %21 = arith.cmpf ole, %20, %2 : vector<32x128xf32>
    %22 = arith.extui %21 : vector<32x128xi1> to vector<32x128xi32>
    %23 = arith.addi %15, %22 : vector<32x128xi32>
    %c5_i32 = arith.constant 5 : i32
    %24 = tpu.dynamic_rotate %2 by %c5_i32 dim 1 : vector<32x128xf32>, i32 -> vector<32x128xf32>
    %25 = arith.cmpf ole, %24, %2 : vector<32x128xf32>
    %26 = arith.extui %25 : vector<32x128xi1> to vector<32x128xi32>
    %27 = arith.addi %19, %26 : vector<32x128xi32>
    %c6_i32 = arith.constant 6 : i32
    %28 = tpu.dynamic_rotate %2 by %c6_i32 dim 1 : vector<32x128xf32>, i32 -> vector<32x128xf32>
    %29 = arith.cmpf ole, %28, %2 : vector<32x128xf32>
    %30 = arith.extui %29 : vector<32x128xi1> to vector<32x128xi32>
    %31 = arith.addi %23, %30 : vector<32x128xi32>
    %c7_i32 = arith.constant 7 : i32
    %32 = tpu.dynamic_rotate %2 by %c7_i32 dim 1 : vector<32x128xf32>, i32 -> vector<32x128xf32>
    %33 = arith.cmpf ole, %32, %2 : vector<32x128xf32>
    %34 = arith.extui %33 : vector<32x128xi1> to vector<32x128xi32>
    %35 = arith.addi %27, %34 : vector<32x128xi32>
    %c8_i32 = arith.constant 8 : i32
    %36 = tpu.dynamic_rotate %2 by %c8_i32 dim 1 : vector<32x128xf32>, i32 -> vector<32x128xf32>
    %37 = arith.cmpf ole, %36, %2 : vector<32x128xf32>
    %38 = arith.extui %37 : vector<32x128xi1> to vector<32x128xi32>
    %39 = arith.addi %31, %38 : vector<32x128xi32>
    %c9_i32 = arith.constant 9 : i32
    %40 = tpu.dynamic_rotate %2 by %c9_i32 dim 1 : vector<32x128xf32>, i32 -> vector<32x128xf32>
    %41 = arith.cmpf ole, %40, %2 : vector<32x128xf32>
    %42 = arith.extui %41 : vector<32x128xi1> to vector<32x128xi32>
    %43 = arith.addi %35, %42 : vector<32x128xi32>
    %c10_i32 = arith.constant 10 : i32
    %44 = tpu.dynamic_rotate %2 by %c10_i32 dim 1 : vector<32x128xf32>, i32 -> vector<32x128xf32>
    %45 = arith.cmpf ole, %44, %2 : vector<32x128xf32>
    %46 = arith.extui %45 : vector<32x128xi1> to vector<32x128xi32>
    %47 = arith.addi %39, %46 : vector<32x128xi32>
    %c11_i32 = arith.constant 11 : i32
    %48 = tpu.dynamic_rotate %2 by %c11_i32 dim 1 : vector<32x128xf32>, i32 -> vector<32x128xf32>
    %49 = arith.cmpf ole, %48, %2 : vector<32x128xf32>
    %50 = arith.extui %49 : vector<32x128xi1> to vector<32x128xi32>
    %51 = arith.addi %43, %50 : vector<32x128xi32>
    %c12_i32 = arith.constant 12 : i32
    %52 = tpu.dynamic_rotate %2 by %c12_i32 dim 1 : vector<32x128xf32>, i32 -> vector<32x128xf32>
    %53 = arith.cmpf ole, %52, %2 : vector<32x128xf32>
    %54 = arith.extui %53 : vector<32x128xi1> to vector<32x128xi32>
    %55 = arith.addi %47, %54 : vector<32x128xi32>
    %c13_i32 = arith.constant 13 : i32
    %56 = tpu.dynamic_rotate %2 by %c13_i32 dim 1 : vector<32x128xf32>, i32 -> vector<32x128xf32>
    %57 = arith.cmpf ole, %56, %2 : vector<32x128xf32>
    %58 = arith.extui %57 : vector<32x128xi1> to vector<32x128xi32>
    %59 = arith.addi %51, %58 : vector<32x128xi32>
    %c14_i32 = arith.constant 14 : i32
    %60 = tpu.dynamic_rotate %2 by %c14_i32 dim 1 : vector<32x128xf32>, i32 -> vector<32x128xf32>
    %61 = arith.cmpf ole, %60, %2 : vector<32x128xf32>
    %62 = arith.extui %61 : vector<32x128xi1> to vector<32x128xi32>
    %63 = arith.addi %55, %62 : vector<32x128xi32>
    %c15_i32 = arith.constant 15 : i32
    %64 = tpu.dynamic_rotate %2 by %c15_i32 dim 1 : vector<32x128xf32>, i32 -> vector<32x128xf32>
    %65 = arith.cmpf ole, %64, %2 : vector<32x128xf32>
    %66 = arith.extui %65 : vector<32x128xi1> to vector<32x128xi32>
    %67 = arith.addi %59, %66 : vector<32x128xi32>
    %c16_i32 = arith.constant 16 : i32
    %68 = tpu.dynamic_rotate %2 by %c16_i32 dim 1 : vector<32x128xf32>, i32 -> vector<32x128xf32>
    %69 = arith.cmpf ole, %68, %2 : vector<32x128xf32>
    %70 = arith.extui %69 : vector<32x128xi1> to vector<32x128xi32>
    %71 = arith.addi %63, %70 : vector<32x128xi32>
    %c17_i32 = arith.constant 17 : i32
    %72 = tpu.dynamic_rotate %2 by %c17_i32 dim 1 : vector<32x128xf32>, i32 -> vector<32x128xf32>
    %73 = arith.cmpf ole, %72, %2 : vector<32x128xf32>
    %74 = arith.extui %73 : vector<32x128xi1> to vector<32x128xi32>
    %75 = arith.addi %67, %74 : vector<32x128xi32>
    %c18_i32 = arith.constant 18 : i32
    %76 = tpu.dynamic_rotate %2 by %c18_i32 dim 1 : vector<32x128xf32>, i32 -> vector<32x128xf32>
    %77 = arith.cmpf ole, %76, %2 : vector<32x128xf32>
    %78 = arith.extui %77 : vector<32x128xi1> to vector<32x128xi32>
    %79 = arith.addi %71, %78 : vector<32x128xi32>
    %c19_i32 = arith.constant 19 : i32
    %80 = tpu.dynamic_rotate %2 by %c19_i32 dim 1 : vector<32x128xf32>, i32 -> vector<32x128xf32>
    %81 = arith.cmpf ole, %80, %2 : vector<32x128xf32>
    %82 = arith.extui %81 : vector<32x128xi1> to vector<32x128xi32>
    %83 = arith.addi %75, %82 : vector<32x128xi32>
    %c20_i32 = arith.constant 20 : i32
    %84 = tpu.dynamic_rotate %2 by %c20_i32 dim 1 : vector<32x128xf32>, i32 -> vector<32x128xf32>
    %85 = arith.cmpf ole, %84, %2 : vector<32x128xf32>
    %86 = arith.extui %85 : vector<32x128xi1> to vector<32x128xi32>
    %87 = arith.addi %79, %86 : vector<32x128xi32>
    %c21_i32 = arith.constant 21 : i32
    %88 = tpu.dynamic_rotate %2 by %c21_i32 dim 1 : vector<32x128xf32>, i32 -> vector<32x128xf32>
    %89 = arith.cmpf ole, %88, %2 : vector<32x128xf32>
    %90 = arith.extui %89 : vector<32x128xi1> to vector<32x128xi32>
    %91 = arith.addi %83, %90 : vector<32x128xi32>
    %c22_i32 = arith.constant 22 : i32
    %92 = tpu.dynamic_rotate %2 by %c22_i32 dim 1 : vector<32x128xf32>, i32 -> vector<32x128xf32>
    %93 = arith.cmpf ole, %92, %2 : vector<32x128xf32>
    %94 = arith.extui %93 : vector<32x128xi1> to vector<32x128xi32>
    %95 = arith.addi %87, %94 : vector<32x128xi32>
    %c23_i32 = arith.constant 23 : i32
    %96 = tpu.dynamic_rotate %2 by %c23_i32 dim 1 : vector<32x128xf32>, i32 -> vector<32x128xf32>
    %97 = arith.cmpf ole, %96, %2 : vector<32x128xf32>
    %98 = arith.extui %97 : vector<32x128xi1> to vector<32x128xi32>
    %99 = arith.addi %91, %98 : vector<32x128xi32>
    %c24_i32 = arith.constant 24 : i32
    %100 = tpu.dynamic_rotate %2 by %c24_i32 dim 1 : vector<32x128xf32>, i32 -> vector<32x128xf32>
    %101 = arith.cmpf ole, %100, %2 : vector<32x128xf32>
    %102 = arith.extui %101 : vector<32x128xi1> to vector<32x128xi32>
    %103 = arith.addi %95, %102 : vector<32x128xi32>
    %c25_i32 = arith.constant 25 : i32
    %104 = tpu.dynamic_rotate %2 by %c25_i32 dim 1 : vector<32x128xf32>, i32 -> vector<32x128xf32>
    %105 = arith.cmpf ole, %104, %2 : vector<32x128xf32>
    %106 = arith.extui %105 : vector<32x128xi1> to vector<32x128xi32>
    %107 = arith.addi %99, %106 : vector<32x128xi32>
    %c26_i32 = arith.constant 26 : i32
    %108 = tpu.dynamic_rotate %2 by %c26_i32 dim 1 : vector<32x128xf32>, i32 -> vector<32x128xf32>
    %109 = arith.cmpf ole, %108, %2 : vector<32x128xf32>
    %110 = arith.extui %109 : vector<32x128xi1> to vector<32x128xi32>
    %111 = arith.addi %103, %110 : vector<32x128xi32>
    %c27_i32 = arith.constant 27 : i32
    %112 = tpu.dynamic_rotate %2 by %c27_i32 dim 1 : vector<32x128xf32>, i32 -> vector<32x128xf32>
    %113 = arith.cmpf ole, %112, %2 : vector<32x128xf32>
    %114 = arith.extui %113 : vector<32x128xi1> to vector<32x128xi32>
    %115 = arith.addi %107, %114 : vector<32x128xi32>
    %c28_i32 = arith.constant 28 : i32
    %116 = tpu.dynamic_rotate %2 by %c28_i32 dim 1 : vector<32x128xf32>, i32 -> vector<32x128xf32>
    %117 = arith.cmpf ole, %116, %2 : vector<32x128xf32>
    %118 = arith.extui %117 : vector<32x128xi1> to vector<32x128xi32>
    %119 = arith.addi %111, %118 : vector<32x128xi32>
    %c29_i32 = arith.constant 29 : i32
    %120 = tpu.dynamic_rotate %2 by %c29_i32 dim 1 : vector<32x128xf32>, i32 -> vector<32x128xf32>
    %121 = arith.cmpf ole, %120, %2 : vector<32x128xf32>
    %122 = arith.extui %121 : vector<32x128xi1> to vector<32x128xi32>
    %123 = arith.addi %115, %122 : vector<32x128xi32>
    %c30_i32 = arith.constant 30 : i32
    %124 = tpu.dynamic_rotate %2 by %c30_i32 dim 1 : vector<32x128xf32>, i32 -> vector<32x128xf32>
    %125 = arith.cmpf ole, %124, %2 : vector<32x128xf32>
    %126 = arith.extui %125 : vector<32x128xi1> to vector<32x128xi32>
    %127 = arith.addi %119, %126 : vector<32x128xi32>
    %c31_i32 = arith.constant 31 : i32
    %128 = tpu.dynamic_rotate %2 by %c31_i32 dim 1 : vector<32x128xf32>, i32 -> vector<32x128xf32>
    %129 = arith.cmpf ole, %128, %2 : vector<32x128xf32>
    %130 = arith.extui %129 : vector<32x128xi1> to vector<32x128xi32>
    %131 = arith.addi %123, %130 : vector<32x128xi32>
    %c32_i32 = arith.constant 32 : i32
    %132 = tpu.dynamic_rotate %2 by %c32_i32 dim 1 : vector<32x128xf32>, i32 -> vector<32x128xf32>
    %133 = arith.cmpf ole, %132, %2 : vector<32x128xf32>
    %134 = arith.extui %133 : vector<32x128xi1> to vector<32x128xi32>
    %135 = arith.addi %127, %134 : vector<32x128xi32>
    %c33_i32 = arith.constant 33 : i32
    %136 = tpu.dynamic_rotate %2 by %c33_i32 dim 1 : vector<32x128xf32>, i32 -> vector<32x128xf32>
    %137 = arith.cmpf ole, %136, %2 : vector<32x128xf32>
    %138 = arith.extui %137 : vector<32x128xi1> to vector<32x128xi32>
    %139 = arith.addi %131, %138 : vector<32x128xi32>
    %c34_i32 = arith.constant 34 : i32
    %140 = tpu.dynamic_rotate %2 by %c34_i32 dim 1 : vector<32x128xf32>, i32 -> vector<32x128xf32>
    %141 = arith.cmpf ole, %140, %2 : vector<32x128xf32>
    %142 = arith.extui %141 : vector<32x128xi1> to vector<32x128xi32>
    %143 = arith.addi %135, %142 : vector<32x128xi32>
    %c35_i32 = arith.constant 35 : i32
    %144 = tpu.dynamic_rotate %2 by %c35_i32 dim 1 : vector<32x128xf32>, i32 -> vector<32x128xf32>
    %145 = arith.cmpf ole, %144, %2 : vector<32x128xf32>
    %146 = arith.extui %145 : vector<32x128xi1> to vector<32x128xi32>
    %147 = arith.addi %139, %146 : vector<32x128xi32>
    %c36_i32 = arith.constant 36 : i32
    %148 = tpu.dynamic_rotate %2 by %c36_i32 dim 1 : vector<32x128xf32>, i32 -> vector<32x128xf32>
    %149 = arith.cmpf ole, %148, %2 : vector<32x128xf32>
    %150 = arith.extui %149 : vector<32x128xi1> to vector<32x128xi32>
    %151 = arith.addi %143, %150 : vector<32x128xi32>
    %c37_i32 = arith.constant 37 : i32
    %152 = tpu.dynamic_rotate %2 by %c37_i32 dim 1 : vector<32x128xf32>, i32 -> vector<32x128xf32>
    %153 = arith.cmpf ole, %152, %2 : vector<32x128xf32>
    %154 = arith.extui %153 : vector<32x128xi1> to vector<32x128xi32>
    %155 = arith.addi %147, %154 : vector<32x128xi32>
    %c38_i32 = arith.constant 38 : i32
    %156 = tpu.dynamic_rotate %2 by %c38_i32 dim 1 : vector<32x128xf32>, i32 -> vector<32x128xf32>
    %157 = arith.cmpf ole, %156, %2 : vector<32x128xf32>
    %158 = arith.extui %157 : vector<32x128xi1> to vector<32x128xi32>
    %159 = arith.addi %151, %158 : vector<32x128xi32>
    %c39_i32 = arith.constant 39 : i32
    %160 = tpu.dynamic_rotate %2 by %c39_i32 dim 1 : vector<32x128xf32>, i32 -> vector<32x128xf32>
    %161 = arith.cmpf ole, %160, %2 : vector<32x128xf32>
    %162 = arith.extui %161 : vector<32x128xi1> to vector<32x128xi32>
    %163 = arith.addi %155, %162 : vector<32x128xi32>
    %c40_i32 = arith.constant 40 : i32
    %164 = tpu.dynamic_rotate %2 by %c40_i32 dim 1 : vector<32x128xf32>, i32 -> vector<32x128xf32>
    %165 = arith.cmpf ole, %164, %2 : vector<32x128xf32>
    %166 = arith.extui %165 : vector<32x128xi1> to vector<32x128xi32>
    %167 = arith.addi %159, %166 : vector<32x128xi32>
    %c41_i32 = arith.constant 41 : i32
    %168 = tpu.dynamic_rotate %2 by %c41_i32 dim 1 : vector<32x128xf32>, i32 -> vector<32x128xf32>
    %169 = arith.cmpf ole, %168, %2 : vector<32x128xf32>
    %170 = arith.extui %169 : vector<32x128xi1> to vector<32x128xi32>
    %171 = arith.addi %163, %170 : vector<32x128xi32>
    %c42_i32 = arith.constant 42 : i32
    %172 = tpu.dynamic_rotate %2 by %c42_i32 dim 1 : vector<32x128xf32>, i32 -> vector<32x128xf32>
    %173 = arith.cmpf ole, %172, %2 : vector<32x128xf32>
    %174 = arith.extui %173 : vector<32x128xi1> to vector<32x128xi32>
    %175 = arith.addi %167, %174 : vector<32x128xi32>
    %c43_i32 = arith.constant 43 : i32
    %176 = tpu.dynamic_rotate %2 by %c43_i32 dim 1 : vector<32x128xf32>, i32 -> vector<32x128xf32>
    %177 = arith.cmpf ole, %176, %2 : vector<32x128xf32>
    %178 = arith.extui %177 : vector<32x128xi1> to vector<32x128xi32>
    %179 = arith.addi %171, %178 : vector<32x128xi32>
    %c44_i32 = arith.constant 44 : i32
    %180 = tpu.dynamic_rotate %2 by %c44_i32 dim 1 : vector<32x128xf32>, i32 -> vector<32x128xf32>
    %181 = arith.cmpf ole, %180, %2 : vector<32x128xf32>
    %182 = arith.extui %181 : vector<32x128xi1> to vector<32x128xi32>
    %183 = arith.addi %175, %182 : vector<32x128xi32>
    %c45_i32 = arith.constant 45 : i32
    %184 = tpu.dynamic_rotate %2 by %c45_i32 dim 1 : vector<32x128xf32>, i32 -> vector<32x128xf32>
    %185 = arith.cmpf ole, %184, %2 : vector<32x128xf32>
    %186 = arith.extui %185 : vector<32x128xi1> to vector<32x128xi32>
    %187 = arith.addi %179, %186 : vector<32x128xi32>
    %c46_i32 = arith.constant 46 : i32
    %188 = tpu.dynamic_rotate %2 by %c46_i32 dim 1 : vector<32x128xf32>, i32 -> vector<32x128xf32>
    %189 = arith.cmpf ole, %188, %2 : vector<32x128xf32>
    %190 = arith.extui %189 : vector<32x128xi1> to vector<32x128xi32>
    %191 = arith.addi %183, %190 : vector<32x128xi32>
    %c47_i32 = arith.constant 47 : i32
    %192 = tpu.dynamic_rotate %2 by %c47_i32 dim 1 : vector<32x128xf32>, i32 -> vector<32x128xf32>
    %193 = arith.cmpf ole, %192, %2 : vector<32x128xf32>
    %194 = arith.extui %193 : vector<32x128xi1> to vector<32x128xi32>
    %195 = arith.addi %187, %194 : vector<32x128xi32>
    %c48_i32 = arith.constant 48 : i32
    %196 = tpu.dynamic_rotate %2 by %c48_i32 dim 1 : vector<32x128xf32>, i32 -> vector<32x128xf32>
    %197 = arith.cmpf ole, %196, %2 : vector<32x128xf32>
    %198 = arith.extui %197 : vector<32x128xi1> to vector<32x128xi32>
    %199 = arith.addi %191, %198 : vector<32x128xi32>
    %c49_i32 = arith.constant 49 : i32
    %200 = tpu.dynamic_rotate %2 by %c49_i32 dim 1 : vector<32x128xf32>, i32 -> vector<32x128xf32>
    %201 = arith.cmpf ole, %200, %2 : vector<32x128xf32>
    %202 = arith.extui %201 : vector<32x128xi1> to vector<32x128xi32>
    %203 = arith.addi %195, %202 : vector<32x128xi32>
    %c50_i32 = arith.constant 50 : i32
    %204 = tpu.dynamic_rotate %2 by %c50_i32 dim 1 : vector<32x128xf32>, i32 -> vector<32x128xf32>
    %205 = arith.cmpf ole, %204, %2 : vector<32x128xf32>
    %206 = arith.extui %205 : vector<32x128xi1> to vector<32x128xi32>
    %207 = arith.addi %199, %206 : vector<32x128xi32>
    %c51_i32 = arith.constant 51 : i32
    %208 = tpu.dynamic_rotate %2 by %c51_i32 dim 1 : vector<32x128xf32>, i32 -> vector<32x128xf32>
    %209 = arith.cmpf ole, %208, %2 : vector<32x128xf32>
    %210 = arith.extui %209 : vector<32x128xi1> to vector<32x128xi32>
    %211 = arith.addi %203, %210 : vector<32x128xi32>
    %c52_i32 = arith.constant 52 : i32
    %212 = tpu.dynamic_rotate %2 by %c52_i32 dim 1 : vector<32x128xf32>, i32 -> vector<32x128xf32>
    %213 = arith.cmpf ole, %212, %2 : vector<32x128xf32>
    %214 = arith.extui %213 : vector<32x128xi1> to vector<32x128xi32>
    %215 = arith.addi %207, %214 : vector<32x128xi32>
    %c53_i32 = arith.constant 53 : i32
    %216 = tpu.dynamic_rotate %2 by %c53_i32 dim 1 : vector<32x128xf32>, i32 -> vector<32x128xf32>
    %217 = arith.cmpf ole, %216, %2 : vector<32x128xf32>
    %218 = arith.extui %217 : vector<32x128xi1> to vector<32x128xi32>
    %219 = arith.addi %211, %218 : vector<32x128xi32>
    %c54_i32 = arith.constant 54 : i32
    %220 = tpu.dynamic_rotate %2 by %c54_i32 dim 1 : vector<32x128xf32>, i32 -> vector<32x128xf32>
    %221 = arith.cmpf ole, %220, %2 : vector<32x128xf32>
    %222 = arith.extui %221 : vector<32x128xi1> to vector<32x128xi32>
    %223 = arith.addi %215, %222 : vector<32x128xi32>
    %c55_i32 = arith.constant 55 : i32
    %224 = tpu.dynamic_rotate %2 by %c55_i32 dim 1 : vector<32x128xf32>, i32 -> vector<32x128xf32>
    %225 = arith.cmpf ole, %224, %2 : vector<32x128xf32>
    %226 = arith.extui %225 : vector<32x128xi1> to vector<32x128xi32>
    %227 = arith.addi %219, %226 : vector<32x128xi32>
    %c56_i32 = arith.constant 56 : i32
    %228 = tpu.dynamic_rotate %2 by %c56_i32 dim 1 : vector<32x128xf32>, i32 -> vector<32x128xf32>
    %229 = arith.cmpf ole, %228, %2 : vector<32x128xf32>
    %230 = arith.extui %229 : vector<32x128xi1> to vector<32x128xi32>
    %231 = arith.addi %223, %230 : vector<32x128xi32>
    %c57_i32 = arith.constant 57 : i32
    %232 = tpu.dynamic_rotate %2 by %c57_i32 dim 1 : vector<32x128xf32>, i32 -> vector<32x128xf32>
    %233 = arith.cmpf ole, %232, %2 : vector<32x128xf32>
    %234 = arith.extui %233 : vector<32x128xi1> to vector<32x128xi32>
    %235 = arith.addi %227, %234 : vector<32x128xi32>
    %c58_i32 = arith.constant 58 : i32
    %236 = tpu.dynamic_rotate %2 by %c58_i32 dim 1 : vector<32x128xf32>, i32 -> vector<32x128xf32>
    %237 = arith.cmpf ole, %236, %2 : vector<32x128xf32>
    %238 = arith.extui %237 : vector<32x128xi1> to vector<32x128xi32>
    %239 = arith.addi %231, %238 : vector<32x128xi32>
    %c59_i32 = arith.constant 59 : i32
    %240 = tpu.dynamic_rotate %2 by %c59_i32 dim 1 : vector<32x128xf32>, i32 -> vector<32x128xf32>
    %241 = arith.cmpf ole, %240, %2 : vector<32x128xf32>
    %242 = arith.extui %241 : vector<32x128xi1> to vector<32x128xi32>
    %243 = arith.addi %235, %242 : vector<32x128xi32>
    %c60_i32 = arith.constant 60 : i32
    %244 = tpu.dynamic_rotate %2 by %c60_i32 dim 1 : vector<32x128xf32>, i32 -> vector<32x128xf32>
    %245 = arith.cmpf ole, %244, %2 : vector<32x128xf32>
    %246 = arith.extui %245 : vector<32x128xi1> to vector<32x128xi32>
    %247 = arith.addi %239, %246 : vector<32x128xi32>
    %c61_i32 = arith.constant 61 : i32
    %248 = tpu.dynamic_rotate %2 by %c61_i32 dim 1 : vector<32x128xf32>, i32 -> vector<32x128xf32>
    %249 = arith.cmpf ole, %248, %2 : vector<32x128xf32>
    %250 = arith.extui %249 : vector<32x128xi1> to vector<32x128xi32>
    %251 = arith.addi %243, %250 : vector<32x128xi32>
    %c62_i32 = arith.constant 62 : i32
    %252 = tpu.dynamic_rotate %2 by %c62_i32 dim 1 : vector<32x128xf32>, i32 -> vector<32x128xf32>
    %253 = arith.cmpf ole, %252, %2 : vector<32x128xf32>
    %254 = arith.extui %253 : vector<32x128xi1> to vector<32x128xi32>
    %255 = arith.addi %247, %254 : vector<32x128xi32>
    %c63_i32 = arith.constant 63 : i32
    %256 = tpu.dynamic_rotate %2 by %c63_i32 dim 1 : vector<32x128xf32>, i32 -> vector<32x128xf32>
    %257 = arith.cmpf ole, %256, %2 : vector<32x128xf32>
    %258 = arith.extui %257 : vector<32x128xi1> to vector<32x128xi32>
    %259 = arith.addi %251, %258 : vector<32x128xi32>
    %260 = arith.addi %255, %259 : vector<32x128xi32>
    %c32_i32_5 = arith.constant 32 : i32
    %261 = vector.broadcast %c32_i32_5 : i32 to vector<32x128xi32>
    %262 = arith.cmpi sge, %260, %261 : vector<32x128xi32>
    %cst_6 = arith.constant 1.000000e+30 : f32
    %263 = vector.broadcast %cst_6 : f32 to vector<32x128xf32>
    %264 = arith.select %262, %2, %263 : vector<32x128xi1>, vector<32x128xf32>
    %cst_7 = arith.constant dense<0x7F800000> : vector<32xf32>
    %265 = vector.multi_reduction <minimumf>, %264, %cst_7 [1] : vector<32x128xf32> to vector<32xf32>
    %266 = vector.shape_cast %265 : vector<32xf32> to vector<32x1xf32>
    %267 = vector.extract_strided_slice %2 {offsets = [0, 0], sizes = [32, 64], strides = [1, 1]} : vector<32x128xf32> to vector<32x64xf32>
    %268 = vector.broadcast %266 : vector<32x1xf32> to vector<32x64xf32>
    %269 = arith.cmpf ogt, %267, %268 : vector<32x64xf32>
    %270 = arith.extui %269 : vector<32x64xi1> to vector<32x64xi8>
    %c0_8 = arith.constant 0 : index
    %c0_9 = arith.constant 0 : index
    %271 = vector.load %arg3[%c0_8, %c0_9] : memref<32x64xi8, #tpu.memory_space<vmem>>, vector<32x64xi8>
    tpu.vector_store %arg3[%c0_8, %c0_9], %270 {strides = array<i32>} : memref<32x64xi8, #tpu.memory_space<vmem>>, vector<32x64xi8>,
    return
  }
  func.func @transform_0(%arg0: i32) -> (i32, i32) {
    %c0_i32 = arith.constant 0 : i32
    %c0_i32_0 = arith.constant 0 : i32
    return %arg0, %c0_i32 : i32, i32
  }
  func.func @transform_1(%arg0: i32) -> (i32, i32) {
    %c0_i32 = arith.constant 0 : i32
    %c0_i32_0 = arith.constant 0 : i32
    %c0_i32_1 = arith.constant 0 : i32
    return %c0_i32, %c0_i32_0 : i32, i32
  }
  func.func @transform_2(%arg0: i32) -> (i32, i32) {
    %c0_i32 = arith.constant 0 : i32
    %c0_i32_0 = arith.constant 0 : i32
    return %arg0, %c0_i32 : i32, i32
  }
  func.func @transform_3(%arg0: i32) -> (i32, i32) {
    %c0_i32 = arith.constant 0 : i32
    %c0_i32_0 = arith.constant 0 : i32
    return %arg0, %c0_i32 : i32, i32
  }
}

</mosaic_0001>

<llo_original>
// kernel: phash_pallas.1
$region0: #{phash_pallas.1}
  #allocation0 [shape = 'u32[]', space=smem, size = 0x4, offset = 0x4, fixed_abs, tag = 'smem constant byte address 0x4 - core index']
  #allocation1 [shape = 'u32[144,128]{1,0:T(1,128)}', space=vmem, size = 0x12000, scoped, tag = 'internal scratch']
  %s0 = inlined_call_operand.vmem [shape: f32[32,1024], index: 0, kind: input, shape index: {}]
  %s1 = inlined_call_operand.vmem [shape: f32[1024,128], index: 1, kind: input, shape index: {}]
  %s2 = inlined_call_operand.vmem [shape: s8[32,64], index: 2, kind: output, shape index: {0}]
  %s3 = inlined_call_operand.vmem [shape: f32[32,64], index: 3, kind: output, shape index: {1}]
  %4 = xla_tuple %s2, %s3
  %s5 = sld [smem:[#allocation0]]
  $region26: #{phash_pallas.1} parent=0
    _
  %s7 = ssub.s32 1, %s5
  %s8 = scalar_select 0, %s7, %s5
  // Predicated region
  $region2: #{phash_pallas.1} parent=0 // pred_check
    _
  $region3: #{phash_pallas.1} parent=0 // pred_check_branch
    %10 = sbr.rel (0) target = $region5
  $region4: #{phash_pallas.1} parent=0 // pred_region
    _
  $region5: #{phash_pallas.1} parent=0 // pred_fallthru
    _
  // Predicated region
  $region6: #{phash_pallas.1} parent=0 // pred_check
    _
  $region7: #{phash_pallas.1} parent=0 // pred_check_branch
    %12 = sbr.rel (0) target = $region9
  $region8: #{phash_pallas.1} parent=0 // pred_region
    _
  $region9: #{phash_pallas.1} parent=0 // pred_fallthru
    _
  %v15 = vld [vmem:[%s0] sm:$0xff]
  %v16 = vld [vmem:[%s0 + $0x8] sm:$0xff]
  %v17 = vld [vmem:[%s0 + $0x10] sm:$0xff]
  %v18 = vld [vmem:[%s0 + $0x18] sm:$0xff]
  %v19 = vld [vmem:[%s0 + $0x20] sm:$0xff]
  %v20 = vld [vmem:[%s0 + $0x28] sm:$0xff]
  %v21 = vld [vmem:[%s0 + $0x30] sm:$0xff]
  %v22 = vld [vmem:[%s0 + $0x38] sm:$0xff]
  %v23 = vld [vmem:[%s0 + $0x40] sm:$0xff]
  %v24 = vld [vmem:[%s0 + $0x48] sm:$0xff]
  %v25 = vld [vmem:[%s0 + $0x50] sm:$0xff]
  %v26 = vld [vmem:[%s0 + $0x58] sm:$0xff]
  %v27 = vld [vmem:[%s0 + $0x60] sm:$0xff]
  %v28 = vld [vmem:[%s0 + $0x68] sm:$0xff]
  %v29 = vld [vmem:[%s0 + $0x70] sm:$0xff]
  %v30 = vld [vmem:[%s0 + $0x78] sm:$0xff]
  %v31 = vld [vmem:[%s0 + $0x80] sm:$0xff]
  %v32 = vld [vmem:[%s0 + $0x88] sm:$0xff]
  %v33 = vld [vmem:[%s0 + $0x90] sm:$0xff]
  %v34 = vld [vmem:[%s0 + $0x98] sm:$0xff]
  %v35 = vld [vmem:[%s0 + $0xa0] sm:$0xff]
  %v36 = vld [vmem:[%s0 + $0xa8] sm:$0xff]
  %v37 = vld [vmem:[%s0 + $0xb0] sm:$0xff]
  %v38 = vld [vmem:[%s0 + $0xb8] sm:$0xff]
  %v39 = vld [vmem:[%s0 + $0xc0] sm:$0xff]
  %v40 = vld [vmem:[%s0 + $0xc8] sm:$0xff]
  %v41 = vld [vmem:[%s0 + $0xd0] sm:$0xff]
  %v42 = vld [vmem:[%s0 + $0xd8] sm:$0xff]
  %v43 = vld [vmem:[%s0 + $0xe0] sm:$0xff]
  %v44 = vld [vmem:[%s0 + $0xe8] sm:$0xff]
  %v45 = vld [vmem:[%s0 + $0xf0] sm:$0xff]
  %v46 = vld [vmem:[%s0 + $0xf8] sm:$0xff]
  %v47 = vld [vmem:[%s1] sm:$0xff]
  %v48 = vld [vmem:[%s1 + $0x8] sm:$0xff]
  %v49 = vld [vmem:[%s1 + $0x10] sm:$0xff]
  %v50 = vld [vmem:[%s1 + $0x18] sm:$0xff]
  %v51 = vld [vmem:[%s1 + $0x20] sm:$0xff]
  %v52 = vld [vmem:[%s1 + $0x28] sm:$0xff]
  %v53 = vld [vmem:[%s1 + $0x30] sm:$0xff]
  %v54 = vld [vmem:[%s1 + $0x38] sm:$0xff]
  %v55 = vld [vmem:[%s1 + $0x40] sm:$0xff]
  %v56 = vld [vmem:[%s1 + $0x48] sm:$0xff]
  %v57 = vld [vmem:[%s1 + $0x50] sm:$0xff]
  %v58 = vld [vmem:[%s1 + $0x58] sm:$0xff]
  %v59 = vld [vmem:[%s1 + $0x60] sm:$0xff]
  %v60 = vld [vmem:[%s1 + $0x68] sm:$0xff]
  %v61 = vld [vmem:[%s1 + $0x70] sm:$0xff]
  %v62 = vld [vmem:[%s1 + $0x78] sm:$0xff]
  %v63 = vld [vmem:[%s1 + $0x80] sm:$0xff]
  %v64 = vld [vmem:[%s1 + $0x88] sm:$0xff]
  %v65 = vld [vmem:[%s1 + $0x90] sm:$0xff]
  %v66 = vld [vmem:[%s1 + $0x98] sm:$0xff]
  %v67 = vld [vmem:[%s1 + $0xa0] sm:$0xff]
  %v68 = vld [vmem:[%s1 + $0xa8] sm:$0xff]
  %v69 = vld [vmem:[%s1 + $0xb0] sm:$0xff]
  %v70 = vld [vmem:[%s1 + $0xb8] sm:$0xff]
  %v71 = vld [vmem:[%s1 + $0xc0] sm:$0xff]
  %v72 = vld [vmem:[%s1 + $0xc8] sm:$0xff]
  %v73 = vld [vmem:[%s1 + $0xd0] sm:$0xff]
  %v74 = vld [vmem:[%s1 + $0xd8] sm:$0xff]
  %v75 = vld [vmem:[%s1 + $0xe0] sm:$0xff]
  %v76 = vld [vmem:[%s1 + $0xe8] sm:$0xff]
  %v77 = vld [vmem:[%s1 + $0xf0] sm:$0xff]
  %v78 = vld [vmem:[%s1 + $0xf8] sm:$0xff]
  %v79 = vld [vmem:[%s1 + $0x100] sm:$0xff]
  %v80 = vld [vmem:[%s1 + $0x108] sm:$0xff]
  %v81 = vld [vmem:[%s1 + $0x110] sm:$0xff]
  %v82 = vld [vmem:[%s1 + $0x118] sm:$0xff]
  %v83 = vld [vmem:[%s1 + $0x120] sm:$0xff]
  %v84 = vld [vmem:[%s1 + $0x128] sm:$0xff]
  %v85 = vld [vmem:[%s1 + $0x130] sm:$0xff]
  %v86 = vld [vmem:[%s1 + $0x138] sm:$0xff]
  %v87 = vld [vmem:[%s1 + $0x140] sm:$0xff]
  %v88 = vld [vmem:[%s1 + $0x148] sm:$0xff]
  %v89 = vld [vmem:[%s1 + $0x150] sm:$0xff]
  %v90 = vld [vmem:[%s1 + $0x158] sm:$0xff]
  %v91 = vld [vmem:[%s1 + $0x160] sm:$0xff]
  %v92 = vld [vmem:[%s1 + $0x168] sm:$0xff]
  %v93 = vld [vmem:[%s1 + $0x170] sm:$0xff]
  %v94 = vld [vmem:[%s1 + $0x178] sm:$0xff]
  %v95 = vld [vmem:[%s1 + $0x180] sm:$0xff]
  %v96 = vld [vmem:[%s1 + $0x188] sm:$0xff]
  %v97 = vld [vmem:[%s1 + $0x190] sm:$0xff]
  %v98 = vld [vmem:[%s1 + $0x198] sm:$0xff]
  %v99 = vld [vmem:[%s1 + $0x1a0] sm:$0xff]
  %v100 = vld [vmem:[%s1 + $0x1a8] sm:$0xff]
  %v101 = vld [vmem:[%s1 + $0x1b0] sm:$0xff]
  %v102 = vld [vmem:[%s1 + $0x1b8] sm:$0xff]
  %v103 = vld [vmem:[%s1 + $0x1c0] sm:$0xff]
  %v104 = vld [vmem:[%s1 + $0x1c8] sm:$0xff]
  %v105 = vld [vmem:[%s1 + $0x1d0] sm:$0xff]
  %v106 = vld [vmem:[%s1 + $0x1d8] sm:$0xff]
  %v107 = vld [vmem:[%s1 + $0x1e0] sm:$0xff]
  %v108 = vld [vmem:[%s1 + $0x1e8] sm:$0xff]
  %v109 = vld [vmem:[%s1 + $0x1f0] sm:$0xff]
  %v110 = vld [vmem:[%s1 + $0x1f8] sm:$0xff]
  %v111 = vld [vmem:[%s1 + $0x200] sm:$0xff]
  %v112 = vld [vmem:[%s1 + $0x208] sm:$0xff]
  %v113 = vld [vmem:[%s1 + $0x210] sm:$0xff]
  %v114 = vld [vmem:[%s1 + $0x218] sm:$0xff]
  %v115 = vld [vmem:[%s1 + $0x220] sm:$0xff]
  %v116 = vld [vmem:[%s1 + $0x228] sm:$0xff]
  %v117 = vld [vmem:[%s1 + $0x230] sm:$0xff]
  %v118 = vld [vmem:[%s1 + $0x238] sm:$0xff]
  %v119 = vld [vmem:[%s1 + $0x240] sm:$0xff]
  %v120 = vld [vmem:[%s1 + $0x248] sm:$0xff]
  %v121 = vld [vmem:[%s1 + $0x250] sm:$0xff]
  %v122 = vld [vmem:[%s1 + $0x258] sm:$0xff]
  %v123 = vld [vmem:[%s1 + $0x260] sm:$0xff]
  %v124 = vld [vmem:[%s1 + $0x268] sm:$0xff]
  %v125 = vld [vmem:[%s1 + $0x270] sm:$0xff]
  %v126 = vld [vmem:[%s1 + $0x278] sm:$0xff]
  %v127 = vld [vmem:[%s1 + $0x280] sm:$0xff]
  %v128 = vld [vmem:[%s1 + $0x288] sm:$0xff]
  %v129 = vld [vmem:[%s1 + $0x290] sm:$0xff]
  %v130 = vld [vmem:[%s1 + $0x298] sm:$0xff]
  %v131 = vld [vmem:[%s1 + $0x2a0] sm:$0xff]
  %v132 = vld [vmem:[%s1 + $0x2a8] sm:$0xff]
  %v133 = vld [vmem:[%s1 + $0x2b0] sm:$0xff]
  %v134 = vld [vmem:[%s1 + $0x2b8] sm:$0xff]
  %v135 = vld [vmem:[%s1 + $0x2c0] sm:$0xff]
  %v136 = vld [vmem:[%s1 + $0x2c8] sm:$0xff]
  %v137 = vld [vmem:[%s1 + $0x2d0] sm:$0xff]
  %v138 = vld [vmem:[%s1 + $0x2d8] sm:$0xff]
  %v139 = vld [vmem:[%s1 + $0x2e0] sm:$0xff]
  %v140 = vld [vmem:[%s1 + $0x2e8] sm:$0xff]
  %v141 = vld [vmem:[%s1 + $0x2f0] sm:$0xff]
  %v142 = vld [vmem:[%s1 + $0x2f8] sm:$0xff]
  %v143 = vld [vmem:[%s1 + $0x300] sm:$0xff]
  %v144 = vld [vmem:[%s1 + $0x308] sm:$0xff]
  %v145 = vld [vmem:[%s1 + $0x310] sm:$0xff]
  %v146 = vld [vmem:[%s1 + $0x318] sm:$0xff]
  %v147 = vld [vmem:[%s1 + $0x320] sm:$0xff]
  %v148 = vld [vmem:[%s1 + $0x328] sm:$0xff]
  %v149 = vld [vmem:[%s1 + $0x330] sm:$0xff]
  %v150 = vld [vmem:[%s1 + $0x338] sm:$0xff]
  %v151 = vld [vmem:[%s1 + $0x340] sm:$0xff]
  %v152 = vld [vmem:[%s1 + $0x348] sm:$0xff]
  %v153 = vld [vmem:[%s1 + $0x350] sm:$0xff]
  %v154 = vld [vmem:[%s1 + $0x358] sm:$0xff]
  %v155 = vld [vmem:[%s1 + $0x360] sm:$0xff]
  %v156 = vld [vmem:[%s1 + $0x368] sm:$0xff]
  %v157 = vld [vmem:[%s1 + $0x370] sm:$0xff]
  %v158 = vld [vmem:[%s1 + $0x378] sm:$0xff]
  %v159 = vld [vmem:[%s1 + $0x380] sm:$0xff]
  %v160 = vld [vmem:[%s1 + $0x388] sm:$0xff]
  %v161 = vld [vmem:[%s1 + $0x390] sm:$0xff]
  %v162 = vld [vmem:[%s1 + $0x398] sm:$0xff]
  %v163 = vld [vmem:[%s1 + $0x3a0] sm:$0xff]
  %v164 = vld [vmem:[%s1 + $0x3a8] sm:$0xff]
  %v165 = vld [vmem:[%s1 + $0x3b0] sm:$0xff]
  %v166 = vld [vmem:[%s1 + $0x3b8] sm:$0xff]
  %v167 = vld [vmem:[%s1 + $0x3c0] sm:$0xff]
  %v168 = vld [vmem:[%s1 + $0x3c8] sm:$0xff]
  %v169 = vld [vmem:[%s1 + $0x3d0] sm:$0xff]
  %v170 = vld [vmem:[%s1 + $0x3d8] sm:$0xff]
  %v171 = vld [vmem:[%s1 + $0x3e0] sm:$0xff]
  %v172 = vld [vmem:[%s1 + $0x3e8] sm:$0xff]
  %v173 = vld [vmem:[%s1 + $0x3f0] sm:$0xff]
  %v174 = vld [vmem:[%s1 + $0x3f8] sm:$0xff]
  %175 = vmatprep.subr.mxu0 0.0
  %v176 = vand.u32 %v47, 4294901760
  %177 = vmatpush1.msra.mxu0 %v176
  %178 = vmatprep.subr.mxu0 0.0
  %v179 = vand.u32 %v48, 4294901760
  %180 = vmatpush1.msra.mxu0 %v179
  %181 = vmatprep.subr.mxu0 0.0
  %v182 = vand.u32 %v49, 4294901760
  %183 = vmatpush1.msra.mxu0 %v182
  %184 = vmatprep.subr.mxu0 0.0
  %v185 = vand.u32 %v50, 4294901760
  %186 = vmatpush1.msra.mxu0 %v185
  %187 = vmatprep.subr.mxu0 0.0
  %v188 = vand.u32 %v51, 4294901760
  %189 = vmatpush1.msra.mxu0 %v188
  %190 = vmatprep.subr.mxu0 0.0
  %v191 = vand.u32 %v52, 4294901760
  %192 = vmatpush1.msra.mxu0 %v191
  %193 = vmatprep.subr.mxu0 0.0
  %v194 = vand.u32 %v53, 4294901760
  %195 = vmatpush1.msra.mxu0 %v194
  %196 = vmatprep.subr.mxu0 0.0
  %v197 = vand.u32 %v54, 4294901760
  %198 = vmatpush1.msra.mxu0 %v197
  %199 = vmatprep.subr.mxu0 0.0
  %v200 = vand.u32 %v55, 4294901760
  %201 = vmatpush1.msra.mxu0 %v200
  %202 = vmatprep.subr.mxu0 0.0
  %v203 = vand.u32 %v56, 4294901760
  %204 = vmatpush1.msra.mxu0 %v203
  %205 = vmatprep.subr.mxu0 0.0
  %v206 = vand.u32 %v57, 4294901760
  %207 = vmatpush1.msra.mxu0 %v206
  %208 = vmatprep.subr.mxu0 0.0
  %v209 = vand.u32 %v58, 4294901760
  %210 = vmatpush1.msra.mxu0 %v209
  %211 = vmatprep.subr.mxu0 0.0
  %v212 = vand.u32 %v59, 4294901760
  %213 = vmatpush1.msra.mxu0 %v212
  %214 = vmatprep.subr.mxu0 0.0
  %v215 = vand.u32 %v60, 4294901760
  %216 = vmatpush1.msra.mxu0 %v215
  %217 = vmatprep.subr.mxu0 0.0
  %v218 = vand.u32 %v61, 4294901760
  %219 = vmatpush1.msra.mxu0 %v218
  %220 = vmatprep.subr.mxu0 0.0
  %v221 = vand.u32 %v62, 4294901760
  %222 = vmatpush1.msra.mxu0 %v221
  %223 = vmatprep.subr.mxu0 0.0
  %v224 = vand.u32 %v63, 4294901760
  %225 = vmatpush1.msra.mxu0 %v224
  %226 = vmatprep.subr.mxu0 0.0
  %v227 = vand.u32 %v64, 4294901760
  %228 = vmatpush1.msra.mxu0 %v227
  %229 = vmatprep.subr.mxu0 0.0
  %v230 = vand.u32 %v65, 4294901760
  %231 = vmatpush1.msra.mxu0 %v230
  %232 = vmatprep.subr.mxu0 0.0
  %v233 = vand.u32 %v66, 4294901760
  %234 = vmatpush1.msra.mxu0 %v233
  %235 = vmatprep.subr.mxu0 0.0
  %v236 = vand.u32 %v67, 4294901760
  %237 = vmatpush1.msra.mxu0 %v236
  %238 = vmatprep.subr.mxu0 0.0
  %v239 = vand.u32 %v68, 4294901760
  %240 = vmatpush1.msra.mxu0 %v239
  %241 = vmatprep.subr.mxu0 0.0
  %v242 = vand.u32 %v69, 4294901760
  %243 = vmatpush1.msra.mxu0 %v242
  %244 = vmatprep.subr.mxu0 0.0
  %v245 = vand.u32 %v70, 4294901760
  %246 = vmatpush1.msra.mxu0 %v245
  %247 = vmatprep.subr.mxu0 0.0
  %v248 = vand.u32 %v71, 4294901760
  %249 = vmatpush1.msra.mxu0 %v248
  %250 = vmatprep.subr.mxu0 0.0
  %v251 = vand.u32 %v72, 4294901760
  %252 = vmatpush1.msra.mxu0 %v251
  %253 = vmatprep.subr.mxu0 0.0
  %v254 = vand.u32 %v73, 4294901760
  %255 = vmatpush1.msra.mxu0 %v254
  %256 = vmatprep.subr.mxu0 0.0
  %v257 = vand.u32 %v74, 4294901760
  %258 = vmatpush1.msra.mxu0 %v257
  %259 = vmatprep.subr.mxu0 0.0
  %v260 = vand.u32 %v75, 4294901760
  %261 = vmatpush1.msra.mxu0 %v260
  %262 = vmatprep.subr.mxu0 0.0
  %v263 = vand.u32 %v76, 4294901760
  %264 = vmatpush1.msra.mxu0 %v263
  %265 = vmatprep.subr.mxu0 0.0
  %v266 = vand.u32 %v77, 4294901760
  %267 = vmatpush1.msra.mxu0 %v266
  %268 = vmatprep.subr.mxu0 0.0
  %v269 = vand.u32 %v78, 4294901760
  %270 = vmatpush1.msra.mxu0 %v269
  %v271 = vand.u32 %v16, 4294901760
  %v272 = vsub.f32 %v16, %v271
  %v273 = vand.u32 %v272, 4294901760
  %v274 = vsub.f32 %v272, %v273
  %v275 = vand.u32 %v274, 4294901760
  %276 = vmatprep.mubr.f32.mxu0 %v275
  %v277 = vand.u32 %v15, 4294901760
  %v278 = vsub.f32 %v15, %v277
  %v279 = vand.u32 %v278, 4294901760
  %v280 = vsub.f32 %v278, %v279
  %v281 = vand.u32 %v280, 4294901760
  %282 = vmatmul.mubr.f32.gmra.mrb[0].mxu0 %v281
  %v283 = vpop.f32.mrb[0].mxu0
  %v284 = vadd.f32 0.0, %v283
  %v285 = vpop.f32.mrb[0].mxu0
  %v286 = vand.u32 %v24, 4294901760
  %v287 = vsub.f32 %v24, %v286
  %v288 = vand.u32 %v287, 4294901760
  %v289 = vsub.f32 %v287, %v288
  %v290 = vand.u32 %v289, 4294901760
  %291 = vmatprep.mubr.f32.mxu0 %v290
  %v292 = vand.u32 %v23, 4294901760
  %v293 = vsub.f32 %v23, %v292
  %v294 = vand.u32 %v293, 4294901760
  %v295 = vsub.f32 %v293, %v294
  %v296 = vand.u32 %v295, 4294901760
  %297 = vmatmul.mubr.f32.gmra.mrb[0].mxu0 %v296
  %v298 = vpop.f32.mrb[0].mxu0
  %v299 = vadd.f32 0.0, %v298
  %v300 = vpop.f32.mrb[0].mxu0
  %v301 = vand.u32 %v32, 4294901760
  %v302 = vsub.f32 %v32, %v301
  %v303 = vand.u32 %v302, 4294901760
  %v304 = vsub.f32 %v302, %v303
  %v305 = vand.u32 %v304, 4294901760
  %306 = vmatprep.mubr.f32.mxu0 %v305
  %v307 = vand.u32 %v31, 4294901760
  %v308 = vsub.f32 %v31, %v307
  %v309 = vand.u32 %v308, 4294901760
  %v310 = vsub.f32 %v308, %v309
  %v311 = vand.u32 %v310, 4294901760
  %312 = vmatmul.mubr.f32.gmra.mrb[0].mxu0 %v311
  %v313 = vpop.f32.mrb[0].mxu0
  %v314 = vadd.f32 0.0, %v313
  %v315 = vpop.f32.mrb[0].mxu0
  %v316 = vand.u32 %v40, 4294901760
  %v317 = vsub.f32 %v40, %v316
  %v318 = vand.u32 %v317, 4294901760
  %v319 = vsub.f32 %v317, %v318
  %v320 = vand.u32 %v319, 4294901760
  %321 = vmatprep.mubr.f32.mxu0 %v320
  %v322 = vand.u32 %v39, 4294901760
  %v323 = vsub.f32 %v39, %v322
  %v324 = vand.u32 %v323, 4294901760
  %v325 = vsub.f32 %v323, %v324
  %v326 = vand.u32 %v325, 4294901760
  %327 = vmatmul.mubr.f32.gmra.mrb[0].mxu0 %v326
  %v328 = vpop.f32.mrb[0].mxu0
  %v329 = vadd.f32 0.0, %v328
  %v330 = vpop.f32.mrb[0].mxu0
  %331 = vdwg.mxu0
  %332 = vmatprep.subr.mxu0 0.0
  %v333 = vand.u32 %v47, 4294901760
  %v334 = vsub.f32 %v47, %v333
  %v335 = vand.u32 %v334, 4294901760
  %v336 = vsub.f32 %v334, %v335
  %v337 = vand.u32 %v336, 4294901760
  %338 = vmatpush1.msra.mxu0 %v337
  %339 = vmatprep.subr.mxu0 0.0
  %v340 = vand.u32 %v48, 4294901760
  %v341 = vsub.f32 %v48, %v340
  %v342 = vand.u32 %v341, 4294901760
  %v343 = vsub.f32 %v341, %v342
  %v344 = vand.u32 %v343, 4294901760
  %345 = vmatpush1.msra.mxu0 %v344
  %346 = vmatprep.subr.mxu0 0.0
  %v347 = vand.u32 %v49, 4294901760
  %v348 = vsub.f32 %v49, %v347
  %v349 = vand.u32 %v348, 4294901760
  %v350 = vsub.f32 %v348, %v349
  %v351 = vand.u32 %v350, 4294901760
  %352 = vmatpush1.msra.mxu0 %v351
  %353 = vmatprep.subr.mxu0 0.0
  %v354 = vand.u32 %v50, 4294901760
  %v355 = vsub.f32 %v50, %v354
  %v356 = vand.u32 %v355, 4294901760
  %v357 = vsub.f32 %v355, %v356
  %v358 = vand.u32 %v357, 4294901760
  %359 = vmatpush1.msra.mxu0 %v358
  %360 = vmatprep.subr.mxu0 0.0
  %v361 = vand.u32 %v51, 4294901760
  %v362 = vsub.f32 %v51, %v361
  %v363 = vand.u32 %v362, 4294901760
  %v364 = vsub.f32 %v362, %v363
  %v365 = vand.u32 %v364, 4294901760
  %366 = vmatpush1.msra.mxu0 %v365
  %367 = vmatprep.subr.mxu0 0.0
  %v368 = vand.u32 %v52, 4294901760
  %v369 = vsub.f32 %v52, %v368
  %v370 = vand.u32 %v369, 4294901760
  %v371 = vsub.f32 %v369, %v370
  %v372 = vand.u32 %v371, 4294901760
  %373 = vmatpush1.msra.mxu0 %v372
  %374 = vmatprep.subr.mxu0 0.0
  %v375 = vand.u32 %v53, 4294901760
  %v376 = vsub.f32 %v53, %v375
  %v377 = vand.u32 %v376, 4294901760
  %v378 = vsub.f32 %v376, %v377
  %v379 = vand.u32 %v378, 4294901760
  %380 = vmatpush1.msra.mxu0 %v379
  %381 = vmatprep.subr.mxu0 0.0
  %v382 = vand.u32 %v54, 4294901760
  %v383 = vsub.f32 %v54, %v382
  %v384 = vand.u32 %v383, 4294901760
  %v385 = vsub.f32 %v383, %v384
  %v386 = vand.u32 %v385, 4294901760
  %387 = vmatpush1.msra.mxu0 %v386
  %388 = vmatprep.subr.mxu0 0.0
  %v389 = vand.u32 %v55, 4294901760
  %v390 = vsub.f32 %v55, %v389
  %v391 = vand.u32 %v390, 4294901760
  %v392 = vsub.f32 %v390, %v391
  %v393 = vand.u32 %v392, 4294901760
  %394 = vmatpush1.msra.mxu0 %v393
  %395 = vmatprep.subr.mxu0 0.0
  %v396 = vand.u32 %v56, 4294901760
  %v397 = vsub.f32 %v56, %v396
  %v398 = vand.u32 %v397, 4294901760
  %v399 = vsub.f32 %v397, %v398
  %v400 = vand.u32 %v399, 4294901760
  %401 = vmatpush1.msra.mxu0 %v400
  %402 = vmatprep.subr.mxu0 0.0
  %v403 = vand.u32 %v57, 4294901760
  %v404 = vsub.f32 %v57, %v403
  %v405 = vand.u32 %v404, 4294901760
  %v406 = vsub.f32 %v404, %v405
  %v407 = vand.u32 %v406, 4294901760
  %408 = vmatpush1.msra.mxu0 %v407
  %409 = vmatprep.subr.mxu0 0.0
  %v410 = vand.u32 %v58, 4294901760
  %v411 = vsub.f32 %v58, %v410
  %v412 = vand.u32 %v411, 4294901760
  %v413 = vsub.f32 %v411, %v412
  %v414 = vand.u32 %v413, 4294901760
  %415 = vmatpush1.msra.mxu0 %v414
  %416 = vmatprep.subr.mxu0 0.0
  %v417 = vand.u32 %v59, 4294901760
  %v418 = vsub.f32 %v59, %v417
  %v419 = vand.u32 %v418, 4294901760
  %v420 = vsub.f32 %v418, %v419
  %v421 = vand.u32 %v420, 4294901760
  %422 = vmatpush1.msra.mxu0 %v421
  %423 = vmatprep.subr.mxu0 0.0
  %v424 = vand.u32 %v60, 4294901760
  %v425 = vsub.f32 %v60, %v424
  %v426 = vand.u32 %v425, 4294901760
  %v427 = vsub.f32 %v425, %v426
  %v428 = vand.u32 %v427, 4294901760
  %429 = vmatpush1.msra.mxu0 %v428
  %430 = vmatprep.subr.mxu0 0.0
  %v431 = vand.u32 %v61, 4294901760
  %v432 = vsub.f32 %v61, %v431
  %v433 = vand.u32 %v432, 4294901760
  %v434 = vsub.f32 %v432, %v433
  %v435 = vand.u32 %v434, 4294901760
  %436 = vmatpush1.msra.mxu0 %v435
  %437 = vmatprep.subr.mxu0 0.0
  %v438 = vand.u32 %v62, 4294901760
  %v439 = vsub.f32 %v62, %v438
  %v440 = vand.u32 %v439, 4294901760
  %v441 = vsub.f32 %v439, %v440
  %v442 = vand.u32 %v441, 4294901760
  %443 = vmatpush1.msra.mxu0 %v442
  %444 = vmatprep.subr.mxu0 0.0
  %v445 = vand.u32 %v63, 4294901760
  %v446 = vsub.f32 %v63, %v445
  %v447 = vand.u32 %v446, 4294901760
  %v448 = vsub.f32 %v446, %v447
  %v449 = vand.u32 %v448, 4294901760
  %450 = vmatpush1.msra.mxu0 %v449
  %451 = vmatprep.subr.mxu0 0.0
  %v452 = vand.u32 %v64, 4294901760
  %v453 = vsub.f32 %v64, %v452
  %v454 = vand.u32 %v453, 4294901760
  %v455 = vsub.f32 %v453, %v454
  %v456 = vand.u32 %v455, 4294901760
  %457 = vmatpush1.msra.mxu0 %v456
  %458 = vmatprep.subr.mxu0 0.0
  %v459 = vand.u32 %v65, 4294901760
  %v460 = vsub.f32 %v65, %v459
  %v461 = vand.u32 %v460, 4294901760
  %v462 = vsub.f32 %v460, %v461
  %v463 = vand.u32 %v462, 4294901760
  %464 = vmatpush1.msra.mxu0 %v463
  %465 = vmatprep.subr.mxu0 0.0
  %v466 = vand.u32 %v66, 4294901760
  %v467 = vsub.f32 %v66, %v466
  %v468 = vand.u32 %v467, 4294901760
  %v469 = vsub.f32 %v467, %v468
  %v470 = vand.u32 %v469, 4294901760
  %471 = vmatpush1.msra.mxu0 %v470
  %472 = vmatprep.subr.mxu0 0.0
  %v473 = vand.u32 %v67, 4294901760
  %v474 = vsub.f32 %v67, %v473
  %v475 = vand.u32 %v474, 4294901760
  %v476 = vsub.f32 %v474, %v475
  %v477 = vand.u32 %v476, 4294901760
  %478 = vmatpush1.msra.mxu0 %v477
  %479 = vmatprep.subr.mxu0 0.0
  %v480 = vand.u32 %v68, 4294901760
  %v481 = vsub.f32 %v68, %v480
  %v482 = vand.u32 %v481, 4294901760
  %v483 = vsub.f32 %v481, %v482
  %v484 = vand.u32 %v483, 4294901760
  %485 = vmatpush1.msra.mxu0 %v484
  %486 = vmatprep.subr.mxu0 0.0
  %v487 = vand.u32 %v69, 4294901760
  %v488 = vsub.f32 %v69, %v487
  %v489 = vand.u32 %v488, 4294901760
  %v490 = vsub.f32 %v488, %v489
  %v491 = vand.u32 %v490, 4294901760
  %492 = vmatpush1.msra.mxu0 %v491
  %493 = vmatprep.subr.mxu0 0.0
  %v494 = vand.u32 %v70, 4294901760
  %v495 = vsub.f32 %v70, %v494
  %v496 = vand.u32 %v495, 4294901760
  %v497 = vsub.f32 %v495, %v496
  %v498 = vand.u32 %v497, 4294901760
  %499 = vmatpush1.msra.mxu0 %v498
  %500 = vmatprep.subr.mxu0 0.0
  %v501 = vand.u32 %v71, 4294901760
  %v502 = vsub.f32 %v71, %v501
  %v503 = vand.u32 %v502, 4294901760
  %v504 = vsub.f32 %v502, %v503
  %v505 = vand.u32 %v504, 4294901760
  %506 = vmatpush1.msra.mxu0 %v505
  %507 = vmatprep.subr.mxu0 0.0
  %v508 = vand.u32 %v72, 4294901760
  %v509 = vsub.f32 %v72, %v508
  %v510 = vand.u32 %v509, 4294901760
  %v511 = vsub.f32 %v509, %v510
  %v512 = vand.u32 %v511, 4294901760
  %513 = vmatpush1.msra.mxu0 %v512
  %514 = vmatprep.subr.mxu0 0.0
  %v515 = vand.u32 %v73, 4294901760
  %v516 = vsub.f32 %v73, %v515
  %v517 = vand.u32 %v516, 4294901760
  %v518 = vsub.f32 %v516, %v517
  %v519 = vand.u32 %v518, 4294901760
  %520 = vmatpush1.msra.mxu0 %v519
  %521 = vmatprep.subr.mxu0 0.0
  %v522 = vand.u32 %v74, 4294901760
  %v523 = vsub.f32 %v74, %v522
  %v524 = vand.u32 %v523, 4294901760
  %v525 = vsub.f32 %v523, %v524
  %v526 = vand.u32 %v525, 4294901760
  %527 = vmatpush1.msra.mxu0 %v526
  %528 = vmatprep.subr.mxu0 0.0
  %v529 = vand.u32 %v75, 4294901760
  %v530 = vsub.f32 %v75, %v529
  %v531 = vand.u32 %v530, 4294901760
  %v532 = vsub.f32 %v530, %v531
  %v533 = vand.u32 %v532, 4294901760
  %534 = vmatpush1.msra.mxu0 %v533
  %535 = vmatprep.subr.mxu0 0.0
  %v536 = vand.u32 %v76, 4294901760
  %v537 = vsub.f32 %v76, %v536
  %v538 = vand.u32 %v537, 4294901760
  %v539 = vsub.f32 %v537, %v538
  %v540 = vand.u32 %v539, 4294901760
  %541 = vmatpush1.msra.mxu0 %v540
  %542 = vmatprep.subr.mxu0 0.0
  %v543 = vand.u32 %v77, 4294901760
  %v544 = vsub.f32 %v77, %v543
  %v545 = vand.u32 %v544, 4294901760
  %v546 = vsub.f32 %v544, %v545
  %v547 = vand.u32 %v546, 4294901760
  %548 = vmatpush1.msra.mxu0 %v547
  %549 = vmatprep.subr.mxu0 0.0
  %v550 = vand.u32 %v78, 4294901760
  %v551 = vsub.f32 %v78, %v550
  %v552 = vand.u32 %v551, 4294901760
  %v553 = vsub.f32 %v551, %v552
  %v554 = vand.u32 %v553, 4294901760
  %555 = vmatpush1.msra.mxu0 %v554
  %v556 = vand.u32 %v16, 4294901760
  %557 = vmatprep.mubr.f32.mxu0 %v556
  %v558 = vand.u32 %v15, 4294901760
  %559 = vmatmul.mubr.f32.gmra.mrb[0].mxu0 %v558
  %v560 = vpop.f32.mrb[0].mxu0
  %v561 = vadd.f32 %v284, %v560
  %v562 = vpop.f32.mrb[0].mxu0
  %v563 = vand.u32 %v24, 4294901760
  %564 = vmatprep.mubr.f32.mxu0 %v563
  %v565 = vand.u32 %v23, 4294901760
  %566 = vmatmul.mubr.f32.gmra.mrb[0].mxu0 %v565
  %v567 = vpop.f32.mrb[0].mxu0
  %v568 = vadd.f32 %v299, %v567
  %v569 = vpop.f32.mrb[0].mxu0
  %v570 = vand.u32 %v32, 4294901760
  %571 = vmatprep.mubr.f32.mxu0 %v570
  %v572 = vand.u32 %v31, 4294901760
  %573 = vmatmul.mubr.f32.gmra.mrb[0].mxu0 %v572
  %v574 = vpop.f32.mrb[0].mxu0
  %v575 = vadd.f32 %v314, %v574
  %v576 = vpop.f32.mrb[0].mxu0
  %v577 = vand.u32 %v40, 4294901760
  %578 = vmatprep.mubr.f32.mxu0 %v577
  %v579 = vand.u32 %v39, 4294901760
  %580 = vmatmul.mubr.f32.gmra.mrb[0].mxu0 %v579
  %v581 = vpop.f32.mrb[0].mxu0
  %v582 = vadd.f32 %v329, %v581
  %v583 = vpop.f32.mrb[0].mxu0
  %584 = vdwg.mxu0
  %585 = vmatprep.subr.mxu0 0.0
  %v586 = vand.u32 %v47, 4294901760
  %v587 = vsub.f32 %v47, %v586
  %588 = vmatpush1.msra.mxu0 %v587
  %589 = vmatprep.subr.mxu0 0.0
  %v590 = vand.u32 %v48, 4294901760
  %v591 = vsub.f32 %v48, %v590
  %592 = vmatpush1.msra.mxu0 %v591
  %593 = vmatprep.subr.mxu0 0.0
  %v594 = vand.u32 %v49, 4294901760
  %v595 = vsub.f32 %v49, %v594
  %596 = vmatpush1.msra.mxu0 %v595
  %597 = vmatprep.subr.mxu0 0.0
  %v598 = vand.u32 %v50, 4294901760
  %v599 = vsub.f32 %v50, %v598
  %600 = vmatpush1.msra.mxu0 %v599
  %601 = vmatprep.subr.mxu0 0.0
  %v602 = vand.u32 %v51, 4294901760
  %v603 = vsub.f32 %v51, %v602
  %604 = vmatpush1.msra.mxu0 %v603
  %605 = vmatprep.subr.mxu0 0.0
  %v606 = vand.u32 %v52, 4294901760
  %v607 = vsub.f32 %v52, %v606
  %608 = vmatpush1.msra.mxu0 %v607
  %609 = vmatprep.subr.mxu0 0.0
  %v610 = vand.u32 %v53, 4294901760
  %v611 = vsub.f32 %v53, %v610
  %612 = vmatpush1.msra.mxu0 %v611
  %613 = vmatprep.subr.mxu0 0.0
  %v614 = vand.u32 %v54, 4294901760
  %v615 = vsub.f32 %v54, %v614
  %616 = vmatpush1.msra.mxu0 %v615
  %617 = vmatprep.subr.mxu0 0.0
  %v618 = vand.u32 %v55, 4294901760
  %v619 = vsub.f32 %v55, %v618
  %620 = vmatpush1.msra.mxu0 %v619
  %621 = vmatprep.subr.mxu0 0.0
  %v622 = vand.u32 %v56, 4294901760
  %v623 = vsub.f32 %v56, %v622
  %624 = vmatpush1.msra.mxu0 %v623
  %625 = vmatprep.subr.mxu0 0.0
  %v626 = vand.u32 %v57, 4294901760
  %v627 = vsub.f32 %v57, %v626
  %628 = vmatpush1.msra.mxu0 %v627
  %629 = vmatprep.subr.mxu0 0.0
  %v630 = vand.u32 %v58, 4294901760
  %v631 = vsub.f32 %v58, %v630
  %632 = vmatpush1.msra.mxu0 %v631
  %633 = vmatprep.subr.mxu0 0.0
  %v634 = vand.u32 %v59, 4294901760
  %v635 = vsub.f32 %v59, %v634
  %636 = vmatpush1.msra.mxu0 %v635
  %637 = vmatprep.subr.mxu0 0.0
  %v638 = vand.u32 %v60, 4294901760
  %v639 = vsub.f32 %v60, %v638
  %640 = vmatpush1.msra.mxu0 %v639
  %641 = vmatprep.subr.mxu0 0.0
  %v642 = vand.u32 %v61, 4294901760
  %v643 = vsub.f32 %v61, %v642
  %644 = vmatpush1.msra.mxu0 %v643
  %645 = vmatprep.subr.mxu0 0.0
  %v646 = vand.u32 %v62, 4294901760
  %v647 = vsub.f32 %v62, %v646
  %648 = vmatpush1.msra.mxu0 %v647
  %649 = vmatprep.subr.mxu0 0.0
  %v650 = vand.u32 %v63, 4294901760
  %v651 = vsub.f32 %v63, %v650
  %652 = vmatpush1.msra.mxu0 %v651
  %653 = vmatprep.subr.mxu0 0.0
  %v654 = vand.u32 %v64, 4294901760
  %v655 = vsub.f32 %v64, %v654
  %656 = vmatpush1.msra.mxu0 %v655
  %657 = vmatprep.subr.mxu0 0.0
  %v658 = vand.u32 %v65, 4294901760
  %v659 = vsub.f32 %v65, %v658
  %660 = vmatpush1.msra.mxu0 %v659
  %661 = vmatprep.subr.mxu0 0.0
  %v662 = vand.u32 %v66, 4294901760
  %v663 = vsub.f32 %v66, %v662
  %664 = vmatpush1.msra.mxu0 %v663
  %665 = vmatprep.subr.mxu0 0.0
  %v666 = vand.u32 %v67, 4294901760
  %v667 = vsub.f32 %v67, %v666
  %668 = vmatpush1.msra.mxu0 %v667
  %669 = vmatprep.subr.mxu0 0.0
  %v670 = vand.u32 %v68, 4294901760
  %v671 = vsub.f32 %v68, %v670
  %672 = vmatpush1.msra.mxu0 %v671
  %673 = vmatprep.subr.mxu0 0.0
  %v674 = vand.u32 %v69, 4294901760
  %v675 = vsub.f32 %v69, %v674
  %676 = vmatpush1.msra.mxu0 %v675
  %677 = vmatprep.subr.mxu0 0.0
  %v678 = vand.u32 %v70, 4294901760
  %v679 = vsub.f32 %v70, %v678
  %680 = vmatpush1.msra.mxu0 %v679
  %681 = vmatprep.subr.mxu0 0.0
  %v682 = vand.u32 %v71, 4294901760
  %v683 = vsub.f32 %v71, %v682
  %684 = vmatpush1.msra.mxu0 %v683
  %685 = vmatprep.subr.mxu0 0.0
  %v686 = vand.u32 %v72, 4294901760
  %v687 = vsub.f32 %v72, %v686
  %688 = vmatpush1.msra.mxu0 %v687
  %689 = vmatprep.subr.mxu0 0.0
  %v690 = vand.u32 %v73, 4294901760
  %v691 = vsub.f32 %v73, %v690
  %692 = vmatpush1.msra.mxu0 %v691
  %693 = vmatprep.subr.mxu0 0.0
  %v694 = vand.u32 %v74, 4294901760
  %v695 = vsub.f32 %v74, %v694
  %696 = vmatpush1.msra.mxu0 %v695
  %697 = vmatprep.subr.mxu0 0.0
  %v698 = vand.u32 %v75, 4294901760
  %v699 = vsub.f32 %v75, %v698
  %700 = vmatpush1.msra.mxu0 %v699
  %701 = vmatprep.subr.mxu0 0.0
  %v702 = vand.u32 %v76, 4294901760
  %v703 = vsub.f32 %v76, %v702
  %704 = vmatpush1.msra.mxu0 %v703
  %705 = vmatprep.subr.mxu0 0.0
  %v706 = vand.u32 %v77, 4294901760
  %v707 = vsub.f32 %v77, %v706
  %708 = vmatpush1.msra.mxu0 %v707
  %709 = vmatprep.subr.mxu0 0.0
  %v710 = vand.u32 %v78, 4294901760
  %v711 = vsub.f32 %v78, %v710
  %712 = vmatpush1.msra.mxu0 %v711
  %v713 = vand.u32 %v16, 4294901760
  %v714 = vsub.f32 %v16, %v713
  %715 = vmatprep.mubr.f32.mxu0 %v714
  %v716 = vand.u32 %v15, 4294901760
  %v717 = vsub.f32 %v15, %v716
  %718 = vmatmul.mubr.f32.gmra.mrb[0].mxu0 %v717
  %v719 = vpop.f32.mrb[0].mxu0
  %v720 = vadd.f32 %v561, %v719
  %v721 = vpop.f32.mrb[0].mxu0
  %v722 = vand.u32 %v24, 4294901760
  %v723 = vsub.f32 %v24, %v722
  %724 = vmatprep.mubr.f32.mxu0 %v723
  %v725 = vand.u32 %v23, 4294901760
  %v726 = vsub.f32 %v23, %v725
  %727 = vmatmul.mubr.f32.gmra.mrb[0].mxu0 %v726
  %v728 = vpop.f32.mrb[0].mxu0
  %v729 = vadd.f32 %v568, %v728
  %v730 = vpop.f32.mrb[0].mxu0
  %v731 = vand.u32 %v32, 4294901760
  %v732 = vsub.f32 %v32, %v731
  %733 = vmatprep.mubr.f32.mxu0 %v732
  %v734 = vand.u32 %v31, 4294901760
  %v735 = vsub.f32 %v31, %v734
  %736 = vmatmul.mubr.f32.gmra.mrb[0].mxu0 %v735
  %v737 = vpop.f32.mrb[0].mxu0
  %v738 = vadd.f32 %v575, %v737
  %v739 = vpop.f32.mrb[0].mxu0
  %v740 = vand.u32 %v40, 4294901760
  %v741 = vsub.f32 %v40, %v740
  %742 = vmatprep.mubr.f32.mxu0 %v741
  %v743 = vand.u32 %v39, 4294901760
  %v744 = vsub.f32 %v39, %v743
  %745 = vmatmul.mubr.f32.gmra.mrb[0].mxu0 %v744
  %v746 = vpop.f32.mrb[0].mxu0
  %v747 = vadd.f32 %v582, %v746
  %v748 = vpop.f32.mrb[0].mxu0
  %749 = vdwg.mxu0
  %750 = vmatprep.subr.mxu0 0.0
  %v751 = vand.u32 %v47, 4294901760
  %752 = vmatpush1.msra.mxu0 %v751
  %753 = vmatprep.subr.mxu0 0.0
  %v754 = vand.u32 %v48, 4294901760
  %755 = vmatpush1.msra.mxu0 %v754
  %756 = vmatprep.subr.mxu0 0.0
  %v757 = vand.u32 %v49, 4294901760
  %758 = vmatpush1.msra.mxu0 %v757
  %759 = vmatprep.subr.mxu0 0.0
  %v760 = vand.u32 %v50, 4294901760
  %761 = vmatpush1.msra.mxu0 %v760
  %762 = vmatprep.subr.mxu0 0.0
  %v763 = vand.u32 %v51, 4294901760
  %764 = vmatpush1.msra.mxu0 %v763
  %765 = vmatprep.subr.mxu0 0.0
  %v766 = vand.u32 %v52, 4294901760
  %767 = vmatpush1.msra.mxu0 %v766
  %768 = vmatprep.subr.mxu0 0.0
  %v769 = vand.u32 %v53, 4294901760
  %770 = vmatpush1.msra.mxu0 %v769
  %771 = vmatprep.subr.mxu0 0.0
  %v772 = vand.u32 %v54, 4294901760
  %773 = vmatpush1.msra.mxu0 %v772
  %774 = vmatprep.subr.mxu0 0.0
  %v775 = vand.u32 %v55, 4294901760
  %776 = vmatpush1.msra.mxu0 %v775
  %777 = vmatprep.subr.mxu0 0.0
  %v778 = vand.u32 %v56, 4294901760
  %779 = vmatpush1.msra.mxu0 %v778
  %780 = vmatprep.subr.mxu0 0.0
  %v781 = vand.u32 %v57, 4294901760
  %782 = vmatpush1.msra.mxu0 %v781
  %783 = vmatprep.subr.mxu0 0.0
  %v784 = vand.u32 %v58, 4294901760
  %785 = vmatpush1.msra.mxu0 %v784
  %786 = vmatprep.subr.mxu0 0.0
  %v787 = vand.u32 %v59, 4294901760
  %788 = vmatpush1.msra.mxu0 %v787
  %789 = vmatprep.subr.mxu0 0.0
  %v790 = vand.u32 %v60, 4294901760
  %791 = vmatpush1.msra.mxu0 %v790
  %792 = vmatprep.subr.mxu0 0.0
  %v793 = vand.u32 %v61, 4294901760
  %794 = vmatpush1.msra.mxu0 %v793
  %795 = vmatprep.subr.mxu0 0.0
  %v796 = vand.u32 %v62, 4294901760
  %797 = vmatpush1.msra.mxu0 %v796
  %798 = vmatprep.subr.mxu0 0.0
  %v799 = vand.u32 %v63, 4294901760
  %800 = vmatpush1.msra.mxu0 %v799
  %801 = vmatprep.subr.mxu0 0.0
  %v802 = vand.u32 %v64, 4294901760
  %803 = vmatpush1.msra.mxu0 %v802
  %804 = vmatprep.subr.mxu0 0.0
  %v805 = vand.u32 %v65, 4294901760
  %806 = vmatpush1.msra.mxu0 %v805
  %807 = vmatprep.subr.mxu0 0.0
  %v808 = vand.u32 %v66, 4294901760
  %809 = vmatpush1.msra.mxu0 %v808
  %810 = vmatprep.subr.mxu0 0.0
  %v811 = vand.u32 %v67, 4294901760
  %812 = vmatpush1.msra.mxu0 %v811
  %813 = vmatprep.subr.mxu0 0.0
  %v814 = vand.u32 %v68, 4294901760
  %815 = vmatpush1.msra.mxu0 %v814
  %816 = vmatprep.subr.mxu0 0.0
  %v817 = vand.u32 %v69, 4294901760
  %818 = vmatpush1.msra.mxu0 %v817
  %819 = vmatprep.subr.mxu0 0.0
  %v820 = vand.u32 %v70, 4294901760
  %821 = vmatpush1.msra.mxu0 %v820
  %822 = vmatprep.subr.mxu0 0.0
  %v823 = vand.u32 %v71, 4294901760
  %824 = vmatpush1.msra.mxu0 %v823
  %825 = vmatprep.subr.mxu0 0.0
  %v826 = vand.u32 %v72, 4294901760
  %827 = vmatpush1.msra.mxu0 %v826
  %828 = vmatprep.subr.mxu0 0.0
  %v829 = vand.u32 %v73, 4294901760
  %830 = vmatpush1.msra.mxu0 %v829
  %831 = vmatprep.subr.mxu0 0.0
  %v832 = vand.u32 %v74, 4294901760
  %833 = vmatpush1.msra.mxu0 %v832
  %834 = vmatprep.subr.mxu0 0.0
  %v835 = vand.u32 %v75, 4294901760
  %836 = vmatpush1.msra.mxu0 %v835
  %837 = vmatprep.subr.mxu0 0.0
  %v838 = vand.u32 %v76, 4294901760
  %839 = vmatpush1.msra.mxu0 %v838
  %840 = vmatprep.subr.mxu0 0.0
  %v841 = vand.u32 %v77, 4294901760
  %842 = vmatpush1.msra.mxu0 %v841
  %843 = vmatprep.subr.mxu0 0.0
  %v844 = vand.u32 %v78, 4294901760
  %845 = vmatpush1.msra.mxu0 %v844
  %v846 = vand.u32 %v16, 4294901760
  %v847 = vsub.f32 %v16, %v846
  %v848 = vand.u32 %v847, 4294901760
  %849 = vmatprep.mubr.f32.mxu0 %v848
  %v850 = vand.u32 %v15, 4294901760
  %v851 = vsub.f32 %v15, %v850
  %v852 = vand.u32 %v851, 4294901760
  %853 = vmatmul.mubr.f32.gmra.mrb[0].mxu0 %v852
  %v854 = vpop.f32.mrb[0].mxu0
  %v855 = vadd.f32 %v720, %v854
  %v856 = vpop.f32.mrb[0].mxu0
  %v857 = vand.u32 %v24, 4294901760
  %v858 = vsub.f32 %v24, %v857
  %v859 = vand.u32 %v858, 4294901760
  %860 = vmatprep.mubr.f32.mxu0 %v859
  %v861 = vand.u32 %v23, 4294901760
  %v862 = vsub.f32 %v23, %v861
  %v863 = vand.u32 %v862, 4294901760
  %864 = vmatmul.mubr.f32.gmra.mrb[0].mxu0 %v863
  %v865 = vpop.f32.mrb[0].mxu0
  %v866 = vadd.f32 %v729, %v865
  %v867 = vpop.f32.mrb[0].mxu0
  %v868 = vand.u32 %v32, 4294901760
  %v869 = vsub.f32 %v32, %v868
  %v870 = vand.u32 %v869, 4294901760
  %871 = vmatprep.mubr.f32.mxu0 %v870
  %v872 = vand.u32 %v31, 4294901760
  %v873 = vsub.f32 %v31, %v872
  %v874 = vand.u32 %v873, 4294901760
  %875 = vmatmul.mubr.f32.gmra.mrb[0].mxu0 %v874
  %v876 = vpop.f32.mrb[0].mxu0
  %v877 = vadd.f32 %v738, %v876
  %v878 = vpop.f32.mrb[0].mxu0
  %v879 = vand.u32 %v40, 4294901760
  %v880 = vsub.f32 %v40, %v879
  %v881 = vand.u32 %v880, 4294901760
  %882 = vmatprep.mubr.f32.mxu0 %v881
  %v883 = vand.u32 %v39, 4294901760
  %v884 = vsub.f32 %v39, %v883
  %v885 = vand.u32 %v884, 4294901760
  %886 = vmatmul.mubr.f32.gmra.mrb[0].mxu0 %v885
  %v887 = vpop.f32.mrb[0].mxu0
  %v888 = vadd.f32 %v747, %v887
  %v889 = vpop.f32.mrb[0].mxu0
  %890 = vdwg.mxu0
  %891 = vmatprep.subr.mxu0 0.0
  %v892 = vand.u32 %v47, 4294901760
  %v893 = vsub.f32 %v47, %v892
  %v894 = vand.u32 %v893, 4294901760
  %895 = vmatpush1.msra.mxu0 %v894
  %896 = vmatprep.subr.mxu0 0.0
  %v897 = vand.u32 %v48, 4294901760
  %v898 = vsub.f32 %v48, %v897
  %v899 = vand.u32 %v898, 4294901760
  %900 = vmatpush1.msra.mxu0 %v899
  %901 = vmatprep.subr.mxu0 0.0
  %v902 = vand.u32 %v49, 4294901760
  %v903 = vsub.f32 %v49, %v902
  %v904 = vand.u32 %v903, 4294901760
  %905 = vmatpush1.msra.mxu0 %v904
  %906 = vmatprep.subr.mxu0 0.0
  %v907 = vand.u32 %v50, 4294901760
  %v908 = vsub.f32 %v50, %v907
  %v909 = vand.u32 %v908, 4294901760
  %910 = vmatpush1.msra.mxu0 %v909
  %911 = vmatprep.subr.mxu0 0.0
  %v912 = vand.u32 %v51, 4294901760
  %v913 = vsub.f32 %v51, %v912
  %v914 = vand.u32 %v913, 4294901760
  %915 = vmatpush1.msra.mxu0 %v914
  %916 = vmatprep.subr.mxu0 0.0
  %v917 = vand.u32 %v52, 4294901760
  %v918 = vsub.f32 %v52, %v917
  %v919 = vand.u32 %v918, 4294901760
  %920 = vmatpush1.msra.mxu0 %v919
  %921 = vmatprep.subr.mxu0 0.0
  %v922 = vand.u32 %v53, 4294901760
  %v923 = vsub.f32 %v53, %v922
  %v924 = vand.u32 %v923, 4294901760
  %925 = vmatpush1.msra.mxu0 %v924
  %926 = vmatprep.subr.mxu0 0.0
  %v927 = vand.u32 %v54, 4294901760
  %v928 = vsub.f32 %v54, %v927
  %v929 = vand.u32 %v928, 4294901760
  %930 = vmatpush1.msra.mxu0 %v929
  %931 = vmatprep.subr.mxu0 0.0
  %v932 = vand.u32 %v55, 4294901760
  %v933 = vsub.f32 %v55, %v932
  %v934 = vand.u32 %v933, 4294901760
  %935 = vmatpush1.msra.mxu0 %v934
  %936 = vmatprep.subr.mxu0 0.0
  %v937 = vand.u32 %v56, 4294901760
  %v938 = vsub.f32 %v56, %v937
  %v939 = vand.u32 %v938, 4294901760
  %940 = vmatpush1.msra.mxu0 %v939
  %941 = vmatprep.subr.mxu0 0.0
  %v942 = vand.u32 %v57, 4294901760
  %v943 = vsub.f32 %v57, %v942
  %v944 = vand.u32 %v943, 4294901760
  %945 = vmatpush1.msra.mxu0 %v944
  %946 = vmatprep.subr.mxu0 0.0
  %v947 = vand.u32 %v58, 4294901760
  %v948 = vsub.f32 %v58, %v947
  %v949 = vand.u32 %v948, 4294901760
  %950 = vmatpush1.msra.mxu0 %v949
  %951 = vmatprep.subr.mxu0 0.0
  %v952 = vand.u32 %v59, 4294901760
  %v953 = vsub.f32 %v59, %v952
  %v954 = vand.u32 %v953, 4294901760
  %955 = vmatpush1.msra.mxu0 %v954
  %956 = vmatprep.subr.mxu0 0.0
  %v957 = vand.u32 %v60, 4294901760
  %v958 = vsub.f32 %v60, %v957
  %v959 = vand.u32 %v958, 4294901760
  %960 = vmatpush1.msra.mxu0 %v959
  %961 = vmatprep.subr.mxu0 0.0
  %v962 = vand.u32 %v61, 4294901760
  %v963 = vsub.f32 %v61, %v962
  %v964 = vand.u32 %v963, 4294901760
  %965 = vmatpush1.msra.mxu0 %v964
  %966 = vmatprep.subr.mxu0 0.0
  %v967 = vand.u32 %v62, 4294901760
  %v968 = vsub.f32 %v62, %v967
  %v969 = vand.u32 %v968, 4294901760
  %970 = vmatpush1.msra.mxu0 %v969
  %971 = vmatprep.subr.mxu0 0.0
  %v972 = vand.u32 %v63, 4294901760
  %v973 = vsub.f32 %v63, %v972
  %v974 = vand.u32 %v973, 4294901760
  %975 = vmatpush1.msra.mxu0 %v974
  %976 = vmatprep.subr.mxu0 0.0
  %v977 = vand.u32 %v64, 4294901760
  %v978 = vsub.f32 %v64, %v977
  %v979 = vand.u32 %v978, 4294901760
  %980 = vmatpush1.msra.mxu0 %v979
  %981 = vmatprep.subr.mxu0 0.0
  %v982 = vand.u32 %v65, 4294901760
  %v983 = vsub.f32 %v65, %v982
  %v984 = vand.u32 %v983, 4294901760
  %985 = vmatpush1.msra.mxu0 %v984
  %986 = vmatprep.subr.mxu0 0.0
  %v987 = vand.u32 %v66, 4294901760
  %v988 = vsub.f32 %v66, %v987
  %v989 = vand.u32 %v988, 4294901760
  %990 = vmatpush1.msra.mxu0 %v989
  %991 = vmatprep.subr.mxu0 0.0
  %v992 = vand.u32 %v67, 4294901760
  %v993 = vsub.f32 %v67, %v992
  %v994 = vand.u32 %v993, 4294901760
  %995 = vmatpush1.msra.mxu0 %v994
  %996 = vmatprep.subr.mxu0 0.0
  %v997 = vand.u32 %v68, 4294901760
  %v998 = vsub.f32 %v68, %v997
  %v999 = vand.u32 %v998, 4294901760
  %1000 = vmatpush1.msra.mxu0 %v999
  %1001 = vmatprep.subr.mxu0 0.0
  %v1002 = vand.u32 %v69, 4294901760
  %v1003 = vsub.f32 %v69, %v1002
  %v1004 = vand.u32 %v1003, 4294901760
  %1005 = vmatpush1.msra.mxu0 %v1004
  %1006 = vmatprep.subr.mxu0 0.0
  %v1007 = vand.u32 %v70, 4294901760
  %v1008 = vsub.f32 %v70, %v1007
  %v1009 = vand.u32 %v1008, 4294901760
  %1010 = vmatpush1.msra.mxu0 %v1009
  %1011 = vmatprep.subr.mxu0 0.0
  %v1012 = vand.u32 %v71, 4294901760
  %v1013 = vsub.f32 %v71, %v1012
  %v1014 = vand.u32 %v1013, 4294901760
  %1015 = vmatpush1.msra.mxu0 %v1014
  %1016 = vmatprep.subr.mxu0 0.0
  %v1017 = vand.u32 %v72, 4294901760
  %v1018 = vsub.f32 %v72, %v1017
  %v1019 = vand.u32 %v1018, 4294901760
  %1020 = vmatpush1.msra.mxu0 %v1019
  %1021 = vmatprep.subr.mxu0 0.0
  %v1022 = vand.u32 %v73, 4294901760
  %v1023 = vsub.f32 %v73, %v1022
  %v1024 = vand.u32 %v1023, 4294901760
  %1025 = vmatpush1.msra.mxu0 %v1024
  %1026 = vmatprep.subr.mxu0 0.0
  %v1027 = vand.u32 %v74, 4294901760
  %v1028 = vsub.f32 %v74, %v1027
  %v1029 = vand.u32 %v1028, 4294901760
  %1030 = vmatpush1.msra.mxu0 %v1029
  %1031 = vmatprep.subr.mxu0 0.0
  %v1032 = vand.u32 %v75, 4294901760
  %v1033 = vsub.f32 %v75, %v1032
  %v1034 = vand.u32 %v1033, 4294901760
  %1035 = vmatpush1.msra.mxu0 %v1034
  %1036 = vmatprep.subr.mxu0 0.0
  %v1037 = vand.u32 %v76, 4294901760
  %v1038 = vsub.f32 %v76, %v1037
  %v1039 = vand.u32 %v1038, 4294901760
  %1040 = vmatpush1.msra.mxu0 %v1039
  %1041 = vmatprep.subr.mxu0 0.0
  %v1042 = vand.u32 %v77, 4294901760
  %v1043 = vsub.f32 %v77, %v1042
  %v1044 = vand.u32 %v1043, 4294901760
  %1045 = vmatpush1.msra.mxu0 %v1044
  %1046 = vmatprep.subr.mxu0 0.0
  %v1047 = vand.u32 %v78, 4294901760
  %v1048 = vsub.f32 %v78, %v1047
  %v1049 = vand.u32 %v1048, 4294901760
  %1050 = vmatpush1.msra.mxu0 %v1049
  %v1051 = vand.u32 %v16, 4294901760
  %1052 = vmatprep.mubr.f32.mxu0 %v1051
  %v1053 = vand.u32 %v15, 4294901760
  %1054 = vmatmul.mubr.f32.gmra.mrb[0].mxu0 %v1053
  %v1055 = vpop.f32.mrb[0].mxu0
  %v1056 = vadd.f32 %v855, %v1055
  %v1057 = vpop.f32.mrb[0].mxu0
  %v1058 = vand.u32 %v24, 4294901760
  %1059 = vmatprep.mubr.f32.mxu0 %v1058
  %v1060 = vand.u32 %v23, 4294901760
  %1061 = vmatmul.mubr.f32.gmra.mrb[0].mxu0 %v1060
  %v1062 = vpop.f32.mrb[0].mxu0
  %v1063 = vadd.f32 %v866, %v1062
  %v1064 = vpop.f32.mrb[0].mxu0
  %v1065 = vand.u32 %v32, 4294901760
  %1066 = vmatprep.mubr.f32.mxu0 %v1065
  %v1067 = vand.u32 %v31, 4294901760
  %1068 = vmatmul.mubr.f32.gmra.mrb[0].mxu0 %v1067
  %v1069 = vpop.f32.mrb[0].mxu0
  %v1070 = vadd.f32 %v877, %v1069
  %v1071 = vpop.f32.mrb[0].mxu0
  %v1072 = vand.u32 %v40, 4294901760
  %1073 = vmatprep.mubr.f32.mxu0 %v1072
  %v1074 = vand.u32 %v39, 4294901760
  %1075 = vmatmul.mubr.f32.gmra.mrb[0].mxu0 %v1074
  %v1076 = vpop.f32.mrb[0].mxu0
  %v1077 = vadd.f32 %v888, %v1076
  %v1078 = vpop.f32.mrb[0].mxu0
  %1079 = vdwg.mxu0
  %1080 = vmatprep.subr.mxu0 0.0
  %v1081 = vand.u32 %v47, 4294901760
  %1082 = vmatpush1.msra.mxu0 %v1081
  %1083 = vmatprep.subr.mxu0 0.0
  %v1084 = vand.u32 %v48, 4294901760
  %1085 = vmatpush1.msra.mxu0 %v1084
  %1086 = vmatprep.subr.mxu0 0.0
  %v1087 = vand.u32 %v49, 4294901760
  %1088 = vmatpush1.msra.mxu0 %v1087
  %1089 = vmatprep.subr.mxu0 0.0
  %v1090 = vand.u32 %v50, 4294901760
  %1091 = vmatpush1.msra.mxu0 %v1090
  %1092 = vmatprep.subr.mxu0 0.0
  %v1093 = vand.u32 %v51, 4294901760
  %1094 = vmatpush1.msra.mxu0 %v1093
  %1095 = vmatprep.subr.mxu0 0.0
  %v1096 = vand.u32 %v52, 4294901760
  %1097 = vmatpush1.msra.mxu0 %v1096
  %1098 = vmatprep.subr.mxu0 0.0
  %v1099 = vand.u32 %v53, 4294901760
  %1100 = vmatpush1.msra.mxu0 %v1099
  %1101 = vmatprep.subr.mxu0 0.0
  %v1102 = vand.u32 %v54, 4294901760
  %1103 = vmatpush1.msra.mxu0 %v1102
  %1104 = vmatprep.subr.mxu0 0.0
  %v1105 = vand.u32 %v55, 4294901760
  %1106 = vmatpush1.msra.mxu0 %v1105
  %1107 = vmatprep.subr.mxu0 0.0
  %v1108 = vand.u32 %v56, 4294901760
  %1109 = vmatpush1.msra.mxu0 %v1108
  %1110 = vmatprep.subr.mxu0 0.0
  %v1111 = vand.u32 %v57, 4294901760
  %1112 = vmatpush1.msra.mxu0 %v1111
  %1113 = vmatprep.subr.mxu0 0.0
  %v1114 = vand.u32 %v58, 4294901760
  %1115 = vmatpush1.msra.mxu0 %v1114
  %1116 = vmatprep.subr.mxu0 0.0
  %v1117 = vand.u32 %v59, 4294901760
  %1118 = vmatpush1.msra.mxu0 %v1117
  %1119 = vmatprep.subr.mxu0 0.0
  %v1120 = vand.u32 %v60, 4294901760
  %1121 = vmatpush1.msra.mxu0 %v1120
  %1122 = vmatprep.subr.mxu0 0.0
  %v1123 = vand.u32 %v61, 4294901760
  %1124 = vmatpush1.msra.mxu0 %v1123
  %1125 = vmatprep.subr.mxu0 0.0
  %v1126 = vand.u32 %v62, 4294901760
  %1127 = vmatpush1.msra.mxu0 %v1126
  %1128 = vmatprep.subr.mxu0 0.0
  %v1129 = vand.u32 %v63, 4294901760
  %1130 = vmatpush1.msra.mxu0 %v1129
  %1131 = vmatprep.subr.mxu0 0.0
  %v1132 = vand.u32 %v64, 4294901760
  %1133 = vmatpush1.msra.mxu0 %v1132
  %1134 = vmatprep.subr.mxu0 0.0
  %v1135 = vand.u32 %v65, 4294901760
  %1136 = vmatpush1.msra.mxu0 %v1135
  %1137 = vmatprep.subr.mxu0 0.0
  %v1138 = vand.u32 %v66, 4294901760
  %1139 = vmatpush1.msra.mxu0 %v1138
  %1140 = vmatprep.subr.mxu0 0.0
  %v1141 = vand.u32 %v67, 4294901760
  %1142 = vmatpush1.msra.mxu0 %v1141
  %1143 = vmatprep.subr.mxu0 0.0
  %v1144 = vand.u32 %v68, 4294901760
  %1145 = vmatpush1.msra.mxu0 %v1144
  %1146 = vmatprep.subr.mxu0 0.0
  %v1147 = vand.u32 %v69, 4294901760
  %1148 = vmatpush1.msra.mxu0 %v1147
  %1149 = vmatprep.subr.mxu0 0.0
  %v1150 = vand.u32 %v70, 4294901760
  %1151 = vmatpush1.msra.mxu0 %v1150
  %1152 = vmatprep.subr.mxu0 0.0
  %v1153 = vand.u32 %v71, 4294901760
  %1154 = vmatpush1.msra.mxu0 %v1153
  %1155 = vmatprep.subr.mxu0 0.0
  %v1156 = vand.u32 %v72, 4294901760
  %1157 = vmatpush1.msra.mxu0 %v1156
  %1158 = vmatprep.subr.mxu0 0.0
  %v1159 = vand.u32 %v73, 4294901760
  %1160 = vmatpush1.msra.mxu0 %v1159
  %1161 = vmatprep.subr.mxu0 0.0
  %v1162 = vand.u32 %v74, 4294901760
  %1163 = vmatpush1.msra.mxu0 %v1162
  %1164 = vmatprep.subr.mxu0 0.0
  %v1165 = vand.u32 %v75, 4294901760
  %1166 = vmatpush1.msra.mxu0 %v1165
  %1167 = vmatprep.subr.mxu0 0.0
  %v1168 = vand.u32 %v76, 4294901760
  %1169 = vmatpush1.msra.mxu0 %v1168
  %1170 = vmatprep.subr.mxu0 0.0
  %v1171 = vand.u32 %v77, 4294901760
  %1172 = vmatpush1.msra.mxu0 %v1171
  %1173 = vmatprep.subr.mxu0 0.0
  %v1174 = vand.u32 %v78, 4294901760
  %1175 = vmatpush1.msra.mxu0 %v1174
  %v1176 = vand.u32 %v16, 4294901760
  %1177 = vmatprep.mubr.f32.mxu0 %v1176
  %v1178 = vand.u32 %v15, 4294901760
  %1179 = vmatmul.mubr.f32.gmra.mrb[0].mxu0 %v1178
  %v1180 = vpop.f32.mrb[0].mxu0
  %v1181 = vadd.f32 %v1056, %v1180
  %v1182 = vpop.f32.mrb[0].mxu0
  %v1183 = vand.u32 %v24, 4294901760
  %1184 = vmatprep.mubr.f32.mxu0 %v1183
  %v1185 = vand.u32 %v23, 4294901760
  %1186 = vmatmul.mubr.f32.gmra.mrb[0].mxu0 %v1185
  %v1187 = vpop.f32.mrb[0].mxu0
  %v1188 = vadd.f32 %v1063, %v1187
  %v1189 = vpop.f32.mrb[0].mxu0
  %v1190 = vand.u32 %v32, 4294901760
  %1191 = vmatprep.mubr.f32.mxu0 %v1190
  %v1192 = vand.u32 %v31, 4294901760
  %1193 = vmatmul.mubr.f32.gmra.mrb[0].mxu0 %v1192
  %v1194 = vpop.f32.mrb[0].mxu0
  %v1195 = vadd.f32 %v1070, %v1194
  %v1196 = vpop.f32.mrb[0].mxu0
  %v1197 = vand.u32 %v40, 4294901760
  %1198 = vmatprep.mubr.f32.mxu0 %v1197
  %v1199 = vand.u32 %v39, 4294901760
  %1200 = vmatmul.mubr.f32.gmra.mrb[0].mxu0 %v1199
  %v1201 = vpop.f32.mrb[0].mxu0
  %v1202 = vadd.f32 %v1077, %v1201
  %v1203 = vpop.f32.mrb[0].mxu0
  %1204 = vdwg.mxu0
  %1205 = vmatprep.subr.mxu0 0.0
  %v1206 = vand.u32 %v79, 4294901760
  %1207 = vmatpush1.msra.mxu0 %v1206
  %1208 = vmatprep.subr.mxu0 0.0
  %v1209 = vand.u32 %v80, 4294901760
  %1210 = vmatpush1.msra.mxu0 %v1209
  %1211 = vmatprep.subr.mxu0 0.0
  %v1212 = vand.u32 %v81, 4294901760
  %1213 = vmatpush1.msra.mxu0 %v1212
  %1214 = vmatprep.subr.mxu0 0.0
  %v1215 = vand.u32 %v82, 4294901760
  %1216 = vmatpush1.msra.mxu0 %v1215
  %1217 = vmatprep.subr.mxu0 0.0
  %v1218 = vand.u32 %v83, 4294901760
  %1219 = vmatpush1.msra.mxu0 %v1218
  %1220 = vmatprep.subr.mxu0 0.0
  %v1221 = vand.u32 %v84, 4294901760
  %1222 = vmatpush1.msra.mxu0 %v1221
  %1223 = vmatprep.subr.mxu0 0.0
  %v1224 = vand.u32 %v85, 4294901760
  %1225 = vmatpush1.msra.mxu0 %v1224
  %1226 = vmatprep.subr.mxu0 0.0
  %v1227 = vand.u32 %v86, 4294901760
  %1228 = vmatpush1.msra.mxu0 %v1227
  %1229 = vmatprep.subr.mxu0 0.0
  %v1230 = vand.u32 %v87, 4294901760
  %1231 = vmatpush1.msra.mxu0 %v1230
  %1232 = vmatprep.subr.mxu0 0.0
  %v1233 = vand.u32 %v88, 4294901760
  %1234 = vmatpush1.msra.mxu0 %v1233
  %1235 = vmatprep.subr.mxu0 0.0
  %v1236 = vand.u32 %v89, 4294901760
  %1237 = vmatpush1.msra.mxu0 %v1236
  %1238 = vmatprep.subr.mxu0 0.0
  %v1239 = vand.u32 %v90, 4294901760
  %1240 = vmatpush1.msra.mxu0 %v1239
  %1241 = vmatprep.subr.mxu0 0.0
  %v1242 = vand.u32 %v91, 4294901760
  %1243 = vmatpush1.msra.mxu0 %v1242
  %1244 = vmatprep.subr.mxu0 0.0
  %v1245 = vand.u32 %v92, 4294901760
  %1246 = vmatpush1.msra.mxu0 %v1245
  %1247 = vmatprep.subr.mxu0 0.0
  %v1248 = vand.u32 %v93, 4294901760
  %1249 = vmatpush1.msra.mxu0 %v1248
  %1250 = vmatprep.subr.mxu0 0.0
  %v1251 = vand.u32 %v94, 4294901760
  %1252 = vmatpush1.msra.mxu0 %v1251
  %1253 = vmatprep.subr.mxu0 0.0
  %v1254 = vand.u32 %v95, 4294901760
  %1255 = vmatpush1.msra.mxu0 %v1254
  %1256 = vmatprep.subr.mxu0 0.0
  %v1257 = vand.u32 %v96, 4294901760
  %1258 = vmatpush1.msra.mxu0 %v1257
  %1259 = vmatprep.subr.mxu0 0.0
  %v1260 = vand.u32 %v97, 4294901760
  %1261 = vmatpush1.msra.mxu0 %v1260
  %1262 = vmatprep.subr.mxu0 0.0
  %v1263 = vand.u32 %v98, 4294901760
  %1264 = vmatpush1.msra.mxu0 %v1263
  %1265 = vmatprep.subr.mxu0 0.0
  %v1266 = vand.u32 %v99, 4294901760
  %1267 = vmatpush1.msra.mxu0 %v1266
  %1268 = vmatprep.subr.mxu0 0.0
  %v1269 = vand.u32 %v100, 4294901760
  %1270 = vmatpush1.msra.mxu0 %v1269
  %1271 = vmatprep.subr.mxu0 0.0
  %v1272 = vand.u32 %v101, 4294901760
  %1273 = vmatpush1.msra.mxu0 %v1272
  %1274 = vmatprep.subr.mxu0 0.0
  %v1275 = vand.u32 %v102, 4294901760
  %1276 = vmatpush1.msra.mxu0 %v1275
  %1277 = vmatprep.subr.mxu0 0.0
  %v1278 = vand.u32 %v103, 4294901760
  %1279 = vmatpush1.msra.mxu0 %v1278
  %1280 = vmatprep.subr.mxu0 0.0
  %v1281 = vand.u32 %v104, 4294901760
  %1282 = vmatpush1.msra.mxu0 %v1281
  %1283 = vmatprep.subr.mxu0 0.0
  %v1284 = vand.u32 %v105, 4294901760
  %1285 = vmatpush1.msra.mxu0 %v1284
  %1286 = vmatprep.subr.mxu0 0.0
  %v1287 = vand.u32 %v106, 4294901760
  %1288 = vmatpush1.msra.mxu0 %v1287
  %1289 = vmatprep.subr.mxu0 0.0
  %v1290 = vand.u32 %v107, 4294901760
  %1291 = vmatpush1.msra.mxu0 %v1290
  %1292 = vmatprep.subr.mxu0 0.0
  %v1293 = vand.u32 %v108, 4294901760
  %1294 = vmatpush1.msra.mxu0 %v1293
  %1295 = vmatprep.subr.mxu0 0.0
  %v1296 = vand.u32 %v109, 4294901760
  %1297 = vmatpush1.msra.mxu0 %v1296
  %1298 = vmatprep.subr.mxu0 0.0
  %v1299 = vand.u32 %v110, 4294901760
  %1300 = vmatpush1.msra.mxu0 %v1299
  %v1301 = vand.u32 %v18, 4294901760
  %v1302 = vsub.f32 %v18, %v1301
  %v1303 = vand.u32 %v1302, 4294901760
  %v1304 = vsub.f32 %v1302, %v1303
  %v1305 = vand.u32 %v1304, 4294901760
  %1306 = vmatprep.mubr.f32.mxu0 %v1305
  %v1307 = vand.u32 %v17, 4294901760
  %v1308 = vsub.f32 %v17, %v1307
  %v1309 = vand.u32 %v1308, 4294901760
  %v1310 = vsub.f32 %v1308, %v1309
  %v1311 = vand.u32 %v1310, 4294901760
  %1312 = vmatmul.mubr.f32.gmra.mrb[0].mxu0 %v1311
  %v1313 = vpop.f32.mrb[0].mxu0
  %v1314 = vadd.f32 %v1181, %v1313
  %v1315 = vpop.f32.mrb[0].mxu0
  %v1316 = vand.u32 %v26, 4294901760
  %v1317 = vsub.f32 %v26, %v1316
  %v1318 = vand.u32 %v1317, 4294901760
  %v1319 = vsub.f32 %v1317, %v1318
  %v1320 = vand.u32 %v1319, 4294901760
  %1321 = vmatprep.mubr.f32.mxu0 %v1320
  %v1322 = vand.u32 %v25, 4294901760
  %v1323 = vsub.f32 %v25, %v1322
  %v1324 = vand.u32 %v1323, 4294901760
  %v1325 = vsub.f32 %v1323, %v1324
  %v1326 = vand.u32 %v1325, 4294901760
  %1327 = vmatmul.mubr.f32.gmra.mrb[0].mxu0 %v1326
  %v1328 = vpop.f32.mrb[0].mxu0
  %v1329 = vadd.f32 %v1188, %v1328
  %v1330 = vpop.f32.mrb[0].mxu0
  %v1331 = vand.u32 %v34, 4294901760
  %v1332 = vsub.f32 %v34, %v1331
  %v1333 = vand.u32 %v1332, 4294901760
  %v1334 = vsub.f32 %v1332, %v1333
  %v1335 = vand.u32 %v1334, 4294901760
  %1336 = vmatprep.mubr.f32.mxu0 %v1335
  %v1337 = vand.u32 %v33, 4294901760
  %v1338 = vsub.f32 %v33, %v1337
  %v1339 = vand.u32 %v1338, 4294901760
  %v1340 = vsub.f32 %v1338, %v1339
  %v1341 = vand.u32 %v1340, 4294901760
  %1342 = vmatmul.mubr.f32.gmra.mrb[0].mxu0 %v1341
  %v1343 = vpop.f32.mrb[0].mxu0
  %v1344 = vadd.f32 %v1195, %v1343
  %v1345 = vpop.f32.mrb[0].mxu0
  %v1346 = vand.u32 %v42, 4294901760
  %v1347 = vsub.f32 %v42, %v1346
  %v1348 = vand.u32 %v1347, 4294901760
  %v1349 = vsub.f32 %v1347, %v1348
  %v1350 = vand.u32 %v1349, 4294901760
  %1351 = vmatprep.mubr.f32.mxu0 %v1350
  %v1352 = vand.u32 %v41, 4294901760
  %v1353 = vsub.f32 %v41, %v1352
  %v1354 = vand.u32 %v1353, 4294901760
  %v1355 = vsub.f32 %v1353, %v1354
  %v1356 = vand.u32 %v1355, 4294901760
  %1357 = vmatmul.mubr.f32.gmra.mrb[0].mxu0 %v1356
  %v1358 = vpop.f32.mrb[0].mxu0
  %v1359 = vadd.f32 %v1202, %v1358
  %v1360 = vpop.f32.mrb[0].mxu0
  %1361 = vdwg.mxu0
  %1362 = vmatprep.subr.mxu0 0.0
  %v1363 = vand.u32 %v79, 4294901760
  %v1364 = vsub.f32 %v79, %v1363
  %v1365 = vand.u32 %v1364, 4294901760
  %v1366 = vsub.f32 %v1364, %v1365
  %v1367 = vand.u32 %v1366, 4294901760
  %1368 = vmatpush1.msra.mxu0 %v1367
  %1369 = vmatprep.subr.mxu0 0.0
  %v1370 = vand.u32 %v80, 4294901760
  %v1371 = vsub.f32 %v80, %v1370
  %v1372 = vand.u32 %v1371, 4294901760
  %v1373 = vsub.f32 %v1371, %v1372
  %v1374 = vand.u32 %v1373, 4294901760
  %1375 = vmatpush1.msra.mxu0 %v1374
  %1376 = vmatprep.subr.mxu0 0.0
  %v1377 = vand.u32 %v81, 4294901760
  %v1378 = vsub.f32 %v81, %v1377
  %v1379 = vand.u32 %v1378, 4294901760
  %v1380 = vsub.f32 %v1378, %v1379
  %v1381 = vand.u32 %v1380, 4294901760
  %1382 = vmatpush1.msra.mxu0 %v1381
  %1383 = vmatprep.subr.mxu0 0.0
  %v1384 = vand.u32 %v82, 4294901760
  %v1385 = vsub.f32 %v82, %v1384
  %v1386 = vand.u32 %v1385, 4294901760
  %v1387 = vsub.f32 %v1385, %v1386
  %v1388 = vand.u32 %v1387, 4294901760
  %1389 = vmatpush1.msra.mxu0 %v1388
  %1390 = vmatprep.subr.mxu0 0.0
  %v1391 = vand.u32 %v83, 4294901760
  %v1392 = vsub.f32 %v83, %v1391
  %v1393 = vand.u32 %v1392, 4294901760
  %v1394 = vsub.f32 %v1392, %v1393
  %v1395 = vand.u32 %v1394, 4294901760
  %1396 = vmatpush1.msra.mxu0 %v1395
  %1397 = vmatprep.subr.mxu0 0.0
  %v1398 = vand.u32 %v84, 4294901760
  %v1399 = vsub.f32 %v84, %v1398
  %v1400 = vand.u32 %v1399, 4294901760
  %v1401 = vsub.f32 %v1399, %v1400
  %v1402 = vand.u32 %v1401, 4294901760
  %1403 = vmatpush1.msra.mxu0 %v1402
  %1404 = vmatprep.subr.mxu0 0.0
  %v1405 = vand.u32 %v85, 4294901760
  %v1406 = vsub.f32 %v85, %v1405
  %v1407 = vand.u32 %v1406, 4294901760
  %v1408 = vsub.f32 %v1406, %v1407
  %v1409 = vand.u32 %v1408, 4294901760
  %1410 = vmatpush1.msra.mxu0 %v1409
  %1411 = vmatprep.subr.mxu0 0.0
  %v1412 = vand.u32 %v86, 4294901760
  %v1413 = vsub.f32 %v86, %v1412
  %v1414 = vand.u32 %v1413, 4294901760
  %v1415 = vsub.f32 %v1413, %v1414
  %v1416 = vand.u32 %v1415, 4294901760
  %1417 = vmatpush1.msra.mxu0 %v1416
  %1418 = vmatprep.subr.mxu0 0.0
  %v1419 = vand.u32 %v87, 4294901760
  %v1420 = vsub.f32 %v87, %v1419
  %v1421 = vand.u32 %v1420, 4294901760
  %v1422 = vsub.f32 %v1420, %v1421
  %v1423 = vand.u32 %v1422, 4294901760
  %1424 = vmatpush1.msra.mxu0 %v1423
  %1425 = vmatprep.subr.mxu0 0.0
  %v1426 = vand.u32 %v88, 4294901760
  %v1427 = vsub.f32 %v88, %v1426
  %v1428 = vand.u32 %v1427, 4294901760
  %v1429 = vsub.f32 %v1427, %v1428
  %v1430 = vand.u32 %v1429, 4294901760
  %1431 = vmatpush1.msra.mxu0 %v1430
  %1432 = vmatprep.subr.mxu0 0.0
  %v1433 = vand.u32 %v89, 4294901760
  %v1434 = vsub.f32 %v89, %v1433
  %v1435 = vand.u32 %v1434, 4294901760
  %v1436 = vsub.f32 %v1434, %v1435
  %v1437 = vand.u32 %v1436, 4294901760
  %1438 = vmatpush1.msra.mxu0 %v1437
  %1439 = vmatprep.subr.mxu0 0.0
  %v1440 = vand.u32 %v90, 4294901760
  %v1441 = vsub.f32 %v90, %v1440
  %v1442 = vand.u32 %v1441, 4294901760
  %v1443 = vsub.f32 %v1441, %v1442
  %v1444 = vand.u32 %v1443, 4294901760
  %1445 = vmatpush1.msra.mxu0 %v1444
  %1446 = vmatprep.subr.mxu0 0.0
  %v1447 = vand.u32 %v91, 4294901760
  %v1448 = vsub.f32 %v91, %v1447
  %v1449 = vand.u32 %v1448, 4294901760
  %v1450 = vsub.f32 %v1448, %v1449
  %v1451 = vand.u32 %v1450, 4294901760
  %1452 = vmatpush1.msra.mxu0 %v1451
  %1453 = vmatprep.subr.mxu0 0.0
  %v1454 = vand.u32 %v92, 4294901760
  %v1455 = vsub.f32 %v92, %v1454
  %v1456 = vand.u32 %v1455, 4294901760
  %v1457 = vsub.f32 %v1455, %v1456
  %v1458 = vand.u32 %v1457, 4294901760
  %1459 = vmatpush1.msra.mxu0 %v1458
  %1460 = vmatprep.subr.mxu0 0.0
  %v1461 = vand.u32 %v93, 4294901760
  %v1462 = vsub.f32 %v93, %v1461
  %v1463 = vand.u32 %v1462, 4294901760
  %v1464 = vsub.f32 %v1462, %v1463
  %v1465 = vand.u32 %v1464, 4294901760
  %1466 = vmatpush1.msra.mxu0 %v1465
  %1467 = vmatprep.subr.mxu0 0.0
  %v1468 = vand.u32 %v94, 4294901760
  %v1469 = vsub.f32 %v94, %v1468
  %v1470 = vand.u32 %v1469, 4294901760
  %v1471 = vsub.f32 %v1469, %v1470
  %v1472 = vand.u32 %v1471, 4294901760
  %1473 = vmatpush1.msra.mxu0 %v1472
  %1474 = vmatprep.subr.mxu0 0.0
  %v1475 = vand.u32 %v95, 4294901760
  %v1476 = vsub.f32 %v95, %v1475
  %v1477 = vand.u32 %v1476, 4294901760
  %v1478 = vsub.f32 %v1476, %v1477
  %v1479 = vand.u32 %v1478, 4294901760
  %1480 = vmatpush1.msra.mxu0 %v1479
  %1481 = vmatprep.subr.mxu0 0.0
  %v1482 = vand.u32 %v96, 4294901760
  %v1483 = vsub.f32 %v96, %v1482
  %v1484 = vand.u32 %v1483, 4294901760
  %v1485 = vsub.f32 %v1483, %v1484
  %v1486 = vand.u32 %v1485, 4294901760
  %1487 = vmatpush1.msra.mxu0 %v1486
  %1488 = vmatprep.subr.mxu0 0.0
  %v1489 = vand.u32 %v97, 4294901760
  %v1490 = vsub.f32 %v97, %v1489
  %v1491 = vand.u32 %v1490, 4294901760
  %v1492 = vsub.f32 %v1490, %v1491
  %v1493 = vand.u32 %v1492, 4294901760
  %1494 = vmatpush1.msra.mxu0 %v1493
  %1495 = vmatprep.subr.mxu0 0.0
  %v1496 = vand.u32 %v98, 4294901760
  %v1497 = vsub.f32 %v98, %v1496
  %v1498 = vand.u32 %v1497, 4294901760
  %v1499 = vsub.f32 %v1497, %v1498
  %v1500 = vand.u32 %v1499, 4294901760
  %1501 = vmatpush1.msra.mxu0 %v1500
  %1502 = vmatprep.subr.mxu0 0.0
  %v1503 = vand.u32 %v99, 4294901760
  %v1504 = vsub.f32 %v99, %v1503
  %v1505 = vand.u32 %v1504, 4294901760
  %v1506 = vsub.f32 %v1504, %v1505
  %v1507 = vand.u32 %v1506, 4294901760
  %1508 = vmatpush1.msra.mxu0 %v1507
  %1509 = vmatprep.subr.mxu0 0.0
  %v1510 = vand.u32 %v100, 4294901760
  %v1511 = vsub.f32 %v100, %v1510
  %v1512 = vand.u32 %v1511, 4294901760
  %v1513 = vsub.f32 %v1511, %v1512
  %v1514 = vand.u32 %v1513, 4294901760
  %1515 = vmatpush1.msra.mxu0 %v1514
  %1516 = vmatprep.subr.mxu0 0.0
  %v1517 = vand.u32 %v101, 4294901760
  %v1518 = vsub.f32 %v101, %v1517
  %v1519 = vand.u32 %v1518, 4294901760
  %v1520 = vsub.f32 %v1518, %v1519
  %v1521 = vand.u32 %v1520, 4294901760
  %1522 = vmatpush1.msra.mxu0 %v1521
  %1523 = vmatprep.subr.mxu0 0.0
  %v1524 = vand.u32 %v102, 4294901760
  %v1525 = vsub.f32 %v102, %v1524
  %v1526 = vand.u32 %v1525, 4294901760
  %v1527 = vsub.f32 %v1525, %v1526
  %v1528 = vand.u32 %v1527, 4294901760
  %1529 = vmatpush1.msra.mxu0 %v1528
  %1530 = vmatprep.subr.mxu0 0.0
  %v1531 = vand.u32 %v103, 4294901760
  %v1532 = vsub.f32 %v103, %v1531
  %v1533 = vand.u32 %v1532, 4294901760
  %v1534 = vsub.f32 %v1532, %v1533
  %v1535 = vand.u32 %v1534, 4294901760
  %1536 = vmatpush1.msra.mxu0 %v1535
  %1537 = vmatprep.subr.mxu0 0.0
  %v1538 = vand.u32 %v104, 4294901760
  %v1539 = vsub.f32 %v104, %v1538
  %v1540 = vand.u32 %v1539, 4294901760
  %v1541 = vsub.f32 %v1539, %v1540
  %v1542 = vand.u32 %v1541, 4294901760
  %1543 = vmatpush1.msra.mxu0 %v1542
  %1544 = vmatprep.subr.mxu0 0.0
  %v1545 = vand.u32 %v105, 4294901760
  %v1546 = vsub.f32 %v105, %v1545
  %v1547 = vand.u32 %v1546, 4294901760
  %v1548 = vsub.f32 %v1546, %v1547
  %v1549 = vand.u32 %v1548, 4294901760
  %1550 = vmatpush1.msra.mxu0 %v1549
  %1551 = vmatprep.subr.mxu0 0.0
  %v1552 = vand.u32 %v106, 4294901760
  %v1553 = vsub.f32 %v106, %v1552
  %v1554 = vand.u32 %v1553, 4294901760
  %v1555 = vsub.f32 %v1553, %v1554
  %v1556 = vand.u32 %v1555, 4294901760
  %1557 = vmatpush1.msra.mxu0 %v1556
  %1558 = vmatprep.subr.mxu0 0.0
  %v1559 = vand.u32 %v107, 4294901760
  %v1560 = vsub.f32 %v107, %v1559
  %v1561 = vand.u32 %v1560, 4294901760
  %v1562 = vsub.f32 %v1560, %v1561
  %v1563 = vand.u32 %v1562, 4294901760
  %1564 = vmatpush1.msra.mxu0 %v1563
  %1565 = vmatprep.subr.mxu0 0.0
  %v1566 = vand.u32 %v108, 4294901760
  %v1567 = vsub.f32 %v108, %v1566
  %v1568 = vand.u32 %v1567, 4294901760
  %v1569 = vsub.f32 %v1567, %v1568
  %v1570 = vand.u32 %v1569, 4294901760
  %1571 = vmatpush1.msra.mxu0 %v1570
  %1572 = vmatprep.subr.mxu0 0.0
  %v1573 = vand.u32 %v109, 4294901760
  %v1574 = vsub.f32 %v109, %v1573
  %v1575 = vand.u32 %v1574, 4294901760
  %v1576 = vsub.f32 %v1574, %v1575
  %v1577 = vand.u32 %v1576, 4294901760
  %1578 = vmatpush1.msra.mxu0 %v1577
  %1579 = vmatprep.subr.mxu0 0.0
  %v1580 = vand.u32 %v110, 4294901760
  %v1581 = vsub.f32 %v110, %v1580
  %v1582 = vand.u32 %v1581, 4294901760
  %v1583 = vsub.f32 %v1581, %v1582
  %v1584 = vand.u32 %v1583, 4294901760
  %1585 = vmatpush1.msra.mxu0 %v1584
  %v1586 = vand.u32 %v18, 4294901760
  %1587 = vmatprep.mubr.f32.mxu0 %v1586
  %v1588 = vand.u32 %v17, 4294901760
  %1589 = vmatmul.mubr.f32.gmra.mrb[0].mxu0 %v1588
  %v1590 = vpop.f32.mrb[0].mxu0
  %v1591 = vadd.f32 %v1314, %v1590
  %v1592 = vpop.f32.mrb[0].mxu0
  %v1593 = vand.u32 %v26, 4294901760
  %1594 = vmatprep.mubr.f32.mxu0 %v1593
  %v1595 = vand.u32 %v25, 4294901760
  %1596 = vmatmul.mubr.f32.gmra.mrb[0].mxu0 %v1595
  %v1597 = vpop.f32.mrb[0].mxu0
  %v1598 = vadd.f32 %v1329, %v1597
  %v1599 = vpop.f32.mrb[0].mxu0
  %v1600 = vand.u32 %v34, 4294901760
  %1601 = vmatprep.mubr.f32.mxu0 %v1600
  %v1602 = vand.u32 %v33, 4294901760
  %1603 = vmatmul.mubr.f32.gmra.mrb[0].mxu0 %v1602
  %v1604 = vpop.f32.mrb[0].mxu0
  %v1605 = vadd.f32 %v1344, %v1604
  %v1606 = vpop.f32.mrb[0].mxu0
  %v1607 = vand.u32 %v42, 4294901760
  %1608 = vmatprep.mubr.f32.mxu0 %v1607
  %v1609 = vand.u32 %v41, 4294901760
  %1610 = vmatmul.mubr.f32.gmra.mrb[0].mxu0 %v1609
  %v1611 = vpop.f32.mrb[0].mxu0
  %v1612 = vadd.f32 %v1359, %v1611
  %v1613 = vpop.f32.mrb[0].mxu0
  %1614 = vdwg.mxu0
  %1615 = vmatprep.subr.mxu0 0.0
  %v1616 = vand.u32 %v79, 4294901760
  %v1617 = vsub.f32 %v79, %v1616
  %1618 = vmatpush1.msra.mxu0 %v1617
  %1619 = vmatprep.subr.mxu0 0.0
  %v1620 = vand.u32 %v80, 4294901760
  %v1621 = vsub.f32 %v80, %v1620
  %1622 = vmatpush1.msra.mxu0 %v1621
  %1623 = vmatprep.subr.mxu0 0.0
  %v1624 = vand.u32 %v81, 4294901760
  %v1625 = vsub.f32 %v81, %v1624
  %1626 = vmatpush1.msra.mxu0 %v1625
  %1627 = vmatprep.subr.mxu0 0.0
  %v1628 = vand.u32 %v82, 4294901760
  %v1629 = vsub.f32 %v82, %v1628
  %1630 = vmatpush1.msra.mxu0 %v1629
  %1631 = vmatprep.subr.mxu0 0.0
  %v1632 = vand.u32 %v83, 4294901760
  %v1633 = vsub.f32 %v83, %v1632
  %1634 = vmatpush1.msra.mxu0 %v1633
  %1635 = vmatprep.subr.mxu0 0.0
  %v1636 = vand.u32 %v84, 4294901760
  %v1637 = vsub.f32 %v84, %v1636
  %1638 = vmatpush1.msra.mxu0 %v1637
  %1639 = vmatprep.subr.mxu0 0.0
  %v1640 = vand.u32 %v85, 4294901760
  %v1641 = vsub.f32 %v85, %v1640
  %1642 = vmatpush1.msra.mxu0 %v1641
  %1643 = vmatprep.subr.mxu0 0.0
  %v1644 = vand.u32 %v86, 4294901760
  %v1645 = vsub.f32 %v86, %v1644
  %1646 = vmatpush1.msra.mxu0 %v1645
  %1647 = vmatprep.subr.mxu0 0.0
  %v1648 = vand.u32 %v87, 4294901760
  %v1649 = vsub.f32 %v87, %v1648
  %1650 = vmatpush1.msra.mxu0 %v1649
  %1651 = vmatprep.subr.mxu0 0.0
  %v1652 = vand.u32 %v88, 4294901760
  %v1653 = vsub.f32 %v88, %v1652
  %1654 = vmatpush1.msra.mxu0 %v1653
  %1655 = vmatprep.subr.mxu0 0.0
  %v1656 = vand.u32 %v89, 4294901760
  %v1657 = vsub.f32 %v89, %v1656
  %1658 = vmatpush1.msra.mxu0 %v1657
  %1659 = vmatprep.subr.mxu0 0.0
  %v1660 = vand.u32 %v90, 4294901760
  %v1661 = vsub.f32 %v90, %v1660
  %1662 = vmatpush1.msra.mxu0 %v1661
  %1663 = vmatprep.subr.mxu0 0.0
  %v1664 = vand.u32 %v91, 4294901760
  %v1665 = vsub.f32 %v91, %v1664
  %1666 = vmatpush1.msra.mxu0 %v1665
  %1667 = vmatprep.subr.mxu0 0.0
  %v1668 = vand.u32 %v92, 4294901760
  %v1669 = vsub.f32 %v92, %v1668
  %1670 = vmatpush1.msra.mxu0 %v1669
  %1671 = vmatprep.subr.mxu0 0.0
  %v1672 = vand.u32 %v93, 4294901760
  %v1673 = vsub.f32 %v93, %v1672
  %1674 = vmatpush1.msra.mxu0 %v1673
  %1675 = vmatprep.subr.mxu0 0.0
  %v1676 = vand.u32 %v94, 4294901760
  %v1677 = vsub.f32 %v94, %v1676
  %1678 = vmatpush1.msra.mxu0 %v1677
  %1679 = vmatprep.subr.mxu0 0.0
  %v1680 = vand.u32 %v95, 4294901760
  %v1681 = vsub.f32 %v95, %v1680
  %1682 = vmatpush1.msra.mxu0 %v1681
  %1683 = vmatprep.subr.mxu0 0.0
  %v1684 = vand.u32 %v96, 4294901760
  %v1685 = vsub.f32 %v96, %v1684
  %1686 = vmatpush1.msra.mxu0 %v1685
  %1687 = vmatprep.subr.mxu0 0.0
  %v1688 = vand.u32 %v97, 4294901760
  %v1689 = vsub.f32 %v97, %v1688
  %1690 = vmatpush1.msra.mxu0 %v1689
  %1691 = vmatprep.subr.mxu0 0.0
  %v1692 = vand.u32 %v98, 4294901760
  %v1693 = vsub.f32 %v98, %v1692
  %1694 = vmatpush1.msra.mxu0 %v1693
  %1695 = vmatprep.subr.mxu0 0.0
  %v1696 = vand.u32 %v99, 4294901760
  %v1697 = vsub.f32 %v99, %v1696
  %1698 = vmatpush1.msra.mxu0 %v1697
  %1699 = vmatprep.subr.mxu0 0.0
  %v1700 = vand.u32 %v100, 4294901760
  %v1701 = vsub.f32 %v100, %v1700
  %1702 = vmatpush1.msra.mxu0 %v1701
  %1703 = vmatprep.subr.mxu0 0.0
  %v1704 = vand.u32 %v101, 4294901760
  %v1705 = vsub.f32 %v101, %v1704
  %1706 = vmatpush1.msra.mxu0 %v1705
  %1707 = vmatprep.subr.mxu0 0.0
  %v1708 = vand.u32 %v102, 4294901760
  %v1709 = vsub.f32 %v102, %v1708
  %1710 = vmatpush1.msra.mxu0 %v1709
  %1711 = vmatprep.subr.mxu0 0.0
  %v1712 = vand.u32 %v103, 4294901760
  %v1713 = vsub.f32 %v103, %v1712
  %1714 = vmatpush1.msra.mxu0 %v1713
  %1715 = vmatprep.subr.mxu0 0.0
  %v1716 = vand.u32 %v104, 4294901760
  %v1717 = vsub.f32 %v104, %v1716
  %1718 = vmatpush1.msra.mxu0 %v1717
  %1719 = vmatprep.subr.mxu0 0.0
  %v1720 = vand.u32 %v105, 4294901760
  %v1721 = vsub.f32 %v105, %v1720
  %1722 = vmatpush1.msra.mxu0 %v1721
  %1723 = vmatprep.subr.mxu0 0.0
  %v1724 = vand.u32 %v106, 4294901760
  %v1725 = vsub.f32 %v106, %v1724
  %1726 = vmatpush1.msra.mxu0 %v1725
  %1727 = vmatprep.subr.mxu0 0.0
  %v1728 = vand.u32 %v107, 4294901760
  %v1729 = vsub.f32 %v107, %v1728
  %1730 = vmatpush1.msra.mxu0 %v1729
  %1731 = vmatprep.subr.mxu0 0.0
  %v1732 = vand.u32 %v108, 4294901760
  %v1733 = vsub.f32 %v108, %v1732
  %1734 = vmatpush1.msra.mxu0 %v1733
  %1735 = vmatprep.subr.mxu0 0.0
  %v1736 = vand.u32 %v109, 4294901760
  %v1737 = vsub.f32 %v109, %v1736
  %1738 = vmatpush1.msra.mxu0 %v1737
  %1739 = vmatprep.subr.mxu0 0.0
  %v1740 = vand.u32 %v110, 4294901760
  %v1741 = vsub.f32 %v110, %v1740
  %1742 = vmatpush1.msra.mxu0 %v1741
  %v1743 = vand.u32 %v18, 4294901760
  %v1744 = vsub.f32 %v18, %v1743
  %1745 = vmatprep.mubr.f32.mxu0 %v1744
  %v1746 = vand.u32 %v17, 4294901760
  %v1747 = vsub.f32 %v17, %v1746
  %1748 = vmatmul.mubr.f32.gmra.mrb[0].mxu0 %v1747
  %v1749 = vpop.f32.mrb[0].mxu0
  %v1750 = vadd.f32 %v1591, %v1749
  %v1751 = vpop.f32.mrb[0].mxu0
  %v1752 = vand.u32 %v26, 4294901760
  %v1753 = vsub.f32 %v26, %v1752
  %1754 = vmatprep.mubr.f32.mxu0 %v1753
  %v1755 = vand.u32 %v25, 4294901760
  %v1756 = vsub.f32 %v25, %v1755
  %1757 = vmatmul.mubr.f32.gmra.mrb[0].mxu0 %v1756
  %v1758 = vpop.f32.mrb[0].mxu0
  %v1759 = vadd.f32 %v1598, %v1758
  %v1760 = vpop.f32.mrb[0].mxu0
  %v1761 = vand.u32 %v34, 4294901760
  %v1762 = vsub.f32 %v34, %v1761
  %1763 = vmatprep.mubr.f32.mxu0 %v1762
  %v1764 = vand.u32 %v33, 4294901760
  %v1765 = vsub.f32 %v33, %v1764
  %1766 = vmatmul.mubr.f32.gmra.mrb[0].mxu0 %v1765
  %v1767 = vpop.f32.mrb[0].mxu0
  %v1768 = vadd.f32 %v1605, %v1767
  %v1769 = vpop.f32.mrb[0].mxu0
  %v1770 = vand.u32 %v42, 4294901760
  %v1771 = vsub.f32 %v42, %v1770
  %1772 = vmatprep.mubr.f32.mxu0 %v1771
  %v1773 = vand.u32 %v41, 4294901760
  %v1774 = vsub.f32 %v41, %v1773
  %1775 = vmatmul.mubr.f32.gmra.mrb[0].mxu0 %v1774
  %v1776 = vpop.f32.mrb[0].mxu0
  %v1777 = vadd.f32 %v1612, %v1776
  %v1778 = vpop.f32.mrb[0].mxu0
  %1779 = vdwg.mxu0
  %1780 = vmatprep.subr.mxu0 0.0
  %v1781 = vand.u32 %v79, 4294901760
  %1782 = vmatpush1.msra.mxu0 %v1781
  %1783 = vmatprep.subr.mxu0 0.0
  %v1784 = vand.u32 %v80, 4294901760
  %1785 = vmatpush1.msra.mxu0 %v1784
  %1786 = vmatprep.subr.mxu0 0.0
  %v1787 = vand.u32 %v81, 4294901760
  %1788 = vmatpush1.msra.mxu0 %v1787
  %1789 = vmatprep.subr.mxu0 0.0
  %v1790 = vand.u32 %v82, 4294901760
  %1791 = vmatpush1.msra.mxu0 %v1790
  %1792 = vmatprep.subr.mxu0 0.0
  %v1793 = vand.u32 %v83, 4294901760
  %1794 = vmatpush1.msra.mxu0 %v1793
  %1795 = vmatprep.subr.mxu0 0.0
  %v1796 = vand.u32 %v84, 4294901760
  %1797 = vmatpush1.msra.mxu0 %v1796
  %1798 = vmatprep.subr.mxu0 0.0
  %v1799 = vand.u32 %v85, 4294901760
  %1800 = vmatpush1.msra.mxu0 %v1799
  %1801 = vmatprep.subr.mxu0 0.0
  %v1802 = vand.u32 %v86, 4294901760
  %1803 = vmatpush1.msra.mxu0 %v1802
  %1804 = vmatprep.subr.mxu0 0.0
  %v1805 = vand.u32 %v87, 4294901760
  %1806 = vmatpush1.msra.mxu0 %v1805
  %1807 = vmatprep.subr.mxu0 0.0
  %v1808 = vand.u32 %v88, 4294901760
  %1809 = vmatpush1.msra.mxu0 %v1808
  %1810 = vmatprep.subr.mxu0 0.0
  %v1811 = vand.u32 %v89, 4294901760
  %1812 = vmatpush1.msra.mxu0 %v1811
  %1813 = vmatprep.subr.mxu0 0.0
  %v1814 = vand.u32 %v90, 4294901760
  %1815 = vmatpush1.msra.mxu0 %v1814
  %1816 = vmatprep.subr.mxu0 0.0
  %v1817 = vand.u32 %v91, 4294901760
  %1818 = vmatpush1.msra.mxu0 %v1817
  %1819 = vmatprep.subr.mxu0 0.0
  %v1820 = vand.u32 %v92, 4294901760
  %1821 = vmatpush1.msra.mxu0 %v1820
  %1822 = vmatprep.subr.mxu0 0.0
  %v1823 = vand.u32 %v93, 4294901760
  %1824 = vmatpush1.msra.mxu0 %v1823
  %1825 = vmatprep.subr.mxu0 0.0
  %v1826 = vand.u32 %v94, 4294901760
  %1827 = vmatpush1.msra.mxu0 %v1826
  %1828 = vmatprep.subr.mxu0 0.0
  %v1829 = vand.u32 %v95, 4294901760
  %1830 = vmatpush1.msra.mxu0 %v1829
  %1831 = vmatprep.subr.mxu0 0.0
  %v1832 = vand.u32 %v96, 4294901760
  %1833 = vmatpush1.msra.mxu0 %v1832
  %1834 = vmatprep.subr.mxu0 0.0
  %v1835 = vand.u32 %v97, 4294901760
  %1836 = vmatpush1.msra.mxu0 %v1835
  %1837 = vmatprep.subr.mxu0 0.0
  %v1838 = vand.u32 %v98, 4294901760
  %1839 = vmatpush1.msra.mxu0 %v1838
  %1840 = vmatprep.subr.mxu0 0.0
  %v1841 = vand.u32 %v99, 4294901760
  %1842 = vmatpush1.msra.mxu0 %v1841
  %1843 = vmatprep.subr.mxu0 0.0
  %v1844 = vand.u32 %v100, 4294901760
  %1845 = vmatpush1.msra.mxu0 %v1844
  %1846 = vmatprep.subr.mxu0 0.0
  %v1847 = vand.u32 %v101, 4294901760
  %1848 = vmatpush1.msra.mxu0 %v1847
  %1849 = vmatprep.subr.mxu0 0.0
  %v1850 = vand.u32 %v102, 4294901760
  %1851 = vmatpush1.msra.mxu0 %v1850
  %1852 = vmatprep.subr.mxu0 0.0
  %v1853 = vand.u32 %v103, 4294901760
  %1854 = vmatpush1.msra.mxu0 %v1853
  %1855 = vmatprep.subr.mxu0 0.0
  %v1856 = vand.u32 %v104, 4294901760
  %1857 = vmatpush1.msra.mxu0 %v1856
  %1858 = vmatprep.subr.mxu0 0.0
  %v1859 = vand.u32 %v105, 4294901760
  %1860 = vmatpush1.msra.mxu0 %v1859
  %1861 = vmatprep.subr.mxu0 0.0
  %v1862 = vand.u32 %v106, 4294901760
  %1863 = vmatpush1.msra.mxu0 %v1862
  %1864 = vmatprep.subr.mxu0 0.0
  %v1865 = vand.u32 %v107, 4294901760
  %1866 = vmatpush1.msra.mxu0 %v1865
  %1867 = vmatprep.subr.mxu0 0.0
  %v1868 = vand.u32 %v108, 4294901760
  %1869 = vmatpush1.msra.mxu0 %v1868
  %1870 = vmatprep.subr.mxu0 0.0
  %v1871 = vand.u32 %v109, 4294901760
  %1872 = vmatpush1.msra.mxu0 %v1871
  %1873 = vmatprep.subr.mxu0 0.0
  %v1874 = vand.u32 %v110, 4294901760
  %1875 = vmatpush1.msra.mxu0 %v1874
  %v1876 = vand.u32 %v18, 4294901760
  %v1877 = vsub.f32 %v18, %v1876
  %v1878 = vand.u32 %v1877, 4294901760
  %1879 = vmatprep.mubr.f32.mxu0 %v1878
  %v1880 = vand.u32 %v17, 4294901760
  %v1881 = vsub.f32 %v17, %v1880
  %v1882 = vand.u32 %v1881, 4294901760
  %1883 = vmatmul.mubr.f32.gmra.mrb[0].mxu0 %v1882
  %v1884 = vpop.f32.mrb[0].mxu0
  %v1885 = vadd.f32 %v1750, %v1884
  %v1886 = vpop.f32.mrb[0].mxu0
  %v1887 = vand.u32 %v26, 4294901760
  %v1888 = vsub.f32 %v26, %v1887
  %v1889 = vand.u32 %v1888, 4294901760
  %1890 = vmatprep.mubr.f32.mxu0 %v1889
  %v1891 = vand.u32 %v25, 4294901760
  %v1892 = vsub.f32 %v25, %v1891
  %v1893 = vand.u32 %v1892, 4294901760
  %1894 = vmatmul.mubr.f32.gmra.mrb[0].mxu0 %v1893
  %v1895 = vpop.f32.mrb[0].mxu0
  %v1896 = vadd.f32 %v1759, %v1895
  %v1897 = vpop.f32.mrb[0].mxu0
  %v1898 = vand.u32 %v34, 4294901760
  %v1899 = vsub.f32 %v34, %v1898
  %v1900 = vand.u32 %v1899, 4294901760
  %1901 = vmatprep.mubr.f32.mxu0 %v1900
  %v1902 = vand.u32 %v33, 4294901760
  %v1903 = vsub.f32 %v33, %v1902
  %v1904 = vand.u32 %v1903, 4294901760
  %1905 = vmatmul.mubr.f32.gmra.mrb[0].mxu0 %v1904
  %v1906 = vpop.f32.mrb[0].mxu0
  %v1907 = vadd.f32 %v1768, %v1906
  %v1908 = vpop.f32.mrb[0].mxu0
  %v1909 = vand.u32 %v42, 4294901760
  %v1910 = vsub.f32 %v42, %v1909
  %v1911 = vand.u32 %v1910, 4294901760
  %1912 = vmatprep.mubr.f32.mxu0 %v1911
  %v1913 = vand.u32 %v41, 4294901760
  %v1914 = vsub.f32 %v41, %v1913
  %v1915 = vand.u32 %v1914, 4294901760
  %1916 = vmatmul.mubr.f32.gmra.mrb[0].mxu0 %v1915
  %v1917 = vpop.f32.mrb[0].mxu0
  %v1918 = vadd.f32 %v1777, %v1917
  %v1919 = vpop.f32.mrb[0].mxu0
  %1920 = vdwg.mxu0
  %1921 = vmatprep.subr.mxu0 0.0
  %v1922 = vand.u32 %v79, 4294901760
  %v1923 = vsub.f32 %v79, %v1922
  %v1924 = vand.u32 %v1923, 4294901760
  %1925 = vmatpush1.msra.mxu0 %v1924
  %1926 = vmatprep.subr.mxu0 0.0
  %v1927 = vand.u32 %v80, 4294901760
  %v1928 = vsub.f32 %v80, %v1927
  %v1929 = vand.u32 %v1928, 4294901760
  %1930 = vmatpush1.msra.mxu0 %v1929
  %1931 = vmatprep.subr.mxu0 0.0
  %v1932 = vand.u32 %v81, 4294901760
  %v1933 = vsub.f32 %v81, %v1932
  %v1934 = vand.u32 %v1933, 4294901760
  %1935 = vmatpush1.msra.mxu0 %v1934
  %1936 = vmatprep.subr.mxu0 0.0
  %v1937 = vand.u32 %v82, 4294901760
  %v1938 = vsub.f32 %v82, %v1937
  %v1939 = vand.u32 %v1938, 4294901760
  %1940 = vmatpush1.msra.mxu0 %v1939
  %1941 = vmatprep.subr.mxu0 0.0
  %v1942 = vand.u32 %v83, 4294901760
  %v1943 = vsub.f32 %v83, %v1942
  %v1944 = vand.u32 %v1943, 4294901760
  %1945 = vmatpush1.msra.mxu0 %v1944
  %1946 = vmatprep.subr.mxu0 0.0
  %v1947 = vand.u32 %v84, 4294901760
  %v1948 = vsub.f32 %v84, %v1947
  %v1949 = vand.u32 %v1948, 4294901760
  %1950 = vmatpush1.msra.mxu0 %v1949
  %1951 = vmatprep.subr.mxu0 0.0
  %v1952 = vand.u32 %v85, 4294901760
  %v1953 = vsub.f32 %v85, %v1952
  %v1954 = vand.u32 %v1953, 4294901760
  %1955 = vmatpush1.msra.mxu0 %v1954
  %1956 = vmatprep.subr.mxu0 0.0
  %v1957 = vand.u32 %v86, 4294901760
  %v1958 = vsub.f32 %v86, %v1957
  %v1959 = vand.u32 %v1958, 4294901760
  %1960 = vmatpush1.msra.mxu0 %v1959
  %1961 = vmatprep.subr.mxu0 0.0
  %v1962 = vand.u32 %v87, 4294901760
  %v1963 = vsub.f32 %v87, %v1962
  %v1964 = vand.u32 %v1963, 4294901760
  %1965 = vmatpush1.msra.mxu0 %v1964
  %1966 = vmatprep.subr.mxu0 0.0
  %v1967 = vand.u32 %v88, 4294901760
  %v1968 = vsub.f32 %v88, %v1967
  %v1969 = vand.u32 %v1968, 4294901760
  %1970 = vmatpush1.msra.mxu0 %v1969
  %1971 = vmatprep.subr.mxu0 0.0
  %v1972 = vand.u32 %v89, 4294901760
  %v1973 = vsub.f32 %v89, %v1972
  %v1974 = vand.u32 %v1973, 4294901760
  %1975 = vmatpush1.msra.mxu0 %v1974
  %1976 = vmatprep.subr.mxu0 0.0
  %v1977 = vand.u32 %v90, 4294901760
  %v1978 = vsub.f32 %v90, %v1977
  %v1979 = vand.u32 %v1978, 4294901760
  %1980 = vmatpush1.msra.mxu0 %v1979
  %1981 = vmatprep.subr.mxu0 0.0
  %v1982 = vand.u32 %v91, 4294901760
  %v1983 = vsub.f32 %v91, %v1982
  %v1984 = vand.u32 %v1983, 4294901760
  %1985 = vmatpush1.msra.mxu0 %v1984
  %1986 = vmatprep.subr.mxu0 0.0
  %v1987 = vand.u32 %v92, 4294901760
  %v1988 = vsub.f32 %v92, %v1987
  %v1989 = vand.u32 %v1988, 4294901760
  %1990 = vmatpush1.msra.mxu0 %v1989
  %1991 = vmatprep.subr.mxu0 0.0
  %v1992 = vand.u32 %v93, 4294901760
  %v1993 = vsub.f32 %v93, %v1992
  %v1994 = vand.u32 %v1993, 4294901760
  %1995 = vmatpush1.msra.mxu0 %v1994
  %1996 = vmatprep.subr.mxu0 0.0
  %v1997 = vand.u32 %v94, 4294901760
  %v1998 = vsub.f32 %v94, %v1997
  %v1999 = vand.u32 %v1998, 4294901760
  %2000 = vmatpush1.msra.mxu0 %v1999
  %2001 = vmatprep.subr.mxu0 0.0
  %v2002 = vand.u32 %v95, 4294901760
  %v2003 = vsub.f32 %v95, %v2002
  %v2004 = vand.u32 %v2003, 4294901760
  %2005 = vmatpush1.msra.mxu0 %v2004
  %2006 = vmatprep.subr.mxu0 0.0
  %v2007 = vand.u32 %v96, 4294901760
  %v2008 = vsub.f32 %v96, %v2007
  %v2009 = vand.u32 %v2008, 4294901760
  %2010 = vmatpush1.msra.mxu0 %v2009
  %2011 = vmatprep.subr.mxu0 0.0
  %v2012 = vand.u32 %v97, 4294901760
  %v2013 = vsub.f32 %v97, %v2012
  %v2014 = vand.u32 %v2013, 4294901760
  %2015 = vmatpush1.msra.mxu0 %v2014
  %2016 = vmatprep.subr.mxu0 0.0
  %v2017 = vand.u32 %v98, 4294901760
  %v2018 = vsub.f32 %v98, %v2017
  %v2019 = vand.u32 %v2018, 4294901760
  %2020 = vmatpush1.msra.mxu0 %v2019
  %2021 = vmatprep.subr.mxu0 0.0
  %v2022 = vand.u32 %v99, 4294901760
  %v2023 = vsub.f32 %v99, %v2022
  %v2024 = vand.u32 %v2023, 4294901760
  %2025 = vmatpush1.msra.mxu0 %v2024
  %2026 = vmatprep.subr.mxu0 0.0
  %v2027 = vand.u32 %v100, 4294901760
  %v2028 = vsub.f32 %v100, %v2027
  %v2029 = vand.u32 %v2028, 4294901760
  %2030 = vmatpush1.msra.mxu0 %v2029
  %2031 = vmatprep.subr.mxu0 0.0
  %v2032 = vand.u32 %v101, 4294901760
  %v2033 = vsub.f32 %v101, %v2032
  %v2034 = vand.u32 %v2033, 4294901760
  %2035 = vmatpush1.msra.mxu0 %v2034
  %2036 = vmatprep.subr.mxu0 0.0
  %v2037 = vand.u32 %v102, 4294901760
  %v2038 = vsub.f32 %v102, %v2037
  %v2039 = vand.u32 %v2038, 4294901760
  %2040 = vmatpush1.msra.mxu0 %v2039
  %2041 = vmatprep.subr.mxu0 0.0
  %v2042 = vand.u32 %v103, 4294901760
  %v2043 = vsub.f32 %v103, %v2042
  %v2044 = vand.u32 %v2043, 4294901760
  %2045 = vmatpush1.msra.mxu0 %v2044
  %2046 = vmatprep.subr.mxu0 0.0
  %v2047 = vand.u32 %v104, 4294901760
  %v2048 = vsub.f32 %v104, %v2047
  %v2049 = vand.u32 %v2048, 4294901760
  %2050 = vmatpush1.msra.mxu0 %v2049
  %2051 = vmatprep.subr.mxu0 0.0
  %v2052 = vand.u32 %v105, 4294901760
  %v2053 = vsub.f32 %v105, %v2052
  %v2054 = vand.u32 %v2053, 4294901760
  %2055 = vmatpush1.msra.mxu0 %v2054
  %2056 = vmatprep.subr.mxu0 0.0
  %v2057 = vand.u32 %v106, 4294901760
  %v2058 = vsub.f32 %v106, %v2057
  %v2059 = vand.u32 %v2058, 4294901760
  %2060 = vmatpush1.msra.mxu0 %v2059
  %2061 = vmatprep.subr.mxu0 0.0
  %v2062 = vand.u32 %v107, 4294901760
  %v2063 = vsub.f32 %v107, %v2062
  %v2064 = vand.u32 %v2063, 4294901760
  %2065 = vmatpush1.msra.mxu0 %v2064
  %2066 = vmatprep.subr.mxu0 0.0
  %v2067 = vand.u32 %v108, 4294901760
  %v2068 = vsub.f32 %v108, %v2067
  %v2069 = vand.u32 %v2068, 4294901760
  %2070 = vmatpush1.msra.mxu0 %v2069
  %2071 = vmatprep.subr.mxu0 0.0
  %v2072 = vand.u32 %v109, 4294901760
  %v2073 = vsub.f32 %v109, %v2072
  %v2074 = vand.u32 %v2073, 4294901760
  %2075 = vmatpush1.msra.mxu0 %v2074
  %2076 = vmatprep.subr.mxu0 0.0
  %v2077 = vand.u32 %v110, 4294901760
  %v2078 = vsub.f32 %v110, %v2077
  %v2079 = vand.u32 %v2078, 4294901760
  %2080 = vmatpush1.msra.mxu0 %v2079
  %v2081 = vand.u32 %v18, 4294901760
  %2082 = vmatprep.mubr.f32.mxu0 %v2081
  %v2083 = vand.u32 %v17, 4294901760
  %2084 = vmatmul.mubr.f32.gmra.mrb[0].mxu0 %v2083
  %v2085 = vpop.f32.mrb[0].mxu0
  %v2086 = vadd.f32 %v1885, %v2085
  %v2087 = vpop.f32.mrb[0].mxu0
  %v2088 = vand.u32 %v26, 4294901760
  %2089 = vmatprep.mubr.f32.mxu0 %v2088
  %v2090 = vand.u32 %v25, 4294901760
  %2091 = vmatmul.mubr.f32.gmra.mrb[0].mxu0 %v2090
  %v2092 = vpop.f32.mrb[0].mxu0
  %v2093 = vadd.f32 %v1896, %v2092
  %v2094 = vpop.f32.mrb[0].mxu0
  %v2095 = vand.u32 %v34, 4294901760
  %2096 = vmatprep.mubr.f32.mxu0 %v2095
  %v2097 = vand.u32 %v33, 4294901760
  %2098 = vmatmul.mubr.f32.gmra.mrb[0].mxu0 %v2097
  %v2099 = vpop.f32.mrb[0].mxu0
  %v2100 = vadd.f32 %v1907, %v2099
  %v2101 = vpop.f32.mrb[0].mxu0
  %v2102 = vand.u32 %v42, 4294901760
  %2103 = vmatprep.mubr.f32.mxu0 %v2102
  %v2104 = vand.u32 %v41, 4294901760
  %2105 = vmatmul.mubr.f32.gmra.mrb[0].mxu0 %v2104
  %v2106 = vpop.f32.mrb[0].mxu0
  %v2107 = vadd.f32 %v1918, %v2106
  %v2108 = vpop.f32.mrb[0].mxu0
  %2109 = vdwg.mxu0
  %2110 = vmatprep.subr.mxu0 0.0
  %v2111 = vand.u32 %v79, 4294901760
  %2112 = vmatpush1.msra.mxu0 %v2111
  %2113 = vmatprep.subr.mxu0 0.0
  %v2114 = vand.u32 %v80, 4294901760
  %2115 = vmatpush1.msra.mxu0 %v2114
  %2116 = vmatprep.subr.mxu0 0.0
  %v2117 = vand.u32 %v81, 4294901760
  %2118 = vmatpush1.msra.mxu0 %v2117
  %2119 = vmatprep.subr.mxu0 0.0
  %v2120 = vand.u32 %v82, 4294901760
  %2121 = vmatpush1.msra.mxu0 %v2120
  %2122 = vmatprep.subr.mxu0 0.0
  %v2123 = vand.u32 %v83, 4294901760
  %2124 = vmatpush1.msra.mxu0 %v2123
  %2125 = vmatprep.subr.mxu0 0.0
  %v2126 = vand.u32 %v84, 4294901760
  %2127 = vmatpush1.msra.mxu0 %v2126
  %2128 = vmatprep.subr.mxu0 0.0
  %v2129 = vand.u32 %v85, 4294901760
  %2130 = vmatpush1.msra.mxu0 %v2129
  %2131 = vmatprep.subr.mxu0 0.0
  %v2132 = vand.u32 %v86, 4294901760
  %2133 = vmatpush1.msra.mxu0 %v2132
  %2134 = vmatprep.subr.mxu0 0.0
  %v2135 = vand.u32 %v87, 4294901760
  %2136 = vmatpush1.msra.mxu0 %v2135
  %2137 = vmatprep.subr.mxu0 0.0
  %v2138 = vand.u32 %v88, 4294901760
  %2139 = vmatpush1.msra.mxu0 %v2138
  %2140 = vmatprep.subr.mxu0 0.0
  %v2141 = vand.u32 %v89, 4294901760
  %2142 = vmatpush1.msra.mxu0 %v2141
  %2143 = vmatprep.subr.mxu0 0.0
  %v2144 = vand.u32 %v90, 4294901760
  %2145 = vmatpush1.msra.mxu0 %v2144
  %2146 = vmatprep.subr.mxu0 0.0
  %v2147 = vand.u32 %v91, 4294901760
  %2148 = vmatpush1.msra.mxu0 %v2147
  %2149 = vmatprep.subr.mxu0 0.0
  %v2150 = vand.u32 %v92, 4294901760
  %2151 = vmatpush1.msra.mxu0 %v2150
  %2152 = vmatprep.subr.mxu0 0.0
  %v2153 = vand.u32 %v93, 4294901760
  %2154 = vmatpush1.msra.mxu0 %v2153
  %2155 = vmatprep.subr.mxu0 0.0
  %v2156 = vand.u32 %v94, 4294901760
  %2157 = vmatpush1.msra.mxu0 %v2156
  %2158 = vmatprep.subr.mxu0 0.0
  %v2159 = vand.u32 %v95, 4294901760
  %2160 = vmatpush1.msra.mxu0 %v2159
  %2161 = vmatprep.subr.mxu0 0.0
  %v2162 = vand.u32 %v96, 4294901760
  %2163 = vmatpush1.msra.mxu0 %v2162
  %2164 = vmatprep.subr.mxu0 0.0
  %v2165 = vand.u32 %v97, 4294901760
  %2166 = vmatpush1.msra.mxu0 %v2165
  %2167 = vmatprep.subr.mxu0 0.0
  %v2168 = vand.u32 %v98, 4294901760
  %2169 = vmatpush1.msra.mxu0 %v2168
  %2170 = vmatprep.subr.mxu0 0.0
  %v2171 = vand.u32 %v99, 4294901760
  %2172 = vmatpush1.msra.mxu0 %v2171
  %2173 = vmatprep.subr.mxu0 0.0
  %v2174 = vand.u32 %v100, 4294901760
  %2175 = vmatpush1.msra.mxu0 %v2174
  %2176 = vmatprep.subr.mxu0 0.0
  %v2177 = vand.u32 %v101, 4294901760
  %2178 = vmatpush1.msra.mxu0 %v2177
  %2179 = vmatprep.subr.mxu0 0.0
  %v2180 = vand.u32 %v102, 4294901760
  %2181 = vmatpush1.msra.mxu0 %v2180
  %2182 = vmatprep.subr.mxu0 0.0
  %v2183 = vand.u32 %v103, 4294901760
  %2184 = vmatpush1.msra.mxu0 %v2183
  %2185 = vmatprep.subr.mxu0 0.0
  %v2186 = vand.u32 %v104, 4294901760
  %2187 = vmatpush1.msra.mxu0 %v2186
  %2188 = vmatprep.subr.mxu0 0.0
  %v2189 = vand.u32 %v105, 4294901760
  %2190 = vmatpush1.msra.mxu0 %v2189
  %2191 = vmatprep.subr.mxu0 0.0
  %v2192 = vand.u32 %v106, 4294901760
  %2193 = vmatpush1.msra.mxu0 %v2192
  %2194 = vmatprep.subr.mxu0 0.0
  %v2195 = vand.u32 %v107, 4294901760
  %2196 = vmatpush1.msra.mxu0 %v2195
  %2197 = vmatprep.subr.mxu0 0.0
  %v2198 = vand.u32 %v108, 4294901760
  %2199 = vmatpush1.msra.mxu0 %v2198
  %2200 = vmatprep.subr.mxu0 0.0
  %v2201 = vand.u32 %v109, 4294901760
  %2202 = vmatpush1.msra.mxu0 %v2201
  %2203 = vmatprep.subr.mxu0 0.0
  %v2204 = vand.u32 %v110, 4294901760
  %2205 = vmatpush1.msra.mxu0 %v2204
  %v2206 = vand.u32 %v18, 4294901760
  %2207 = vmatprep.mubr.f32.mxu0 %v2206
  %v2208 = vand.u32 %v17, 4294901760
  %2209 = vmatmul.mubr.f32.gmra.mrb[0].mxu0 %v2208
  %v2210 = vpop.f32.mrb[0].mxu0
  %v2211 = vadd.f32 %v2086, %v2210
  %v2212 = vpop.f32.mrb[0].mxu0
  %v2213 = vand.u32 %v26, 4294901760
  %2214 = vmatprep.mubr.f32.mxu0 %v2213
  %v2215 = vand.u32 %v25, 4294901760
  %2216 = vmatmul.mubr.f32.gmra.mrb[0].mxu0 %v2215
  %v2217 = vpop.f32.mrb[0].mxu0
  %v2218 = vadd.f32 %v2093, %v2217
  %v2219 = vpop.f32.mrb[0].mxu0
  %v2220 = vand.u32 %v34, 4294901760
  %2221 = vmatprep.mubr.f32.mxu0 %v2220
  %v2222 = vand.u32 %v33, 4294901760
  %2223 = vmatmul.mubr.f32.gmra.mrb[0].mxu0 %v2222
  %v2224 = vpop.f32.mrb[0].mxu0
  %v2225 = vadd.f32 %v2100, %v2224
  %v2226 = vpop.f32.mrb[0].mxu0
  %v2227 = vand.u32 %v42, 4294901760
  %2228 = vmatprep.mubr.f32.mxu0 %v2227
  %v2229 = vand.u32 %v41, 4294901760
  %2230 = vmatmul.mubr.f32.gmra.mrb[0].mxu0 %v2229
  %v2231 = vpop.f32.mrb[0].mxu0
  %v2232 = vadd.f32 %v2107, %v2231
  %v2233 = vpop.f32.mrb[0].mxu0
  %2234 = vdwg.mxu0
  %2235 = vmatprep.subr.mxu0 0.0
  %v2236 = vand.u32 %v111, 4294901760
  %2237 = vmatpush1.msra.mxu0 %v2236
  %2238 = vmatprep.subr.mxu0 0.0
  %v2239 = vand.u32 %v112, 4294901760
  %2240 = vmatpush1.msra.mxu0 %v2239
  %2241 = vmatprep.subr.mxu0 0.0
  %v2242 = vand.u32 %v113, 4294901760
  %2243 = vmatpush1.msra.mxu0 %v2242
  %2244 = vmatprep.subr.mxu0 0.0
  %v2245 = vand.u32 %v114, 4294901760
  %2246 = vmatpush1.msra.mxu0 %v2245
  %2247 = vmatprep.subr.mxu0 0.0
  %v2248 = vand.u32 %v115, 4294901760
  %2249 = vmatpush1.msra.mxu0 %v2248
  %2250 = vmatprep.subr.mxu0 0.0
  %v2251 = vand.u32 %v116, 4294901760
  %2252 = vmatpush1.msra.mxu0 %v2251
  %2253 = vmatprep.subr.mxu0 0.0
  %v2254 = vand.u32 %v117, 4294901760
  %2255 = vmatpush1.msra.mxu0 %v2254
  %2256 = vmatprep.subr.mxu0 0.0
  %v2257 = vand.u32 %v118, 4294901760
  %2258 = vmatpush1.msra.mxu0 %v2257
  %2259 = vmatprep.subr.mxu0 0.0
  %v2260 = vand.u32 %v119, 4294901760
  %2261 = vmatpush1.msra.mxu0 %v2260
  %2262 = vmatprep.subr.mxu0 0.0
  %v2263 = vand.u32 %v120, 4294901760
  %2264 = vmatpush1.msra.mxu0 %v2263
  %2265 = vmatprep.subr.mxu0 0.0
  %v2266 = vand.u32 %v121, 4294901760
  %2267 = vmatpush1.msra.mxu0 %v2266
  %2268 = vmatprep.subr.mxu0 0.0
  %v2269 = vand.u32 %v122, 4294901760
  %2270 = vmatpush1.msra.mxu0 %v2269
  %2271 = vmatprep.subr.mxu0 0.0
  %v2272 = vand.u32 %v123, 4294901760
  %2273 = vmatpush1.msra.mxu0 %v2272
  %2274 = vmatprep.subr.mxu0 0.0
  %v2275 = vand.u32 %v124, 4294901760
  %2276 = vmatpush1.msra.mxu0 %v2275
  %2277 = vmatprep.subr.mxu0 0.0
  %v2278 = vand.u32 %v125, 4294901760
  %2279 = vmatpush1.msra.mxu0 %v2278
  %2280 = vmatprep.subr.mxu0 0.0
  %v2281 = vand.u32 %v126, 4294901760
  %2282 = vmatpush1.msra.mxu0 %v2281
  %2283 = vmatprep.subr.mxu0 0.0
  %v2284 = vand.u32 %v127, 4294901760
  %2285 = vmatpush1.msra.mxu0 %v2284
  %2286 = vmatprep.subr.mxu0 0.0
  %v2287 = vand.u32 %v128, 4294901760
  %2288 = vmatpush1.msra.mxu0 %v2287
  %2289 = vmatprep.subr.mxu0 0.0
  %v2290 = vand.u32 %v129, 4294901760
  %2291 = vmatpush1.msra.mxu0 %v2290
  %2292 = vmatprep.subr.mxu0 0.0
  %v2293 = vand.u32 %v130, 4294901760
  %2294 = vmatpush1.msra.mxu0 %v2293
  %2295 = vmatprep.subr.mxu0 0.0
  %v2296 = vand.u32 %v131, 4294901760
  %2297 = vmatpush1.msra.mxu0 %v2296
  %2298 = vmatprep.subr.mxu0 0.0
  %v2299 = vand.u32 %v132, 4294901760
  %2300 = vmatpush1.msra.mxu0 %v2299
  %2301 = vmatprep.subr.mxu0 0.0
  %v2302 = vand.u32 %v133, 4294901760
  %2303 = vmatpush1.msra.mxu0 %v2302
  %2304 = vmatprep.subr.mxu0 0.0
  %v2305 = vand.u32 %v134, 4294901760
  %2306 = vmatpush1.msra.mxu0 %v2305
  %2307 = vmatprep.subr.mxu0 0.0
  %v2308 = vand.u32 %v135, 4294901760
  %2309 = vmatpush1.msra.mxu0 %v2308
  %2310 = vmatprep.subr.mxu0 0.0
  %v2311 = vand.u32 %v136, 4294901760
  %2312 = vmatpush1.msra.mxu0 %v2311
  %2313 = vmatprep.subr.mxu0 0.0
  %v2314 = vand.u32 %v137, 4294901760
  %2315 = vmatpush1.msra.mxu0 %v2314
  %2316 = vmatprep.subr.mxu0 0.0
  %v2317 = vand.u32 %v138, 4294901760
  %2318 = vmatpush1.msra.mxu0 %v2317
  %2319 = vmatprep.subr.mxu0 0.0
  %v2320 = vand.u32 %v139, 4294901760
  %2321 = vmatpush1.msra.mxu0 %v2320
  %2322 = vmatprep.subr.mxu0 0.0
  %v2323 = vand.u32 %v140, 4294901760
  %2324 = vmatpush1.msra.mxu0 %v2323
  %2325 = vmatprep.subr.mxu0 0.0
  %v2326 = vand.u32 %v141, 4294901760
  %2327 = vmatpush1.msra.mxu0 %v2326
  %2328 = vmatprep.subr.mxu0 0.0
  %v2329 = vand.u32 %v142, 4294901760
  %2330 = vmatpush1.msra.mxu0 %v2329
  %v2331 = vand.u32 %v20, 4294901760
  %v2332 = vsub.f32 %v20, %v2331
  %v2333 = vand.u32 %v2332, 4294901760
  %v2334 = vsub.f32 %v2332, %v2333
  %v2335 = vand.u32 %v2334, 4294901760
  %2336 = vmatprep.mubr.f32.mxu0 %v2335
  %v2337 = vand.u32 %v19, 4294901760
  %v2338 = vsub.f32 %v19, %v2337
  %v2339 = vand.u32 %v2338, 4294901760
  %v2340 = vsub.f32 %v2338, %v2339
  %v2341 = vand.u32 %v2340, 4294901760
  %2342 = vmatmul.mubr.f32.gmra.mrb[0].mxu0 %v2341
  %v2343 = vpop.f32.mrb[0].mxu0
  %v2344 = vadd.f32 %v2211, %v2343
  %v2345 = vpop.f32.mrb[0].mxu0
  %v2346 = vand.u32 %v28, 4294901760
  %v2347 = vsub.f32 %v28, %v2346
  %v2348 = vand.u32 %v2347, 4294901760
  %v2349 = vsub.f32 %v2347, %v2348
  %v2350 = vand.u32 %v2349, 4294901760
  %2351 = vmatprep.mubr.f32.mxu0 %v2350
  %v2352 = vand.u32 %v27, 4294901760
  %v2353 = vsub.f32 %v27, %v2352
  %v2354 = vand.u32 %v2353, 4294901760
  %v2355 = vsub.f32 %v2353, %v2354
  %v2356 = vand.u32 %v2355, 4294901760
  %2357 = vmatmul.mubr.f32.gmra.mrb[0].mxu0 %v2356
  %v2358 = vpop.f32.mrb[0].mxu0
  %v2359 = vadd.f32 %v2218, %v2358
  %v2360 = vpop.f32.mrb[0].mxu0
  %v2361 = vand.u32 %v36, 4294901760
  %v2362 = vsub.f32 %v36, %v2361
  %v2363 = vand.u32 %v2362, 4294901760
  %v2364 = vsub.f32 %v2362, %v2363
  %v2365 = vand.u32 %v2364, 4294901760
  %2366 = vmatprep.mubr.f32.mxu0 %v2365
  %v2367 = vand.u32 %v35, 4294901760
  %v2368 = vsub.f32 %v35, %v2367
  %v2369 = vand.u32 %v2368, 4294901760
  %v2370 = vsub.f32 %v2368, %v2369
  %v2371 = vand.u32 %v2370, 4294901760
  %2372 = vmatmul.mubr.f32.gmra.mrb[0].mxu0 %v2371
  %v2373 = vpop.f32.mrb[0].mxu0
  %v2374 = vadd.f32 %v2225, %v2373
  %v2375 = vpop.f32.mrb[0].mxu0
  %v2376 = vand.u32 %v44, 4294901760
  %v2377 = vsub.f32 %v44, %v2376
  %v2378 = vand.u32 %v2377, 4294901760
  %v2379 = vsub.f32 %v2377, %v2378
  %v2380 = vand.u32 %v2379, 4294901760
  %2381 = vmatprep.mubr.f32.mxu0 %v2380
  %v2382 = vand.u32 %v43, 4294901760
  %v2383 = vsub.f32 %v43, %v2382
  %v2384 = vand.u32 %v2383, 4294901760
  %v2385 = vsub.f32 %v2383, %v2384
  %v2386 = vand.u32 %v2385, 4294901760
  %2387 = vmatmul.mubr.f32.gmra.mrb[0].mxu0 %v2386
  %v2388 = vpop.f32.mrb[0].mxu0
  %v2389 = vadd.f32 %v2232, %v2388
  %v2390 = vpop.f32.mrb[0].mxu0
  %2391 = vdwg.mxu0
  %2392 = vmatprep.subr.mxu0 0.0
  %v2393 = vand.u32 %v111, 4294901760
  %v2394 = vsub.f32 %v111, %v2393
  %v2395 = vand.u32 %v2394, 4294901760
  %v2396 = vsub.f32 %v2394, %v2395
  %v2397 = vand.u32 %v2396, 4294901760
  %2398 = vmatpush1.msra.mxu0 %v2397
  %2399 = vmatprep.subr.mxu0 0.0
  %v2400 = vand.u32 %v112, 4294901760
  %v2401 = vsub.f32 %v112, %v2400
  %v2402 = vand.u32 %v2401, 4294901760
  %v2403 = vsub.f32 %v2401, %v2402
  %v2404 = vand.u32 %v2403, 4294901760
  %2405 = vmatpush1.msra.mxu0 %v2404
  %2406 = vmatprep.subr.mxu0 0.0
  %v2407 = vand.u32 %v113, 4294901760
  %v2408 = vsub.f32 %v113, %v2407
  %v2409 = vand.u32 %v2408, 4294901760
  %v2410 = vsub.f32 %v2408, %v2409
  %v2411 = vand.u32 %v2410, 4294901760
  %2412 = vmatpush1.msra.mxu0 %v2411
  %2413 = vmatprep.subr.mxu0 0.0
  %v2414 = vand.u32 %v114, 4294901760
  %v2415 = vsub.f32 %v114, %v2414
  %v2416 = vand.u32 %v2415, 4294901760
  %v2417 = vsub.f32 %v2415, %v2416
  %v2418 = vand.u32 %v2417, 4294901760
  %2419 = vmatpush1.msra.mxu0 %v2418
  %2420 = vmatprep.subr.mxu0 0.0
  %v2421 = vand.u32 %v115, 4294901760
  %v2422 = vsub.f32 %v115, %v2421
  %v2423 = vand.u32 %v2422, 4294901760
  %v2424 = vsub.f32 %v2422, %v2423
  %v2425 = vand.u32 %v2424, 4294901760
  %2426 = vmatpush1.msra.mxu0 %v2425
  %2427 = vmatprep.subr.mxu0 0.0
  %v2428 = vand.u32 %v116, 4294901760
  %v2429 = vsub.f32 %v116, %v2428
  %v2430 = vand.u32 %v2429, 4294901760
  %v2431 = vsub.f32 %v2429, %v2430
  %v2432 = vand.u32 %v2431, 4294901760
  %2433 = vmatpush1.msra.mxu0 %v2432
  %2434 = vmatprep.subr.mxu0 0.0
  %v2435 = vand.u32 %v117, 4294901760
  %v2436 = vsub.f32 %v117, %v2435
  %v2437 = vand.u32 %v2436, 4294901760
  %v2438 = vsub.f32 %v2436, %v2437
  %v2439 = vand.u32 %v2438, 4294901760
  %2440 = vmatpush1.msra.mxu0 %v2439
  %2441 = vmatprep.subr.mxu0 0.0
  %v2442 = vand.u32 %v118, 4294901760
  %v2443 = vsub.f32 %v118, %v2442
  %v2444 = vand.u32 %v2443, 4294901760
  %v2445 = vsub.f32 %v2443, %v2444
  %v2446 = vand.u32 %v2445, 4294901760
  %2447 = vmatpush1.msra.mxu0 %v2446
  %2448 = vmatprep.subr.mxu0 0.0
  %v2449 = vand.u32 %v119, 4294901760
  %v2450 = vsub.f32 %v119, %v2449
  %v2451 = vand.u32 %v2450, 4294901760
  %v2452 = vsub.f32 %v2450, %v2451
  %v2453 = vand.u32 %v2452, 4294901760
  %2454 = vmatpush1.msra.mxu0 %v2453
  %2455 = vmatprep.subr.mxu0 0.0
  %v2456 = vand.u32 %v120, 4294901760
  %v2457 = vsub.f32 %v120, %v2456
  %v2458 = vand.u32 %v2457, 4294901760
  %v2459 = vsub.f32 %v2457, %v2458
  %v2460 = vand.u32 %v2459, 4294901760
  %2461 = vmatpush1.msra.mxu0 %v2460
  %2462 = vmatprep.subr.mxu0 0.0
  %v2463 = vand.u32 %v121, 4294901760
  %v2464 = vsub.f32 %v121, %v2463
  %v2465 = vand.u32 %v2464, 4294901760
  %v2466 = vsub.f32 %v2464, %v2465
  %v2467 = vand.u32 %v2466, 4294901760
  %2468 = vmatpush1.msra.mxu0 %v2467
  %2469 = vmatprep.subr.mxu0 0.0
  %v2470 = vand.u32 %v122, 4294901760
  %v2471 = vsub.f32 %v122, %v2470
  %v2472 = vand.u32 %v2471, 4294901760
  %v2473 = vsub.f32 %v2471, %v2472
  %v2474 = vand.u32 %v2473, 4294901760
  %2475 = vmatpush1.msra.mxu0 %v2474
  %2476 = vmatprep.subr.mxu0 0.0
  %v2477 = vand.u32 %v123, 4294901760
  %v2478 = vsub.f32 %v123, %v2477
  %v2479 = vand.u32 %v2478, 4294901760
  %v2480 = vsub.f32 %v2478, %v2479
  %v2481 = vand.u32 %v2480, 4294901760
  %2482 = vmatpush1.msra.mxu0 %v2481
  %2483 = vmatprep.subr.mxu0 0.0
  %v2484 = vand.u32 %v124, 4294901760
  %v2485 = vsub.f32 %v124, %v2484
  %v2486 = vand.u32 %v2485, 4294901760
  %v2487 = vsub.f32 %v2485, %v2486
  %v2488 = vand.u32 %v2487, 4294901760
  %2489 = vmatpush1.msra.mxu0 %v2488
  %2490 = vmatprep.subr.mxu0 0.0
  %v2491 = vand.u32 %v125, 4294901760
  %v2492 = vsub.f32 %v125, %v2491
  %v2493 = vand.u32 %v2492, 4294901760
  %v2494 = vsub.f32 %v2492, %v2493
  %v2495 = vand.u32 %v2494, 4294901760
  %2496 = vmatpush1.msra.mxu0 %v2495
  %2497 = vmatprep.subr.mxu0 0.0
  %v2498 = vand.u32 %v126, 4294901760
  %v2499 = vsub.f32 %v126, %v2498
  %v2500 = vand.u32 %v2499, 4294901760
  %v2501 = vsub.f32 %v2499, %v2500
  %v2502 = vand.u32 %v2501, 4294901760
  %2503 = vmatpush1.msra.mxu0 %v2502
  %2504 = vmatprep.subr.mxu0 0.0
  %v2505 = vand.u32 %v127, 4294901760
  %v2506 = vsub.f32 %v127, %v2505
  %v2507 = vand.u32 %v2506, 4294901760
  %v2508 = vsub.f32 %v2506, %v2507
  %v2509 = vand.u32 %v2508, 4294901760
  %2510 = vmatpush1.msra.mxu0 %v2509
  %2511 = vmatprep.subr.mxu0 0.0
  %v2512 = vand.u32 %v128, 4294901760
  %v2513 = vsub.f32 %v128, %v2512
  %v2514 = vand.u32 %v2513, 4294901760
  %v2515 = vsub.f32 %v2513, %v2514
  %v2516 = vand.u32 %v2515, 4294901760
  %2517 = vmatpush1.msra.mxu0 %v2516
  %2518 = vmatprep.subr.mxu0 0.0
  %v2519 = vand.u32 %v129, 4294901760
  %v2520 = vsub.f32 %v129, %v2519
  %v2521 = vand.u32 %v2520, 4294901760
  %v2522 = vsub.f32 %v2520, %v2521
  %v2523 = vand.u32 %v2522, 4294901760
  %2524 = vmatpush1.msra.mxu0 %v2523
  %2525 = vmatprep.subr.mxu0 0.0
  %v2526 = vand.u32 %v130, 4294901760
  %v2527 = vsub.f32 %v130, %v2526
  %v2528 = vand.u32 %v2527, 4294901760
  %v2529 = vsub.f32 %v2527, %v2528
  %v2530 = vand.u32 %v2529, 4294901760
  %2531 = vmatpush1.msra.mxu0 %v2530
  %2532 = vmatprep.subr.mxu0 0.0
  %v2533 = vand.u32 %v131, 4294901760
  %v2534 = vsub.f32 %v131, %v2533
  %v2535 = vand.u32 %v2534, 4294901760
  %v2536 = vsub.f32 %v2534, %v2535
  %v2537 = vand.u32 %v2536, 4294901760
  %2538 = vmatpush1.msra.mxu0 %v2537
  %2539 = vmatprep.subr.mxu0 0.0
  %v2540 = vand.u32 %v132, 4294901760
  %v2541 = vsub.f32 %v132, %v2540
  %v2542 = vand.u32 %v2541, 4294901760
  %v2543 = vsub.f32 %v2541, %v2542
  %v2544 = vand.u32 %v2543, 4294901760
  %2545 = vmatpush1.msra.mxu0 %v2544
  %2546 = vmatprep.subr.mxu0 0.0
  %v2547 = vand.u32 %v133, 4294901760
  %v2548 = vsub.f32 %v133, %v2547
  %v2549 = vand.u32 %v2548, 4294901760
  %v2550 = vsub.f32 %v2548, %v2549
  %v2551 = vand.u32 %v2550, 4294901760
  %2552 = vmatpush1.msra.mxu0 %v2551
  %2553 = vmatprep.subr.mxu0 0.0
  %v2554 = vand.u32 %v134, 4294901760
  %v2555 = vsub.f32 %v134, %v2554
  %v2556 = vand.u32 %v2555, 4294901760
  %v2557 = vsub.f32 %v2555, %v2556
  %v2558 = vand.u32 %v2557, 4294901760
  %2559 = vmatpush1.msra.mxu0 %v2558
  %2560 = vmatprep.subr.mxu0 0.0
  %v2561 = vand.u32 %v135, 4294901760
  %v2562 = vsub.f32 %v135, %v2561
  %v2563 = vand.u32 %v2562, 4294901760
  %v2564 = vsub.f32 %v2562, %v2563
  %v2565 = vand.u32 %v2564, 4294901760
  %2566 = vmatpush1.msra.mxu0 %v2565
  %2567 = vmatprep.subr.mxu0 0.0
  %v2568 = vand.u32 %v136, 4294901760
  %v2569 = vsub.f32 %v136, %v2568
  %v2570 = vand.u32 %v2569, 4294901760
  %v2571 = vsub.f32 %v2569, %v2570
  %v2572 = vand.u32 %v2571, 4294901760
  %2573 = vmatpush1.msra.mxu0 %v2572
  %2574 = vmatprep.subr.mxu0 0.0
  %v2575 = vand.u32 %v137, 4294901760
  %v2576 = vsub.f32 %v137, %v2575
  %v2577 = vand.u32 %v2576, 4294901760
  %v2578 = vsub.f32 %v2576, %v2577
  %v2579 = vand.u32 %v2578, 4294901760
  %2580 = vmatpush1.msra.mxu0 %v2579
  %2581 = vmatprep.subr.mxu0 0.0
  %v2582 = vand.u32 %v138, 4294901760
  %v2583 = vsub.f32 %v138, %v2582
  %v2584 = vand.u32 %v2583, 4294901760
  %v2585 = vsub.f32 %v2583, %v2584
  %v2586 = vand.u32 %v2585, 4294901760
  %2587 = vmatpush1.msra.mxu0 %v2586
  %2588 = vmatprep.subr.mxu0 0.0
  %v2589 = vand.u32 %v139, 4294901760
  %v2590 = vsub.f32 %v139, %v2589
  %v2591 = vand.u32 %v2590, 4294901760
  %v2592 = vsub.f32 %v2590, %v2591
  %v2593 = vand.u32 %v2592, 4294901760
  %2594 = vmatpush1.msra.mxu0 %v2593
  %2595 = vmatprep.subr.mxu0 0.0
  %v2596 = vand.u32 %v140, 4294901760
  %v2597 = vsub.f32 %v140, %v2596
  %v2598 = vand.u32 %v2597, 4294901760
  %v2599 = vsub.f32 %v2597, %v2598
  %v2600 = vand.u32 %v2599, 4294901760
  %2601 = vmatpush1.msra.mxu0 %v2600
  %2602 = vmatprep.subr.mxu0 0.0
  %v2603 = vand.u32 %v141, 4294901760
  %v2604 = vsub.f32 %v141, %v2603
  %v2605 = vand.u32 %v2604, 4294901760
  %v2606 = vsub.f32 %v2604, %v2605
  %v2607 = vand.u32 %v2606, 4294901760
  %2608 = vmatpush1.msra.mxu0 %v2607
  %2609 = vmatprep.subr.mxu0 0.0
  %v2610 = vand.u32 %v142, 4294901760
  %v2611 = vsub.f32 %v142, %v2610
  %v2612 = vand.u32 %v2611, 4294901760
  %v2613 = vsub.f32 %v2611, %v2612
  %v2614 = vand.u32 %v2613, 4294901760
  %2615 = vmatpush1.msra.mxu0 %v2614
  %v2616 = vand.u32 %v20, 4294901760
  %2617 = vmatprep.mubr.f32.mxu0 %v2616
  %v2618 = vand.u32 %v19, 4294901760
  %2619 = vmatmul.mubr.f32.gmra.mrb[0].mxu0 %v2618
  %v2620 = vpop.f32.mrb[0].mxu0
  %v2621 = vadd.f32 %v2344, %v2620
  %v2622 = vpop.f32.mrb[0].mxu0
  %v2623 = vand.u32 %v28, 4294901760
  %2624 = vmatprep.mubr.f32.mxu0 %v2623
  %v2625 = vand.u32 %v27, 4294901760
  %2626 = vmatmul.mubr.f32.gmra.mrb[0].mxu0 %v2625
  %v2627 = vpop.f32.mrb[0].mxu0
  %v2628 = vadd.f32 %v2359, %v2627
  %v2629 = vpop.f32.mrb[0].mxu0
  %v2630 = vand.u32 %v36, 4294901760
  %2631 = vmatprep.mubr.f32.mxu0 %v2630
  %v2632 = vand.u32 %v35, 4294901760
  %2633 = vmatmul.mubr.f32.gmra.mrb[0].mxu0 %v2632
  %v2634 = vpop.f32.mrb[0].mxu0
  %v2635 = vadd.f32 %v2374, %v2634
  %v2636 = vpop.f32.mrb[0].mxu0
  %v2637 = vand.u32 %v44, 4294901760
  %2638 = vmatprep.mubr.f32.mxu0 %v2637
  %v2639 = vand.u32 %v43, 4294901760
  %2640 = vmatmul.mubr.f32.gmra.mrb[0].mxu0 %v2639
  %v2641 = vpop.f32.mrb[0].mxu0
  %v2642 = vadd.f32 %v2389, %v2641
  %v2643 = vpop.f32.mrb[0].mxu0
  %2644 = vdwg.mxu0
  %2645 = vmatprep.subr.mxu0 0.0
  %v2646 = vand.u32 %v111, 4294901760
  %v2647 = vsub.f32 %v111, %v2646
  %2648 = vmatpush1.msra.mxu0 %v2647
  %2649 = vmatprep.subr.mxu0 0.0
  %v2650 = vand.u32 %v112, 4294901760
  %v2651 = vsub.f32 %v112, %v2650
  %2652 = vmatpush1.msra.mxu0 %v2651
  %2653 = vmatprep.subr.mxu0 0.0
  %v2654 = vand.u32 %v113, 4294901760
  %v2655 = vsub.f32 %v113, %v2654
  %2656 = vmatpush1.msra.mxu0 %v2655
  %2657 = vmatprep.subr.mxu0 0.0
  %v2658 = vand.u32 %v114, 4294901760
  %v2659 = vsub.f32 %v114, %v2658
  %2660 = vmatpush1.msra.mxu0 %v2659
  %2661 = vmatprep.subr.mxu0 0.0
  %v2662 = vand.u32 %v115, 4294901760
  %v2663 = vsub.f32 %v115, %v2662
  %2664 = vmatpush1.msra.mxu0 %v2663
  %2665 = vmatprep.subr.mxu0 0.0
  %v2666 = vand.u32 %v116, 4294901760
  %v2667 = vsub.f32 %v116, %v2666
  %2668 = vmatpush1.msra.mxu0 %v2667
  %2669 = vmatprep.subr.mxu0 0.0
  %v2670 = vand.u32 %v117, 4294901760
  %v2671 = vsub.f32 %v117, %v2670
  %2672 = vmatpush1.msra.mxu0 %v2671
  %2673 = vmatprep.subr.mxu0 0.0
  %v2674 = vand.u32 %v118, 4294901760
  %v2675 = vsub.f32 %v118, %v2674
  %2676 = vmatpush1.msra.mxu0 %v2675
  %2677 = vmatprep.subr.mxu0 0.0
  %v2678 = vand.u32 %v119, 4294901760
  %v2679 = vsub.f32 %v119, %v2678
  %2680 = vmatpush1.msra.mxu0 %v2679
  %2681 = vmatprep.subr.mxu0 0.0
  %v2682 = vand.u32 %v120, 4294901760
  %v2683 = vsub.f32 %v120, %v2682
  %2684 = vmatpush1.msra.mxu0 %v2683
  %2685 = vmatprep.subr.mxu0 0.0
  %v2686 = vand.u32 %v121, 4294901760
  %v2687 = vsub.f32 %v121, %v2686
  %2688 = vmatpush1.msra.mxu0 %v2687
  %2689 = vmatprep.subr.mxu0 0.0
  %v2690 = vand.u32 %v122, 4294901760
  %v2691 = vsub.f32 %v122, %v2690
  %2692 = vmatpush1.msra.mxu0 %v2691
  %2693 = vmatprep.subr.mxu0 0.0
  %v2694 = vand.u32 %v123, 4294901760
  %v2695 = vsub.f32 %v123, %v2694
  %2696 = vmatpush1.msra.mxu0 %v2695
  %2697 = vmatprep.subr.mxu0 0.0
  %v2698 = vand.u32 %v124, 4294901760
  %v2699 = vsub.f32 %v124, %v2698
  %2700 = vmatpush1.msra.mxu0 %v2699
  %2701 = vmatprep.subr.mxu0 0.0
  %v2702 = vand.u32 %v125, 4294901760
  %v2703 = vsub.f32 %v125, %v2702
  %2704 = vmatpush1.msra.mxu0 %v2703
  %2705 = vmatprep.subr.mxu0 0.0
  %v2706 = vand.u32 %v126, 4294901760
  %v2707 = vsub.f32 %v126, %v2706
  %2708 = vmatpush1.msra.mxu0 %v2707
  %2709 = vmatprep.subr.mxu0 0.0
  %v2710 = vand.u32 %v127, 4294901760
  %v2711 = vsub.f32 %v127, %v2710
  %2712 = vmatpush1.msra.mxu0 %v2711
  %2713 = vmatprep.subr.mxu0 0.0
  %v2714 = vand.u32 %v128, 4294901760
  %v2715 = vsub.f32 %v128, %v2714
  %2716 = vmatpush1.msra.mxu0 %v2715
  %2717 = vmatprep.subr.mxu0 0.0
  %v2718 = vand.u32 %v129, 4294901760
  %v2719 = vsub.f32 %v129, %v2718
  %2720 = vmatpush1.msra.mxu0 %v2719
  %2721 = vmatprep.subr.mxu0 0.0
  %v2722 = vand.u32 %v130, 4294901760
  %v2723 = vsub.f32 %v130, %v2722
  %2724 = vmatpush1.msra.mxu0 %v2723
  %2725 = vmatprep.subr.mxu0 0.0
  %v2726 = vand.u32 %v131, 4294901760
  %v2727 = vsub.f32 %v131, %v2726
  %2728 = vmatpush1.msra.mxu0 %v2727
  %2729 = vmatprep.subr.mxu0 0.0
  %v2730 = vand.u32 %v132, 4294901760
  %v2731 = vsub.f32 %v132, %v2730
  %2732 = vmatpush1.msra.mxu0 %v2731
  %2733 = vmatprep.subr.mxu0 0.0
  %v2734 = vand.u32 %v133, 4294901760
  %v2735 = vsub.f32 %v133, %v2734
  %2736 = vmatpush1.msra.mxu0 %v2735
  %2737 = vmatprep.subr.mxu0 0.0
  %v2738 = vand.u32 %v134, 4294901760
  %v2739 = vsub.f32 %v134, %v2738
  %2740 = vmatpush1.msra.mxu0 %v2739
  %2741 = vmatprep.subr.mxu0 0.0
  %v2742 = vand.u32 %v135, 4294901760
  %v2743 = vsub.f32 %v135, %v2742
  %2744 = vmatpush1.msra.mxu0 %v2743
  %2745 = vmatprep.subr.mxu0 0.0
  %v2746 = vand.u32 %v136, 4294901760
  %v2747 = vsub.f32 %v136, %v2746
  %2748 = vmatpush1.msra.mxu0 %v2747
  %2749 = vmatprep.subr.mxu0 0.0
  %v2750 = vand.u32 %v137, 4294901760
  %v2751 = vsub.f32 %v137, %v2750
  %2752 = vmatpush1.msra.mxu0 %v2751
  %2753 = vmatprep.subr.mxu0 0.0
  %v2754 = vand.u32 %v138, 4294901760
  %v2755 = vsub.f32 %v138, %v2754
  %2756 = vmatpush1.msra.mxu0 %v2755
  %2757 = vmatprep.subr.mxu0 0.0
  %v2758 = vand.u32 %v139, 4294901760
  %v2759 = vsub.f32 %v139, %v2758
  %2760 = vmatpush1.msra.mxu0 %v2759
  %2761 = vmatprep.subr.mxu0 0.0
  %v2762 = vand.u32 %v140, 4294901760
  %v2763 = vsub.f32 %v140, %v2762
  %2764 = vmatpush1.msra.mxu0 %v2763
  %2765 = vmatprep.subr.mxu0 0.0
  %v2766 = vand.u32 %v141, 4294901760
  %v2767 = vsub.f32 %v141, %v2766
  %2768 = vmatpush1.msra.mxu0 %v2767
  %2769 = vmatprep.subr.mxu0 0.0
  %v2770 = vand.u32 %v142, 4294901760
  %v2771 = vsub.f32 %v142, %v2770
  %2772 = vmatpush1.msra.mxu0 %v2771
  %v2773 = vand.u32 %v20, 4294901760
  %v2774 = vsub.f32 %v20, %v2773
  %2775 = vmatprep.mubr.f32.mxu0 %v2774
  %v2776 = vand.u32 %v19, 4294901760
  %v2777 = vsub.f32 %v19, %v2776
  %2778 = vmatmul.mubr.f32.gmra.mrb[0].mxu0 %v2777
  %v2779 = vpop.f32.mrb[0].mxu0
  %v2780 = vadd.f32 %v2621, %v2779
  %v2781 = vpop.f32.mrb[0].mxu0
  %v2782 = vand.u32 %v28, 4294901760
  %v2783 = vsub.f32 %v28, %v2782
  %2784 = vmatprep.mubr.f32.mxu0 %v2783
  %v2785 = vand.u32 %v27, 4294901760
  %v2786 = vsub.f32 %v27, %v2785
  %2787 = vmatmul.mubr.f32.gmra.mrb[0].mxu0 %v2786
  %v2788 = vpop.f32.mrb[0].mxu0
  %v2789 = vadd.f32 %v2628, %v2788
  %v2790 = vpop.f32.mrb[0].mxu0
  %v2791 = vand.u32 %v36, 4294901760
  %v2792 = vsub.f32 %v36, %v2791
  %2793 = vmatprep.mubr.f32.mxu0 %v2792
  %v2794 = vand.u32 %v35, 4294901760
  %v2795 = vsub.f32 %v35, %v2794
  %2796 = vmatmul.mubr.f32.gmra.mrb[0].mxu0 %v2795
  %v2797 = vpop.f32.mrb[0].mxu0
  %v2798 = vadd.f32 %v2635, %v2797
  %v2799 = vpop.f32.mrb[0].mxu0
  %v2800 = vand.u32 %v44, 4294901760
  %v2801 = vsub.f32 %v44, %v2800
  %2802 = vmatprep.mubr.f32.mxu0 %v2801
  %v2803 = vand.u32 %v43, 4294901760
  %v2804 = vsub.f32 %v43, %v2803
  %2805 = vmatmul.mubr.f32.gmra.mrb[0].mxu0 %v2804
  %v2806 = vpop.f32.mrb[0].mxu0
  %v2807 = vadd.f32 %v2642, %v2806
  %v2808 = vpop.f32.mrb[0].mxu0
  %2809 = vdwg.mxu0
  %2810 = vmatprep.subr.mxu0 0.0
  %v2811 = vand.u32 %v111, 4294901760
  %2812 = vmatpush1.msra.mxu0 %v2811
  %2813 = vmatprep.subr.mxu0 0.0
  %v2814 = vand.u32 %v112, 4294901760
  %2815 = vmatpush1.msra.mxu0 %v2814
  %2816 = vmatprep.subr.mxu0 0.0
  %v2817 = vand.u32 %v113, 4294901760
  %2818 = vmatpush1.msra.mxu0 %v2817
  %2819 = vmatprep.subr.mxu0 0.0
  %v2820 = vand.u32 %v114, 4294901760
  %2821 = vmatpush1.msra.mxu0 %v2820
  %2822 = vmatprep.subr.mxu0 0.0
  %v2823 = vand.u32 %v115, 4294901760
  %2824 = vmatpush1.msra.mxu0 %v2823
  %2825 = vmatprep.subr.mxu0 0.0
  %v2826 = vand.u32 %v116, 4294901760
  %2827 = vmatpush1.msra.mxu0 %v2826
  %2828 = vmatprep.subr.mxu0 0.0
  %v2829 = vand.u32 %v117, 4294901760
  %2830 = vmatpush1.msra.mxu0 %v2829
  %2831 = vmatprep.subr.mxu0 0.0
  %v2832 = vand.u32 %v118, 4294901760
  %2833 = vmatpush1.msra.mxu0 %v2832
  %2834 = vmatprep.subr.mxu0 0.0
  %v2835 = vand.u32 %v119, 4294901760
  %2836 = vmatpush1.msra.mxu0 %v2835
  %2837 = vmatprep.subr.mxu0 0.0
  %v2838 = vand.u32 %v120, 4294901760
  %2839 = vmatpush1.msra.mxu0 %v2838
  %2840 = vmatprep.subr.mxu0 0.0
  %v2841 = vand.u32 %v121, 4294901760
  %2842 = vmatpush1.msra.mxu0 %v2841
  %2843 = vmatprep.subr.mxu0 0.0
  %v2844 = vand.u32 %v122, 4294901760
  %2845 = vmatpush1.msra.mxu0 %v2844
  %2846 = vmatprep.subr.mxu0 0.0
  %v2847 = vand.u32 %v123, 4294901760
  %2848 = vmatpush1.msra.mxu0 %v2847
  %2849 = vmatprep.subr.mxu0 0.0
  %v2850 = vand.u32 %v124, 4294901760
  %2851 = vmatpush1.msra.mxu0 %v2850
  %2852 = vmatprep.subr.mxu0 0.0
  %v2853 = vand.u32 %v125, 4294901760
  %2854 = vmatpush1.msra.mxu0 %v2853
  %2855 = vmatprep.subr.mxu0 0.0
  %v2856 = vand.u32 %v126, 4294901760
  %2857 = vmatpush1.msra.mxu0 %v2856
  %2858 = vmatprep.subr.mxu0 0.0
  %v2859 = vand.u32 %v127, 4294901760
  %2860 = vmatpush1.msra.mxu0 %v2859
  %2861 = vmatprep.subr.mxu0 0.0
  %v2862 = vand.u32 %v128, 4294901760
  %2863 = vmatpush1.msra.mxu0 %v2862
  %2864 = vmatprep.subr.mxu0 0.0
  %v2865 = vand.u32 %v129, 4294901760
  %2866 = vmatpush1.msra.mxu0 %v2865
  %2867 = vmatprep.subr.mxu0 0.0
  %v2868 = vand.u32 %v130, 4294901760
  %2869 = vmatpush1.msra.mxu0 %v2868
  %2870 = vmatprep.subr.mxu0 0.0
  %v2871 = vand.u32 %v131, 4294901760
  %2872 = vmatpush1.msra.mxu0 %v2871
  %2873 = vmatprep.subr.mxu0 0.0
  %v2874 = vand.u32 %v132, 4294901760
  %2875 = vmatpush1.msra.mxu0 %v2874
  %2876 = vmatprep.subr.mxu0 0.0
  %v2877 = vand.u32 %v133, 4294901760
  %2878 = vmatpush1.msra.mxu0 %v2877
  %2879 = vmatprep.subr.mxu0 0.0
  %v2880 = vand.u32 %v134, 4294901760
  %2881 = vmatpush1.msra.mxu0 %v2880
  %2882 = vmatprep.subr.mxu0 0.0
  %v2883 = vand.u32 %v135, 4294901760
  %2884 = vmatpush1.msra.mxu0 %v2883
  %2885 = vmatprep.subr.mxu0 0.0
  %v2886 = vand.u32 %v136, 4294901760
  %2887 = vmatpush1.msra.mxu0 %v2886
  %2888 = vmatprep.subr.mxu0 0.0
  %v2889 = vand.u32 %v137, 4294901760
  %2890 = vmatpush1.msra.mxu0 %v2889
  %2891 = vmatprep.subr.mxu0 0.0
  %v2892 = vand.u32 %v138, 4294901760
  %2893 = vmatpush1.msra.mxu0 %v2892
  %2894 = vmatprep.subr.mxu0 0.0
  %v2895 = vand.u32 %v139, 4294901760
  %2896 = vmatpush1.msra.mxu0 %v2895
  %2897 = vmatprep.subr.mxu0 0.0
  %v2898 = vand.u32 %v140, 4294901760
  %2899 = vmatpush1.msra.mxu0 %v2898
  %2900 = vmatprep.subr.mxu0 0.0
  %v2901 = vand.u32 %v141, 4294901760
  %2902 = vmatpush1.msra.mxu0 %v2901
  %2903 = vmatprep.subr.mxu0 0.0
  %v2904 = vand.u32 %v142, 4294901760
  %2905 = vmatpush1.msra.mxu0 %v2904
  %v2906 = vand.u32 %v20, 4294901760
  %v2907 = vsub.f32 %v20, %v2906
  %v2908 = vand.u32 %v2907, 4294901760
  %2909 = vmatprep.mubr.f32.mxu0 %v2908
  %v2910 = vand.u32 %v19, 4294901760
  %v2911 = vsub.f32 %v19, %v2910
  %v2912 = vand.u32 %v2911, 4294901760
  %2913 = vmatmul.mubr.f32.gmra.mrb[0].mxu0 %v2912
  %v2914 = vpop.f32.mrb[0].mxu0
  %v2915 = vadd.f32 %v2780, %v2914
  %v2916 = vpop.f32.mrb[0].mxu0
  %v2917 = vand.u32 %v28, 4294901760
  %v2918 = vsub.f32 %v28, %v2917
  %v2919 = vand.u32 %v2918, 4294901760
  %2920 = vmatprep.mubr.f32.mxu0 %v2919
  %v2921 = vand.u32 %v27, 4294901760
  %v2922 = vsub.f32 %v27, %v2921
  %v2923 = vand.u32 %v2922, 4294901760
  %2924 = vmatmul.mubr.f32.gmra.mrb[0].mxu0 %v2923
  %v2925 = vpop.f32.mrb[0].mxu0
  %v2926 = vadd.f32 %v2789, %v2925
  %v2927 = vpop.f32.mrb[0].mxu0
  %v2928 = vand.u32 %v36, 4294901760
  %v2929 = vsub.f32 %v36, %v2928
  %v2930 = vand.u32 %v2929, 4294901760
  %2931 = vmatprep.mubr.f32.mxu0 %v2930
  %v2932 = vand.u32 %v35, 4294901760
  %v2933 = vsub.f32 %v35, %v2932
  %v2934 = vand.u32 %v2933, 4294901760
  %2935 = vmatmul.mubr.f32.gmra.mrb[0].mxu0 %v2934
  %v2936 = vpop.f32.mrb[0].mxu0
  %v2937 = vadd.f32 %v2798, %v2936
  %v2938 = vpop.f32.mrb[0].mxu0
  %v2939 = vand.u32 %v44, 4294901760
  %v2940 = vsub.f32 %v44, %v2939
  %v2941 = vand.u32 %v2940, 4294901760
  %2942 = vmatprep.mubr.f32.mxu0 %v2941
  %v2943 = vand.u32 %v43, 4294901760
  %v2944 = vsub.f32 %v43, %v2943
  %v2945 = vand.u32 %v2944, 4294901760
  %2946 = vmatmul.mubr.f32.gmra.mrb[0].mxu0 %v2945
  %v2947 = vpop.f32.mrb[0].mxu0
  %v2948 = vadd.f32 %v2807, %v2947
  %v2949 = vpop.f32.mrb[0].mxu0
  %2950 = vdwg.mxu0
  %2951 = vmatprep.subr.mxu0 0.0
  %v2952 = vand.u32 %v111, 4294901760
  %v2953 = vsub.f32 %v111, %v2952
  %v2954 = vand.u32 %v2953, 4294901760
  %2955 = vmatpush1.msra.mxu0 %v2954
  %2956 = vmatprep.subr.mxu0 0.0
  %v2957 = vand.u32 %v112, 4294901760
  %v2958 = vsub.f32 %v112, %v2957
  %v2959 = vand.u32 %v2958, 4294901760
  %2960 = vmatpush1.msra.mxu0 %v2959
  %2961 = vmatprep.subr.mxu0 0.0
  %v2962 = vand.u32 %v113, 4294901760
  %v2963 = vsub.f32 %v113, %v2962
  %v2964 = vand.u32 %v2963, 4294901760
  %2965 = vmatpush1.msra.mxu0 %v2964
  %2966 = vmatprep.subr.mxu0 0.0
  %v2967 = vand.u32 %v114, 4294901760
  %v2968 = vsub.f32 %v114, %v2967
  %v2969 = vand.u32 %v2968, 4294901760
  %2970 = vmatpush1.msra.mxu0 %v2969
  %2971 = vmatprep.subr.mxu0 0.0
  %v2972 = vand.u32 %v115, 4294901760
  %v2973 = vsub.f32 %v115, %v2972
  %v2974 = vand.u32 %v2973, 4294901760
  %2975 = vmatpush1.msra.mxu0 %v2974
  %2976 = vmatprep.subr.mxu0 0.0
  %v2977 = vand.u32 %v116, 4294901760
  %v2978 = vsub.f32 %v116, %v2977
  %v2979 = vand.u32 %v2978, 4294901760
  %2980 = vmatpush1.msra.mxu0 %v2979
  %2981 = vmatprep.subr.mxu0 0.0
  %v2982 = vand.u32 %v117, 4294901760
  %v2983 = vsub.f32 %v117, %v2982
  %v2984 = vand.u32 %v2983, 4294901760
  %2985 = vmatpush1.msra.mxu0 %v2984
  %2986 = vmatprep.subr.mxu0 0.0
  %v2987 = vand.u32 %v118, 4294901760
  %v2988 = vsub.f32 %v118, %v2987
  %v2989 = vand.u32 %v2988, 4294901760
  %2990 = vmatpush1.msra.mxu0 %v2989
  %2991 = vmatprep.subr.mxu0 0.0
  %v2992 = vand.u32 %v119, 4294901760
  %v2993 = vsub.f32 %v119, %v2992
  %v2994 = vand.u32 %v2993, 4294901760
  %2995 = vmatpush1.msra.mxu0 %v2994
  %2996 = vmatprep.subr.mxu0 0.0
  %v2997 = vand.u32 %v120, 4294901760
  %v2998 = vsub.f32 %v120, %v2997
  %v2999 = vand.u32 %v2998, 4294901760
  %3000 = vmatpush1.msra.mxu0 %v2999
  %3001 = vmatprep.subr.mxu0 0.0
  %v3002 = vand.u32 %v121, 4294901760
  %v3003 = vsub.f32 %v121, %v3002
  %v3004 = vand.u32 %v3003, 4294901760
  %3005 = vmatpush1.msra.mxu0 %v3004
  %3006 = vmatprep.subr.mxu0 0.0
  %v3007 = vand.u32 %v122, 4294901760
  %v3008 = vsub.f32 %v122, %v3007
  %v3009 = vand.u32 %v3008, 4294901760
  %3010 = vmatpush1.msra.mxu0 %v3009
  %3011 = vmatprep.subr.mxu0 0.0
  %v3012 = vand.u32 %v123, 4294901760
  %v3013 = vsub.f32 %v123, %v3012
  %v3014 = vand.u32 %v3013, 4294901760
  %3015 = vmatpush1.msra.mxu0 %v3014
  %3016 = vmatprep.subr.mxu0 0.0
  %v3017 = vand.u32 %v124, 4294901760
  %v3018 = vsub.f32 %v124, %v3017
  %v3019 = vand.u32 %v3018, 4294901760
  %3020 = vmatpush1.msra.mxu0 %v3019
  %3021 = vmatprep.subr.mxu0 0.0
  %v3022 = vand.u32 %v125, 4294901760
  %v3023 = vsub.f32 %v125, %v3022
  %v3024 = vand.u32 %v3023, 4294901760
  %3025 = vmatpush1.msra.mxu0 %v3024
  %3026 = vmatprep.subr.mxu0 0.0
  %v3027 = vand.u32 %v126, 4294901760
  %v3028 = vsub.f32 %v126, %v3027
  %v3029 = vand.u32 %v3028, 4294901760
  %3030 = vmatpush1.msra.mxu0 %v3029
  %3031 = vmatprep.subr.mxu0 0.0
  %v3032 = vand.u32 %v127, 4294901760
  %v3033 = vsub.f32 %v127, %v3032
  %v3034 = vand.u32 %v3033, 4294901760
  %3035 = vmatpush1.msra.mxu0 %v3034
  %3036 = vmatprep.subr.mxu0 0.0
  %v3037 = vand.u32 %v128, 4294901760
  %v3038 = vsub.f32 %v128, %v3037
  %v3039 = vand.u32 %v3038, 4294901760
  %3040 = vmatpush1.msra.mxu0 %v3039
  %3041 = vmatprep.subr.mxu0 0.0
  %v3042 = vand.u32 %v129, 4294901760
  %v3043 = vsub.f32 %v129, %v3042
  %v3044 = vand.u32 %v3043, 4294901760
  %3045 = vmatpush1.msra.mxu0 %v3044
  %3046 = vmatprep.subr.mxu0 0.0
  %v3047 = vand.u32 %v130, 4294901760
  %v3048 = vsub.f32 %v130, %v3047
  %v3049 = vand.u32 %v3048, 4294901760
  %3050 = vmatpush1.msra.mxu0 %v3049
  %3051 = vmatprep.subr.mxu0 0.0
  %v3052 = vand.u32 %v131, 4294901760
  %v3053 = vsub.f32 %v131, %v3052
  %v3054 = vand.u32 %v3053, 4294901760
  %3055 = vmatpush1.msra.mxu0 %v3054
  %3056 = vmatprep.subr.mxu0 0.0
  %v3057 = vand.u32 %v132, 4294901760
  %v3058 = vsub.f32 %v132, %v3057
  %v3059 = vand.u32 %v3058, 4294901760
  %3060 = vmatpush1.msra.mxu0 %v3059
  %3061 = vmatprep.subr.mxu0 0.0
  %v3062 = vand.u32 %v133, 4294901760
  %v3063 = vsub.f32 %v133, %v3062
  %v3064 = vand.u32 %v3063, 4294901760
  %3065 = vmatpush1.msra.mxu0 %v3064
  %3066 = vmatprep.subr.mxu0 0.0
  %v3067 = vand.u32 %v134, 4294901760
  %v3068 = vsub.f32 %v134, %v3067
  %v3069 = vand.u32 %v3068, 4294901760
  %3070 = vmatpush1.msra.mxu0 %v3069
  %3071 = vmatprep.subr.mxu0 0.0
  %v3072 = vand.u32 %v135, 4294901760
  %v3073 = vsub.f32 %v135, %v3072
  %v3074 = vand.u32 %v3073, 4294901760
  %3075 = vmatpush1.msra.mxu0 %v3074
  %3076 = vmatprep.subr.mxu0 0.0
  %v3077 = vand.u32 %v136, 4294901760
  %v3078 = vsub.f32 %v136, %v3077
  %v3079 = vand.u32 %v3078, 4294901760
  %3080 = vmatpush1.msra.mxu0 %v3079
  %3081 = vmatprep.subr.mxu0 0.0
  %v3082 = vand.u32 %v137, 4294901760
  %v3083 = vsub.f32 %v137, %v3082
  %v3084 = vand.u32 %v3083, 4294901760
  %3085 = vmatpush1.msra.mxu0 %v3084
  %3086 = vmatprep.subr.mxu0 0.0
  %v3087 = vand.u32 %v138, 4294901760
  %v3088 = vsub.f32 %v138, %v3087
  %v3089 = vand.u32 %v3088, 4294901760
  %3090 = vmatpush1.msra.mxu0 %v3089
  %3091 = vmatprep.subr.mxu0 0.0
  %v3092 = vand.u32 %v139, 4294901760
  %v3093 = vsub.f32 %v139, %v3092
  %v3094 = vand.u32 %v3093, 4294901760
  %3095 = vmatpush1.msra.mxu0 %v3094
  %3096 = vmatprep.subr.mxu0 0.0
  %v3097 = vand.u32 %v140, 4294901760
  %v3098 = vsub.f32 %v140, %v3097
  %v3099 = vand.u32 %v3098, 4294901760
  %3100 = vmatpush1.msra.mxu0 %v3099
  %3101 = vmatprep.subr.mxu0 0.0
  %v3102 = vand.u32 %v141, 4294901760
  %v3103 = vsub.f32 %v141, %v3102
  %v3104 = vand.u32 %v3103, 4294901760
  %3105 = vmatpush1.msra.mxu0 %v3104
  %3106 = vmatprep.subr.mxu0 0.0
  %v3107 = vand.u32 %v142, 4294901760
  %v3108 = vsub.f32 %v142, %v3107
  %v3109 = vand.u32 %v3108, 4294901760
  %3110 = vmatpush1.msra.mxu0 %v3109
  %v3111 = vand.u32 %v20, 4294901760
  %3112 = vmatprep.mubr.f32.mxu0 %v3111
  %v3113 = vand.u32 %v19, 4294901760
  %3114 = vmatmul.mubr.f32.gmra.mrb[0].mxu0 %v3113
  %v3115 = vpop.f32.mrb[0].mxu0
  %v3116 = vadd.f32 %v2915, %v3115
  %v3117 = vpop.f32.mrb[0].mxu0
  %v3118 = vand.u32 %v28, 4294901760
  %3119 = vmatprep.mubr.f32.mxu0 %v3118
  %v3120 = vand.u32 %v27, 4294901760
  %3121 = vmatmul.mubr.f32.gmra.mrb[0].mxu0 %v3120
  %v3122 = vpop.f32.mrb[0].mxu0
  %v3123 = vadd.f32 %v2926, %v3122
  %v3124 = vpop.f32.mrb[0].mxu0
  %v3125 = vand.u32 %v36, 4294901760
  %3126 = vmatprep.mubr.f32.mxu0 %v3125
  %v3127 = vand.u32 %v35, 4294901760
  %3128 = vmatmul.mubr.f32.gmra.mrb[0].mxu0 %v3127
  %v3129 = vpop.f32.mrb[0].mxu0
  %v3130 = vadd.f32 %v2937, %v3129
  %v3131 = vpop.f32.mrb[0].mxu0
  %v3132 = vand.u32 %v44, 4294901760
  %3133 = vmatprep.mubr.f32.mxu0 %v3132
  %v3134 = vand.u32 %v43, 4294901760
  %3135 = vmatmul.mubr.f32.gmra.mrb[0].mxu0 %v3134
  %v3136 = vpop.f32.mrb[0].mxu0
  %v3137 = vadd.f32 %v2948, %v3136
  %v3138 = vpop.f32.mrb[0].mxu0
  %3139 = vdwg.mxu0
  %3140 = vmatprep.subr.mxu0 0.0
  %v3141 = vand.u32 %v111, 4294901760
  %3142 = vmatpush1.msra.mxu0 %v3141
  %3143 = vmatprep.subr.mxu0 0.0
  %v3144 = vand.u32 %v112, 4294901760
  %3145 = vmatpush1.msra.mxu0 %v3144
  %3146 = vmatprep.subr.mxu0 0.0
  %v3147 = vand.u32 %v113, 4294901760
  %3148 = vmatpush1.msra.mxu0 %v3147
  %3149 = vmatprep.subr.mxu0 0.0
  %v3150 = vand.u32 %v114, 4294901760
  %3151 = vmatpush1.msra.mxu0 %v3150
  %3152 = vmatprep.subr.mxu0 0.0
  %v3153 = vand.u32 %v115, 4294901760
  %3154 = vmatpush1.msra.mxu0 %v3153
  %3155 = vmatprep.subr.mxu0 0.0
  %v3156 = vand.u32 %v116, 4294901760
  %3157 = vmatpush1.msra.mxu0 %v3156
  %3158 = vmatprep.subr.mxu0 0.0
  %v3159 = vand.u32 %v117, 4294901760
  %3160 = vmatpush1.msra.mxu0 %v3159
  %3161 = vmatprep.subr.mxu0 0.0
  %v3162 = vand.u32 %v118, 4294901760
  %3163 = vmatpush1.msra.mxu0 %v3162
  %3164 = vmatprep.subr.mxu0 0.0
  %v3165 = vand.u32 %v119, 4294901760
  %3166 = vmatpush1.msra.mxu0 %v3165
  %3167 = vmatprep.subr.mxu0 0.0
  %v3168 = vand.u32 %v120, 4294901760
  %3169 = vmatpush1.msra.mxu0 %v3168
  %3170 = vmatprep.subr.mxu0 0.0
  %v3171 = vand.u32 %v121, 4294901760
  %3172 = vmatpush1.msra.mxu0 %v3171
  %3173 = vmatprep.subr.mxu0 0.0
  %v3174 = vand.u32 %v122, 4294901760
  %3175 = vmatpush1.msra.mxu0 %v3174
  %3176 = vmatprep.subr.mxu0 0.0
  %v3177 = vand.u32 %v123, 4294901760
  %3178 = vmatpush1.msra.mxu0 %v3177
  %3179 = vmatprep.subr.mxu0 0.0
  %v3180 = vand.u32 %v124, 4294901760
  %3181 = vmatpush1.msra.mxu0 %v3180
  %3182 = vmatprep.subr.mxu0 0.0
  %v3183 = vand.u32 %v125, 4294901760
  %3184 = vmatpush1.msra.mxu0 %v3183
  %3185 = vmatprep.subr.mxu0 0.0
  %v3186 = vand.u32 %v126, 4294901760
  %3187 = vmatpush1.msra.mxu0 %v3186
  %3188 = vmatprep.subr.mxu0 0.0
  %v3189 = vand.u32 %v127, 4294901760
  %3190 = vmatpush1.msra.mxu0 %v3189
  %3191 = vmatprep.subr.mxu0 0.0
  %v3192 = vand.u32 %v128, 4294901760
  %3193 = vmatpush1.msra.mxu0 %v3192
  %3194 = vmatprep.subr.mxu0 0.0
  %v3195 = vand.u32 %v129, 4294901760
  %3196 = vmatpush1.msra.mxu0 %v3195
  %3197 = vmatprep.subr.mxu0 0.0
  %v3198 = vand.u32 %v130, 4294901760
  %3199 = vmatpush1.msra.mxu0 %v3198
  %3200 = vmatprep.subr.mxu0 0.0
  %v3201 = vand.u32 %v131, 4294901760
  %3202 = vmatpush1.msra.mxu0 %v3201
  %3203 = vmatprep.subr.mxu0 0.0
  %v3204 = vand.u32 %v132, 4294901760
  %3205 = vmatpush1.msra.mxu0 %v3204
  %3206 = vmatprep.subr.mxu0 0.0
  %v3207 = vand.u32 %v133, 4294901760
  %3208 = vmatpush1.msra.mxu0 %v3207
  %3209 = vmatprep.subr.mxu0 0.0
  %v3210 = vand.u32 %v134, 4294901760
  %3211 = vmatpush1.msra.mxu0 %v3210
  %3212 = vmatprep.subr.mxu0 0.0
  %v3213 = vand.u32 %v135, 4294901760
  %3214 = vmatpush1.msra.mxu0 %v3213
  %3215 = vmatprep.subr.mxu0 0.0
  %v3216 = vand.u32 %v136, 4294901760
  %3217 = vmatpush1.msra.mxu0 %v3216
  %3218 = vmatprep.subr.mxu0 0.0
  %v3219 = vand.u32 %v137, 4294901760
  %3220 = vmatpush1.msra.mxu0 %v3219
  %3221 = vmatprep.subr.mxu0 0.0
  %v3222 = vand.u32 %v138, 4294901760
  %3223 = vmatpush1.msra.mxu0 %v3222
  %3224 = vmatprep.subr.mxu0 0.0
  %v3225 = vand.u32 %v139, 4294901760
  %3226 = vmatpush1.msra.mxu0 %v3225
  %3227 = vmatprep.subr.mxu0 0.0
  %v3228 = vand.u32 %v140, 4294901760
  %3229 = vmatpush1.msra.mxu0 %v3228
  %3230 = vmatprep.subr.mxu0 0.0
  %v3231 = vand.u32 %v141, 4294901760
  %3232 = vmatpush1.msra.mxu0 %v3231
  %3233 = vmatprep.subr.mxu0 0.0
  %v3234 = vand.u32 %v142, 4294901760
  %3235 = vmatpush1.msra.mxu0 %v3234
  %v3236 = vand.u32 %v20, 4294901760
  %3237 = vmatprep.mubr.f32.mxu0 %v3236
  %v3238 = vand.u32 %v19, 4294901760
  %3239 = vmatmul.mubr.f32.gmra.mrb[0].mxu0 %v3238
  %v3240 = vpop.f32.mrb[0].mxu0
  %v3241 = vadd.f32 %v3116, %v3240
  %v3242 = vpop.f32.mrb[0].mxu0
  %v3243 = vand.u32 %v28, 4294901760
  %3244 = vmatprep.mubr.f32.mxu0 %v3243
  %v3245 = vand.u32 %v27, 4294901760
  %3246 = vmatmul.mubr.f32.gmra.mrb[0].mxu0 %v3245
  %v3247 = vpop.f32.mrb[0].mxu0
  %v3248 = vadd.f32 %v3123, %v3247
  %v3249 = vpop.f32.mrb[0].mxu0
  %v3250 = vand.u32 %v36, 4294901760
  %3251 = vmatprep.mubr.f32.mxu0 %v3250
  %v3252 = vand.u32 %v35, 4294901760
  %3253 = vmatmul.mubr.f32.gmra.mrb[0].mxu0 %v3252
  %v3254 = vpop.f32.mrb[0].mxu0
  %v3255 = vadd.f32 %v3130, %v3254
  %v3256 = vpop.f32.mrb[0].mxu0
  %v3257 = vand.u32 %v44, 4294901760
  %3258 = vmatprep.mubr.f32.mxu0 %v3257
  %v3259 = vand.u32 %v43, 4294901760
  %3260 = vmatmul.mubr.f32.gmra.mrb[0].mxu0 %v3259
  %v3261 = vpop.f32.mrb[0].mxu0
  %v3262 = vadd.f32 %v3137, %v3261
  %v3263 = vpop.f32.mrb[0].mxu0
  %3264 = vdwg.mxu0
  %3265 = vmatprep.subr.mxu0 0.0
  %v3266 = vand.u32 %v143, 4294901760
  %3267 = vmatpush1.msra.mxu0 %v3266
  %3268 = vmatprep.subr.mxu0 0.0
  %v3269 = vand.u32 %v144, 4294901760
  %3270 = vmatpush1.msra.mxu0 %v3269
  %3271 = vmatprep.subr.mxu0 0.0
  %v3272 = vand.u32 %v145, 4294901760
  %3273 = vmatpush1.msra.mxu0 %v3272
  %3274 = vmatprep.subr.mxu0 0.0
  %v3275 = vand.u32 %v146, 4294901760
  %3276 = vmatpush1.msra.mxu0 %v3275
  %3277 = vmatprep.subr.mxu0 0.0
  %v3278 = vand.u32 %v147, 4294901760
  %3279 = vmatpush1.msra.mxu0 %v3278
  %3280 = vmatprep.subr.mxu0 0.0
  %v3281 = vand.u32 %v148, 4294901760
  %3282 = vmatpush1.msra.mxu0 %v3281
  %3283 = vmatprep.subr.mxu0 0.0
  %v3284 = vand.u32 %v149, 4294901760
  %3285 = vmatpush1.msra.mxu0 %v3284
  %3286 = vmatprep.subr.mxu0 0.0
  %v3287 = vand.u32 %v150, 4294901760
  %3288 = vmatpush1.msra.mxu0 %v3287
  %3289 = vmatprep.subr.mxu0 0.0
  %v3290 = vand.u32 %v151, 4294901760
  %3291 = vmatpush1.msra.mxu0 %v3290
  %3292 = vmatprep.subr.mxu0 0.0
  %v3293 = vand.u32 %v152, 4294901760
  %3294 = vmatpush1.msra.mxu0 %v3293
  %3295 = vmatprep.subr.mxu0 0.0
  %v3296 = vand.u32 %v153, 4294901760
  %3297 = vmatpush1.msra.mxu0 %v3296
  %3298 = vmatprep.subr.mxu0 0.0
  %v3299 = vand.u32 %v154, 4294901760
  %3300 = vmatpush1.msra.mxu0 %v3299
  %3301 = vmatprep.subr.mxu0 0.0
  %v3302 = vand.u32 %v155, 4294901760
  %3303 = vmatpush1.msra.mxu0 %v3302
  %3304 = vmatprep.subr.mxu0 0.0
  %v3305 = vand.u32 %v156, 4294901760
  %3306 = vmatpush1.msra.mxu0 %v3305
  %3307 = vmatprep.subr.mxu0 0.0
  %v3308 = vand.u32 %v157, 4294901760
  %3309 = vmatpush1.msra.mxu0 %v3308
  %3310 = vmatprep.subr.mxu0 0.0
  %v3311 = vand.u32 %v158, 4294901760
  %3312 = vmatpush1.msra.mxu0 %v3311
  %3313 = vmatprep.subr.mxu0 0.0
  %v3314 = vand.u32 %v159, 4294901760
  %3315 = vmatpush1.msra.mxu0 %v3314
  %3316 = vmatprep.subr.mxu0 0.0
  %v3317 = vand.u32 %v160, 4294901760
  %3318 = vmatpush1.msra.mxu0 %v3317
  %3319 = vmatprep.subr.mxu0 0.0
  %v3320 = vand.u32 %v161, 4294901760
  %3321 = vmatpush1.msra.mxu0 %v3320
  %3322 = vmatprep.subr.mxu0 0.0
  %v3323 = vand.u32 %v162, 4294901760
  %3324 = vmatpush1.msra.mxu0 %v3323
  %3325 = vmatprep.subr.mxu0 0.0
  %v3326 = vand.u32 %v163, 4294901760
  %3327 = vmatpush1.msra.mxu0 %v3326
  %3328 = vmatprep.subr.mxu0 0.0
  %v3329 = vand.u32 %v164, 4294901760
  %3330 = vmatpush1.msra.mxu0 %v3329
  %3331 = vmatprep.subr.mxu0 0.0
  %v3332 = vand.u32 %v165, 4294901760
  %3333 = vmatpush1.msra.mxu0 %v3332
  %3334 = vmatprep.subr.mxu0 0.0
  %v3335 = vand.u32 %v166, 4294901760
  %3336 = vmatpush1.msra.mxu0 %v3335
  %3337 = vmatprep.subr.mxu0 0.0
  %v3338 = vand.u32 %v167, 4294901760
  %3339 = vmatpush1.msra.mxu0 %v3338
  %3340 = vmatprep.subr.mxu0 0.0
  %v3341 = vand.u32 %v168, 4294901760
  %3342 = vmatpush1.msra.mxu0 %v3341
  %3343 = vmatprep.subr.mxu0 0.0
  %v3344 = vand.u32 %v169, 4294901760
  %3345 = vmatpush1.msra.mxu0 %v3344
  %3346 = vmatprep.subr.mxu0 0.0
  %v3347 = vand.u32 %v170, 4294901760
  %3348 = vmatpush1.msra.mxu0 %v3347
  %3349 = vmatprep.subr.mxu0 0.0
  %v3350 = vand.u32 %v171, 4294901760
  %3351 = vmatpush1.msra.mxu0 %v3350
  %3352 = vmatprep.subr.mxu0 0.0
  %v3353 = vand.u32 %v172, 4294901760
  %3354 = vmatpush1.msra.mxu0 %v3353
  %3355 = vmatprep.subr.mxu0 0.0
  %v3356 = vand.u32 %v173, 4294901760
  %3357 = vmatpush1.msra.mxu0 %v3356
  %3358 = vmatprep.subr.mxu0 0.0
  %v3359 = vand.u32 %v174, 4294901760
  %3360 = vmatpush1.msra.mxu0 %v3359
  %v3361 = vand.u32 %v22, 4294901760
  %v3362 = vsub.f32 %v22, %v3361
  %v3363 = vand.u32 %v3362, 4294901760
  %v3364 = vsub.f32 %v3362, %v3363
  %v3365 = vand.u32 %v3364, 4294901760
  %3366 = vmatprep.mubr.f32.mxu0 %v3365
  %v3367 = vand.u32 %v21, 4294901760
  %v3368 = vsub.f32 %v21, %v3367
  %v3369 = vand.u32 %v3368, 4294901760
  %v3370 = vsub.f32 %v3368, %v3369
  %v3371 = vand.u32 %v3370, 4294901760
  %3372 = vmatmul.mubr.f32.gmra.mrb[0].mxu0 %v3371
  %v3373 = vpop.f32.mrb[0].mxu0
  %v3374 = vadd.f32 %v3241, %v3373
  %v3375 = vpop.f32.mrb[0].mxu0
  %v3376 = vand.u32 %v30, 4294901760
  %v3377 = vsub.f32 %v30, %v3376
  %v3378 = vand.u32 %v3377, 4294901760
  %v3379 = vsub.f32 %v3377, %v3378
  %v3380 = vand.u32 %v3379, 4294901760
  %3381 = vmatprep.mubr.f32.mxu0 %v3380
  %v3382 = vand.u32 %v29, 4294901760
  %v3383 = vsub.f32 %v29, %v3382
  %v3384 = vand.u32 %v3383, 4294901760
  %v3385 = vsub.f32 %v3383, %v3384
  %v3386 = vand.u32 %v3385, 4294901760
  %3387 = vmatmul.mubr.f32.gmra.mrb[0].mxu0 %v3386
  %v3388 = vpop.f32.mrb[0].mxu0
  %v3389 = vadd.f32 %v3248, %v3388
  %v3390 = vpop.f32.mrb[0].mxu0
  %v3391 = vand.u32 %v38, 4294901760
  %v3392 = vsub.f32 %v38, %v3391
  %v3393 = vand.u32 %v3392, 4294901760
  %v3394 = vsub.f32 %v3392, %v3393
  %v3395 = vand.u32 %v3394, 4294901760
  %3396 = vmatprep.mubr.f32.mxu0 %v3395
  %v3397 = vand.u32 %v37, 4294901760
  %v3398 = vsub.f32 %v37, %v3397
  %v3399 = vand.u32 %v3398, 4294901760
  %v3400 = vsub.f32 %v3398, %v3399
  %v3401 = vand.u32 %v3400, 4294901760
  %3402 = vmatmul.mubr.f32.gmra.mrb[0].mxu0 %v3401
  %v3403 = vpop.f32.mrb[0].mxu0
  %v3404 = vadd.f32 %v3255, %v3403
  %v3405 = vpop.f32.mrb[0].mxu0
  %v3406 = vand.u32 %v46, 4294901760
  %v3407 = vsub.f32 %v46, %v3406
  %v3408 = vand.u32 %v3407, 4294901760
  %v3409 = vsub.f32 %v3407, %v3408
  %v3410 = vand.u32 %v3409, 4294901760
  %3411 = vmatprep.mubr.f32.mxu0 %v3410
  %v3412 = vand.u32 %v45, 4294901760
  %v3413 = vsub.f32 %v45, %v3412
  %v3414 = vand.u32 %v3413, 4294901760
  %v3415 = vsub.f32 %v3413, %v3414
  %v3416 = vand.u32 %v3415, 4294901760
  %3417 = vmatmul.mubr.f32.gmra.mrb[0].mxu0 %v3416
  %v3418 = vpop.f32.mrb[0].mxu0
  %v3419 = vadd.f32 %v3262, %v3418
  %v3420 = vpop.f32.mrb[0].mxu0
  %3421 = vdwg.mxu0
  %3422 = vmatprep.subr.mxu0 0.0
  %v3423 = vand.u32 %v143, 4294901760
  %v3424 = vsub.f32 %v143, %v3423
  %v3425 = vand.u32 %v3424, 4294901760
  %v3426 = vsub.f32 %v3424, %v3425
  %v3427 = vand.u32 %v3426, 4294901760
  %3428 = vmatpush1.msra.mxu0 %v3427
  %3429 = vmatprep.subr.mxu0 0.0
  %v3430 = vand.u32 %v144, 4294901760
  %v3431 = vsub.f32 %v144, %v3430
  %v3432 = vand.u32 %v3431, 4294901760
  %v3433 = vsub.f32 %v3431, %v3432
  %v3434 = vand.u32 %v3433, 4294901760
  %3435 = vmatpush1.msra.mxu0 %v3434
  %3436 = vmatprep.subr.mxu0 0.0
  %v3437 = vand.u32 %v145, 4294901760
  %v3438 = vsub.f32 %v145, %v3437
  %v3439 = vand.u32 %v3438, 4294901760
  %v3440 = vsub.f32 %v3438, %v3439
  %v3441 = vand.u32 %v3440, 4294901760
  %3442 = vmatpush1.msra.mxu0 %v3441
  %3443 = vmatprep.subr.mxu0 0.0
  %v3444 = vand.u32 %v146, 4294901760
  %v3445 = vsub.f32 %v146, %v3444
  %v3446 = vand.u32 %v3445, 4294901760
  %v3447 = vsub.f32 %v3445, %v3446
  %v3448 = vand.u32 %v3447, 4294901760
  %3449 = vmatpush1.msra.mxu0 %v3448
  %3450 = vmatprep.subr.mxu0 0.0
  %v3451 = vand.u32 %v147, 4294901760
  %v3452 = vsub.f32 %v147, %v3451
  %v3453 = vand.u32 %v3452, 4294901760
  %v3454 = vsub.f32 %v3452, %v3453
  %v3455 = vand.u32 %v3454, 4294901760
  %3456 = vmatpush1.msra.mxu0 %v3455
  %3457 = vmatprep.subr.mxu0 0.0
  %v3458 = vand.u32 %v148, 4294901760
  %v3459 = vsub.f32 %v148, %v3458
  %v3460 = vand.u32 %v3459, 4294901760
  %v3461 = vsub.f32 %v3459, %v3460
  %v3462 = vand.u32 %v3461, 4294901760
  %3463 = vmatpush1.msra.mxu0 %v3462
  %3464 = vmatprep.subr.mxu0 0.0
  %v3465 = vand.u32 %v149, 4294901760
  %v3466 = vsub.f32 %v149, %v3465
  %v3467 = vand.u32 %v3466, 4294901760
  %v3468 = vsub.f32 %v3466, %v3467
  %v3469 = vand.u32 %v3468, 4294901760
  %3470 = vmatpush1.msra.mxu0 %v3469
  %3471 = vmatprep.subr.mxu0 0.0
  %v3472 = vand.u32 %v150, 4294901760
  %v3473 = vsub.f32 %v150, %v3472
  %v3474 = vand.u32 %v3473, 4294901760
  %v3475 = vsub.f32 %v3473, %v3474
  %v3476 = vand.u32 %v3475, 4294901760
  %3477 = vmatpush1.msra.mxu0 %v3476
  %3478 = vmatprep.subr.mxu0 0.0
  %v3479 = vand.u32 %v151, 4294901760
  %v3480 = vsub.f32 %v151, %v3479
  %v3481 = vand.u32 %v3480, 4294901760
  %v3482 = vsub.f32 %v3480, %v3481
  %v3483 = vand.u32 %v3482, 4294901760
  %3484 = vmatpush1.msra.mxu0 %v3483
  %3485 = vmatprep.subr.mxu0 0.0
  %v3486 = vand.u32 %v152, 4294901760
  %v3487 = vsub.f32 %v152, %v3486
  %v3488 = vand.u32 %v3487, 4294901760
  %v3489 = vsub.f32 %v3487, %v3488
  %v3490 = vand.u32 %v3489, 4294901760
  %3491 = vmatpush1.msra.mxu0 %v3490
  %3492 = vmatprep.subr.mxu0 0.0
  %v3493 = vand.u32 %v153, 4294901760
  %v3494 = vsub.f32 %v153, %v3493
  %v3495 = vand.u32 %v3494, 4294901760
  %v3496 = vsub.f32 %v3494, %v3495
  %v3497 = vand.u32 %v3496, 4294901760
  %3498 = vmatpush1.msra.mxu0 %v3497
  %3499 = vmatprep.subr.mxu0 0.0
  %v3500 = vand.u32 %v154, 4294901760
  %v3501 = vsub.f32 %v154, %v3500
  %v3502 = vand.u32 %v3501, 4294901760
  %v3503 = vsub.f32 %v3501, %v3502
  %v3504 = vand.u32 %v3503, 4294901760
  %3505 = vmatpush1.msra.mxu0 %v3504
  %3506 = vmatprep.subr.mxu0 0.0
  %v3507 = vand.u32 %v155, 4294901760
  %v3508 = vsub.f32 %v155, %v3507
  %v3509 = vand.u32 %v3508, 4294901760
  %v3510 = vsub.f32 %v3508, %v3509
  %v3511 = vand.u32 %v3510, 4294901760
  %3512 = vmatpush1.msra.mxu0 %v3511
  %3513 = vmatprep.subr.mxu0 0.0
  %v3514 = vand.u32 %v156, 4294901760
  %v3515 = vsub.f32 %v156, %v3514
  %v3516 = vand.u32 %v3515, 4294901760
  %v3517 = vsub.f32 %v3515, %v3516
  %v3518 = vand.u32 %v3517, 4294901760
  %3519 = vmatpush1.msra.mxu0 %v3518
  %3520 = vmatprep.subr.mxu0 0.0
  %v3521 = vand.u32 %v157, 4294901760
  %v3522 = vsub.f32 %v157, %v3521
  %v3523 = vand.u32 %v3522, 4294901760
  %v3524 = vsub.f32 %v3522, %v3523
  %v3525 = vand.u32 %v3524, 4294901760
  %3526 = vmatpush1.msra.mxu0 %v3525
  %3527 = vmatprep.subr.mxu0 0.0
  %v3528 = vand.u32 %v158, 4294901760
  %v3529 = vsub.f32 %v158, %v3528
  %v3530 = vand.u32 %v3529, 4294901760
  %v3531 = vsub.f32 %v3529, %v3530
  %v3532 = vand.u32 %v3531, 4294901760
  %3533 = vmatpush1.msra.mxu0 %v3532
  %3534 = vmatprep.subr.mxu0 0.0
  %v3535 = vand.u32 %v159, 4294901760
  %v3536 = vsub.f32 %v159, %v3535
  %v3537 = vand.u32 %v3536, 4294901760
  %v3538 = vsub.f32 %v3536, %v3537
  %v3539 = vand.u32 %v3538, 4294901760
  %3540 = vmatpush1.msra.mxu0 %v3539
  %3541 = vmatprep.subr.mxu0 0.0
  %v3542 = vand.u32 %v160, 4294901760
  %v3543 = vsub.f32 %v160, %v3542
  %v3544 = vand.u32 %v3543, 4294901760
  %v3545 = vsub.f32 %v3543, %v3544
  %v3546 = vand.u32 %v3545, 4294901760
  %3547 = vmatpush1.msra.mxu0 %v3546
  %3548 = vmatprep.subr.mxu0 0.0
  %v3549 = vand.u32 %v161, 4294901760
  %v3550 = vsub.f32 %v161, %v3549
  %v3551 = vand.u32 %v3550, 4294901760
  %v3552 = vsub.f32 %v3550, %v3551
  %v3553 = vand.u32 %v3552, 4294901760
  %3554 = vmatpush1.msra.mxu0 %v3553
  %3555 = vmatprep.subr.mxu0 0.0
  %v3556 = vand.u32 %v162, 4294901760
  %v3557 = vsub.f32 %v162, %v3556
  %v3558 = vand.u32 %v3557, 4294901760
  %v3559 = vsub.f32 %v3557, %v3558
  %v3560 = vand.u32 %v3559, 4294901760
  %3561 = vmatpush1.msra.mxu0 %v3560
  %3562 = vmatprep.subr.mxu0 0.0
  %v3563 = vand.u32 %v163, 4294901760
  %v3564 = vsub.f32 %v163, %v3563
  %v3565 = vand.u32 %v3564, 4294901760
  %v3566 = vsub.f32 %v3564, %v3565
  %v3567 = vand.u32 %v3566, 4294901760
  %3568 = vmatpush1.msra.mxu0 %v3567
  %3569 = vmatprep.subr.mxu0 0.0
  %v3570 = vand.u32 %v164, 4294901760
  %v3571 = vsub.f32 %v164, %v3570
  %v3572 = vand.u32 %v3571, 4294901760
  %v3573 = vsub.f32 %v3571, %v3572
  %v3574 = vand.u32 %v3573, 4294901760
  %3575 = vmatpush1.msra.mxu0 %v3574
  %3576 = vmatprep.subr.mxu0 0.0
  %v3577 = vand.u32 %v165, 4294901760
  %v3578 = vsub.f32 %v165, %v3577
  %v3579 = vand.u32 %v3578, 4294901760
  %v3580 = vsub.f32 %v3578, %v3579
  %v3581 = vand.u32 %v3580, 4294901760
  %3582 = vmatpush1.msra.mxu0 %v3581
  %3583 = vmatprep.subr.mxu0 0.0
  %v3584 = vand.u32 %v166, 4294901760
  %v3585 = vsub.f32 %v166, %v3584
  %v3586 = vand.u32 %v3585, 4294901760
  %v3587 = vsub.f32 %v3585, %v3586
  %v3588 = vand.u32 %v3587, 4294901760
  %3589 = vmatpush1.msra.mxu0 %v3588
  %3590 = vmatprep.subr.mxu0 0.0
  %v3591 = vand.u32 %v167, 4294901760
  %v3592 = vsub.f32 %v167, %v3591
  %v3593 = vand.u32 %v3592, 4294901760
  %v3594 = vsub.f32 %v3592, %v3593
  %v3595 = vand.u32 %v3594, 4294901760
  %3596 = vmatpush1.msra.mxu0 %v3595
  %3597 = vmatprep.subr.mxu0 0.0
  %v3598 = vand.u32 %v168, 4294901760
  %v3599 = vsub.f32 %v168, %v3598
  %v3600 = vand.u32 %v3599, 4294901760
  %v3601 = vsub.f32 %v3599, %v3600
  %v3602 = vand.u32 %v3601, 4294901760
  %3603 = vmatpush1.msra.mxu0 %v3602
  %3604 = vmatprep.subr.mxu0 0.0
  %v3605 = vand.u32 %v169, 4294901760
  %v3606 = vsub.f32 %v169, %v3605
  %v3607 = vand.u32 %v3606, 4294901760
  %v3608 = vsub.f32 %v3606, %v3607
  %v3609 = vand.u32 %v3608, 4294901760
  %3610 = vmatpush1.msra.mxu0 %v3609
  %3611 = vmatprep.subr.mxu0 0.0
  %v3612 = vand.u32 %v170, 4294901760
  %v3613 = vsub.f32 %v170, %v3612
  %v3614 = vand.u32 %v3613, 4294901760
  %v3615 = vsub.f32 %v3613, %v3614
  %v3616 = vand.u32 %v3615, 4294901760
  %3617 = vmatpush1.msra.mxu0 %v3616
  %3618 = vmatprep.subr.mxu0 0.0
  %v3619 = vand.u32 %v171, 4294901760
  %v3620 = vsub.f32 %v171, %v3619
  %v3621 = vand.u32 %v3620, 4294901760
  %v3622 = vsub.f32 %v3620, %v3621
  %v3623 = vand.u32 %v3622, 4294901760
  %3624 = vmatpush1.msra.mxu0 %v3623
  %3625 = vmatprep.subr.mxu0 0.0
  %v3626 = vand.u32 %v172, 4294901760
  %v3627 = vsub.f32 %v172, %v3626
  %v3628 = vand.u32 %v3627, 4294901760
  %v3629 = vsub.f32 %v3627, %v3628
  %v3630 = vand.u32 %v3629, 4294901760
  %3631 = vmatpush1.msra.mxu0 %v3630
  %3632 = vmatprep.subr.mxu0 0.0
  %v3633 = vand.u32 %v173, 4294901760
  %v3634 = vsub.f32 %v173, %v3633
  %v3635 = vand.u32 %v3634, 4294901760
  %v3636 = vsub.f32 %v3634, %v3635
  %v3637 = vand.u32 %v3636, 4294901760
  %3638 = vmatpush1.msra.mxu0 %v3637
  %3639 = vmatprep.subr.mxu0 0.0
  %v3640 = vand.u32 %v174, 4294901760
  %v3641 = vsub.f32 %v174, %v3640
  %v3642 = vand.u32 %v3641, 4294901760
  %v3643 = vsub.f32 %v3641, %v3642
  %v3644 = vand.u32 %v3643, 4294901760
  %3645 = vmatpush1.msra.mxu0 %v3644
  %v3646 = vand.u32 %v22, 4294901760
  %3647 = vmatprep.mubr.f32.mxu0 %v3646
  %v3648 = vand.u32 %v21, 4294901760
  %3649 = vmatmul.mubr.f32.gmra.mrb[0].mxu0 %v3648
  %v3650 = vpop.f32.mrb[0].mxu0
  %v3651 = vadd.f32 %v3374, %v3650
  %v3652 = vpop.f32.mrb[0].mxu0
  %v3653 = vand.u32 %v30, 4294901760
  %3654 = vmatprep.mubr.f32.mxu0 %v3653
  %v3655 = vand.u32 %v29, 4294901760
  %3656 = vmatmul.mubr.f32.gmra.mrb[0].mxu0 %v3655
  %v3657 = vpop.f32.mrb[0].mxu0
  %v3658 = vadd.f32 %v3389, %v3657
  %v3659 = vpop.f32.mrb[0].mxu0
  %v3660 = vand.u32 %v38, 4294901760
  %3661 = vmatprep.mubr.f32.mxu0 %v3660
  %v3662 = vand.u32 %v37, 4294901760
  %3663 = vmatmul.mubr.f32.gmra.mrb[0].mxu0 %v3662
  %v3664 = vpop.f32.mrb[0].mxu0
  %v3665 = vadd.f32 %v3404, %v3664
  %v3666 = vpop.f32.mrb[0].mxu0
  %v3667 = vand.u32 %v46, 4294901760
  %3668 = vmatprep.mubr.f32.mxu0 %v3667
  %v3669 = vand.u32 %v45, 4294901760
  %3670 = vmatmul.mubr.f32.gmra.mrb[0].mxu0 %v3669
  %v3671 = vpop.f32.mrb[0].mxu0
  %v3672 = vadd.f32 %v3419, %v3671
  %v3673 = vpop.f32.mrb[0].mxu0
  %3674 = vdwg.mxu0
  %3675 = vmatprep.subr.mxu0 0.0
  %v3676 = vand.u32 %v143, 4294901760
  %v3677 = vsub.f32 %v143, %v3676
  %3678 = vmatpush1.msra.mxu0 %v3677
  %3679 = vmatprep.subr.mxu0 0.0
  %v3680 = vand.u32 %v144, 4294901760
  %v3681 = vsub.f32 %v144, %v3680
  %3682 = vmatpush1.msra.mxu0 %v3681
  %3683 = vmatprep.subr.mxu0 0.0
  %v3684 = vand.u32 %v145, 4294901760
  %v3685 = vsub.f32 %v145, %v3684
  %3686 = vmatpush1.msra.mxu0 %v3685
  %3687 = vmatprep.subr.mxu0 0.0
  %v3688 = vand.u32 %v146, 4294901760
  %v3689 = vsub.f32 %v146, %v3688
  %3690 = vmatpush1.msra.mxu0 %v3689
  %3691 = vmatprep.subr.mxu0 0.0
  %v3692 = vand.u32 %v147, 4294901760
  %v3693 = vsub.f32 %v147, %v3692
  %3694 = vmatpush1.msra.mxu0 %v3693
  %3695 = vmatprep.subr.mxu0 0.0
  %v3696 = vand.u32 %v148, 4294901760
  %v3697 = vsub.f32 %v148, %v3696
  %3698 = vmatpush1.msra.mxu0 %v3697
  %3699 = vmatprep.subr.mxu0 0.0
  %v3700 = vand.u32 %v149, 4294901760
  %v3701 = vsub.f32 %v149, %v3700
  %3702 = vmatpush1.msra.mxu0 %v3701
  %3703 = vmatprep.subr.mxu0 0.0
  %v3704 = vand.u32 %v150, 4294901760
  %v3705 = vsub.f32 %v150, %v3704
  %3706 = vmatpush1.msra.mxu0 %v3705
  %3707 = vmatprep.subr.mxu0 0.0
  %v3708 = vand.u32 %v151, 4294901760
  %v3709 = vsub.f32 %v151, %v3708
  %3710 = vmatpush1.msra.mxu0 %v3709
  %3711 = vmatprep.subr.mxu0 0.0
  %v3712 = vand.u32 %v152, 4294901760
  %v3713 = vsub.f32 %v152, %v3712
  %3714 = vmatpush1.msra.mxu0 %v3713
  %3715 = vmatprep.subr.mxu0 0.0
  %v3716 = vand.u32 %v153, 4294901760
  %v3717 = vsub.f32 %v153, %v3716
  %3718 = vmatpush1.msra.mxu0 %v3717
  %3719 = vmatprep.subr.mxu0 0.0
  %v3720 = vand.u32 %v154, 4294901760
  %v3721 = vsub.f32 %v154, %v3720
  %3722 = vmatpush1.msra.mxu0 %v3721
  %3723 = vmatprep.subr.mxu0 0.0
  %v3724 = vand.u32 %v155, 4294901760
  %v3725 = vsub.f32 %v155, %v3724
  %3726 = vmatpush1.msra.mxu0 %v3725
  %3727 = vmatprep.subr.mxu0 0.0
  %v3728 = vand.u32 %v156, 4294901760
  %v3729 = vsub.f32 %v156, %v3728
  %3730 = vmatpush1.msra.mxu0 %v3729
  %3731 = vmatprep.subr.mxu0 0.0
  %v3732 = vand.u32 %v157, 4294901760
  %v3733 = vsub.f32 %v157, %v3732
  %3734 = vmatpush1.msra.mxu0 %v3733
  %3735 = vmatprep.subr.mxu0 0.0
  %v3736 = vand.u32 %v158, 4294901760
  %v3737 = vsub.f32 %v158, %v3736
  %3738 = vmatpush1.msra.mxu0 %v3737
  %3739 = vmatprep.subr.mxu0 0.0
  %v3740 = vand.u32 %v159, 4294901760
  %v3741 = vsub.f32 %v159, %v3740
  %3742 = vmatpush1.msra.mxu0 %v3741
  %3743 = vmatprep.subr.mxu0 0.0
  %v3744 = vand.u32 %v160, 4294901760
  %v3745 = vsub.f32 %v160, %v3744
  %3746 = vmatpush1.msra.mxu0 %v3745
  %3747 = vmatprep.subr.mxu0 0.0
  %v3748 = vand.u32 %v161, 4294901760
  %v3749 = vsub.f32 %v161, %v3748
  %3750 = vmatpush1.msra.mxu0 %v3749
  %3751 = vmatprep.subr.mxu0 0.0
  %v3752 = vand.u32 %v162, 4294901760
  %v3753 = vsub.f32 %v162, %v3752
  %3754 = vmatpush1.msra.mxu0 %v3753
  %3755 = vmatprep.subr.mxu0 0.0
  %v3756 = vand.u32 %v163, 4294901760
  %v3757 = vsub.f32 %v163, %v3756
  %3758 = vmatpush1.msra.mxu0 %v3757
  %3759 = vmatprep.subr.mxu0 0.0
  %v3760 = vand.u32 %v164, 4294901760
  %v3761 = vsub.f32 %v164, %v3760
  %3762 = vmatpush1.msra.mxu0 %v3761
  %3763 = vmatprep.subr.mxu0 0.0
  %v3764 = vand.u32 %v165, 4294901760
  %v3765 = vsub.f32 %v165, %v3764
  %3766 = vmatpush1.msra.mxu0 %v3765
  %3767 = vmatprep.subr.mxu0 0.0
  %v3768 = vand.u32 %v166, 4294901760
  %v3769 = vsub.f32 %v166, %v3768
  %3770 = vmatpush1.msra.mxu0 %v3769
  %3771 = vmatprep.subr.mxu0 0.0
  %v3772 = vand.u32 %v167, 4294901760
  %v3773 = vsub.f32 %v167, %v3772
  %3774 = vmatpush1.msra.mxu0 %v3773
  %3775 = vmatprep.subr.mxu0 0.0
  %v3776 = vand.u32 %v168, 4294901760
  %v3777 = vsub.f32 %v168, %v3776
  %3778 = vmatpush1.msra.mxu0 %v3777
  %3779 = vmatprep.subr.mxu0 0.0
  %v3780 = vand.u32 %v169, 4294901760
  %v3781 = vsub.f32 %v169, %v3780
  %3782 = vmatpush1.msra.mxu0 %v3781
  %3783 = vmatprep.subr.mxu0 0.0
  %v3784 = vand.u32 %v170, 4294901760
  %v3785 = vsub.f32 %v170, %v3784
  %3786 = vmatpush1.msra.mxu0 %v3785
  %3787 = vmatprep.subr.mxu0 0.0
  %v3788 = vand.u32 %v171, 4294901760
  %v3789 = vsub.f32 %v171, %v3788
  %3790 = vmatpush1.msra.mxu0 %v3789
  %3791 = vmatprep.subr.mxu0 0.0
  %v3792 = vand.u32 %v172, 4294901760
  %v3793 = vsub.f32 %v172, %v3792
  %3794 = vmatpush1.msra.mxu0 %v3793
  %3795 = vmatprep.subr.mxu0 0.0
  %v3796 = vand.u32 %v173, 4294901760
  %v3797 = vsub.f32 %v173, %v3796
  %3798 = vmatpush1.msra.mxu0 %v3797
  %3799 = vmatprep.subr.mxu0 0.0
  %v3800 = vand.u32 %v174, 4294901760
  %v3801 = vsub.f32 %v174, %v3800
  %3802 = vmatpush1.msra.mxu0 %v3801
  %v3803 = vand.u32 %v22, 4294901760
  %v3804 = vsub.f32 %v22, %v3803
  %3805 = vmatprep.mubr.f32.mxu0 %v3804
  %v3806 = vand.u32 %v21, 4294901760
  %v3807 = vsub.f32 %v21, %v3806
  %3808 = vmatmul.mubr.f32.gmra.mrb[0].mxu0 %v3807
  %v3809 = vpop.f32.mrb[0].mxu0
  %v3810 = vadd.f32 %v3651, %v3809
  %v3811 = vpop.f32.mrb[0].mxu0
  %v3812 = vand.u32 %v30, 4294901760
  %v3813 = vsub.f32 %v30, %v3812
  %3814 = vmatprep.mubr.f32.mxu0 %v3813
  %v3815 = vand.u32 %v29, 4294901760
  %v3816 = vsub.f32 %v29, %v3815
  %3817 = vmatmul.mubr.f32.gmra.mrb[0].mxu0 %v3816
  %v3818 = vpop.f32.mrb[0].mxu0
  %v3819 = vadd.f32 %v3658, %v3818
  %v3820 = vpop.f32.mrb[0].mxu0
  %v3821 = vand.u32 %v38, 4294901760
  %v3822 = vsub.f32 %v38, %v3821
  %3823 = vmatprep.mubr.f32.mxu0 %v3822
  %v3824 = vand.u32 %v37, 4294901760
  %v3825 = vsub.f32 %v37, %v3824
  %3826 = vmatmul.mubr.f32.gmra.mrb[0].mxu0 %v3825
  %v3827 = vpop.f32.mrb[0].mxu0
  %v3828 = vadd.f32 %v3665, %v3827
  %v3829 = vpop.f32.mrb[0].mxu0
  %v3830 = vand.u32 %v46, 4294901760
  %v3831 = vsub.f32 %v46, %v3830
  %3832 = vmatprep.mubr.f32.mxu0 %v3831
  %v3833 = vand.u32 %v45, 4294901760
  %v3834 = vsub.f32 %v45, %v3833
  %3835 = vmatmul.mubr.f32.gmra.mrb[0].mxu0 %v3834
  %v3836 = vpop.f32.mrb[0].mxu0
  %v3837 = vadd.f32 %v3672, %v3836
  %v3838 = vpop.f32.mrb[0].mxu0
  %3839 = vdwg.mxu0
  %3840 = vmatprep.subr.mxu0 0.0
  %v3841 = vand.u32 %v143, 4294901760
  %3842 = vmatpush1.msra.mxu0 %v3841
  %3843 = vmatprep.subr.mxu0 0.0
  %v3844 = vand.u32 %v144, 4294901760
  %3845 = vmatpush1.msra.mxu0 %v3844
  %3846 = vmatprep.subr.mxu0 0.0
  %v3847 = vand.u32 %v145, 4294901760
  %3848 = vmatpush1.msra.mxu0 %v3847
  %3849 = vmatprep.subr.mxu0 0.0
  %v3850 = vand.u32 %v146, 4294901760
  %3851 = vmatpush1.msra.mxu0 %v3850
  %3852 = vmatprep.subr.mxu0 0.0
  %v3853 = vand.u32 %v147, 4294901760
  %3854 = vmatpush1.msra.mxu0 %v3853
  %3855 = vmatprep.subr.mxu0 0.0
  %v3856 = vand.u32 %v148, 4294901760
  %3857 = vmatpush1.msra.mxu0 %v3856
  %3858 = vmatprep.subr.mxu0 0.0
  %v3859 = vand.u32 %v149, 4294901760
  %3860 = vmatpush1.msra.mxu0 %v3859
  %3861 = vmatprep.subr.mxu0 0.0
  %v3862 = vand.u32 %v150, 4294901760
  %3863 = vmatpush1.msra.mxu0 %v3862
  %3864 = vmatprep.subr.mxu0 0.0
  %v3865 = vand.u32 %v151, 4294901760
  %3866 = vmatpush1.msra.mxu0 %v3865
  %3867 = vmatprep.subr.mxu0 0.0
  %v3868 = vand.u32 %v152, 4294901760
  %3869 = vmatpush1.msra.mxu0 %v3868
  %3870 = vmatprep.subr.mxu0 0.0
  %v3871 = vand.u32 %v153, 4294901760
  %3872 = vmatpush1.msra.mxu0 %v3871
  %3873 = vmatprep.subr.mxu0 0.0
  %v3874 = vand.u32 %v154, 4294901760
  %3875 = vmatpush1.msra.mxu0 %v3874
  %3876 = vmatprep.subr.mxu0 0.0
  %v3877 = vand.u32 %v155, 4294901760
  %3878 = vmatpush1.msra.mxu0 %v3877
  %3879 = vmatprep.subr.mxu0 0.0
  %v3880 = vand.u32 %v156, 4294901760
  %3881 = vmatpush1.msra.mxu0 %v3880
  %3882 = vmatprep.subr.mxu0 0.0
  %v3883 = vand.u32 %v157, 4294901760
  %3884 = vmatpush1.msra.mxu0 %v3883
  %3885 = vmatprep.subr.mxu0 0.0
  %v3886 = vand.u32 %v158, 4294901760
  %3887 = vmatpush1.msra.mxu0 %v3886
  %3888 = vmatprep.subr.mxu0 0.0
  %v3889 = vand.u32 %v159, 4294901760
  %3890 = vmatpush1.msra.mxu0 %v3889
  %3891 = vmatprep.subr.mxu0 0.0
  %v3892 = vand.u32 %v160, 4294901760
  %3893 = vmatpush1.msra.mxu0 %v3892
  %3894 = vmatprep.subr.mxu0 0.0
  %v3895 = vand.u32 %v161, 4294901760
  %3896 = vmatpush1.msra.mxu0 %v3895
  %3897 = vmatprep.subr.mxu0 0.0
  %v3898 = vand.u32 %v162, 4294901760
  %3899 = vmatpush1.msra.mxu0 %v3898
  %3900 = vmatprep.subr.mxu0 0.0
  %v3901 = vand.u32 %v163, 4294901760
  %3902 = vmatpush1.msra.mxu0 %v3901
  %3903 = vmatprep.subr.mxu0 0.0
  %v3904 = vand.u32 %v164, 4294901760
  %3905 = vmatpush1.msra.mxu0 %v3904
  %3906 = vmatprep.subr.mxu0 0.0
  %v3907 = vand.u32 %v165, 4294901760
  %3908 = vmatpush1.msra.mxu0 %v3907
  %3909 = vmatprep.subr.mxu0 0.0
  %v3910 = vand.u32 %v166, 4294901760
  %3911 = vmatpush1.msra.mxu0 %v3910
  %3912 = vmatprep.subr.mxu0 0.0
  %v3913 = vand.u32 %v167, 4294901760
  %3914 = vmatpush1.msra.mxu0 %v3913
  %3915 = vmatprep.subr.mxu0 0.0
  %v3916 = vand.u32 %v168, 4294901760
  %3917 = vmatpush1.msra.mxu0 %v3916
  %3918 = vmatprep.subr.mxu0 0.0
  %v3919 = vand.u32 %v169, 4294901760
  %3920 = vmatpush1.msra.mxu0 %v3919
  %3921 = vmatprep.subr.mxu0 0.0
  %v3922 = vand.u32 %v170, 4294901760
  %3923 = vmatpush1.msra.mxu0 %v3922
  %3924 = vmatprep.subr.mxu0 0.0
  %v3925 = vand.u32 %v171, 4294901760
  %3926 = vmatpush1.msra.mxu0 %v3925
  %3927 = vmatprep.subr.mxu0 0.0
  %v3928 = vand.u32 %v172, 4294901760
  %3929 = vmatpush1.msra.mxu0 %v3928
  %3930 = vmatprep.subr.mxu0 0.0
  %v3931 = vand.u32 %v173, 4294901760
  %3932 = vmatpush1.msra.mxu0 %v3931
  %3933 = vmatprep.subr.mxu0 0.0
  %v3934 = vand.u32 %v174, 4294901760
  %3935 = vmatpush1.msra.mxu0 %v3934
  %v3936 = vand.u32 %v22, 4294901760
  %v3937 = vsub.f32 %v22, %v3936
  %v3938 = vand.u32 %v3937, 4294901760
  %3939 = vmatprep.mubr.f32.mxu0 %v3938
  %v3940 = vand.u32 %v21, 4294901760
  %v3941 = vsub.f32 %v21, %v3940
  %v3942 = vand.u32 %v3941, 4294901760
  %3943 = vmatmul.mubr.f32.gmra.mrb[0].mxu0 %v3942
  %v3944 = vpop.f32.mrb[0].mxu0
  %v3945 = vadd.f32 %v3810, %v3944
  %v3946 = vpop.f32.mrb[0].mxu0
  %v3947 = vand.u32 %v30, 4294901760
  %v3948 = vsub.f32 %v30, %v3947
  %v3949 = vand.u32 %v3948, 4294901760
  %3950 = vmatprep.mubr.f32.mxu0 %v3949
  %v3951 = vand.u32 %v29, 4294901760
  %v3952 = vsub.f32 %v29, %v3951
  %v3953 = vand.u32 %v3952, 4294901760
  %3954 = vmatmul.mubr.f32.gmra.mrb[0].mxu0 %v3953
  %v3955 = vpop.f32.mrb[0].mxu0
  %v3956 = vadd.f32 %v3819, %v3955
  %v3957 = vpop.f32.mrb[0].mxu0
  %v3958 = vand.u32 %v38, 4294901760
  %v3959 = vsub.f32 %v38, %v3958
  %v3960 = vand.u32 %v3959, 4294901760
  %3961 = vmatprep.mubr.f32.mxu0 %v3960
  %v3962 = vand.u32 %v37, 4294901760
  %v3963 = vsub.f32 %v37, %v3962
  %v3964 = vand.u32 %v3963, 4294901760
  %3965 = vmatmul.mubr.f32.gmra.mrb[0].mxu0 %v3964
  %v3966 = vpop.f32.mrb[0].mxu0
  %v3967 = vadd.f32 %v3828, %v3966
  %v3968 = vpop.f32.mrb[0].mxu0
  %v3969 = vand.u32 %v46, 4294901760
  %v3970 = vsub.f32 %v46, %v3969
  %v3971 = vand.u32 %v3970, 4294901760
  %3972 = vmatprep.mubr.f32.mxu0 %v3971
  %v3973 = vand.u32 %v45, 4294901760
  %v3974 = vsub.f32 %v45, %v3973
  %v3975 = vand.u32 %v3974, 4294901760
  %3976 = vmatmul.mubr.f32.gmra.mrb[0].mxu0 %v3975
  %v3977 = vpop.f32.mrb[0].mxu0
  %v3978 = vadd.f32 %v3837, %v3977
  %v3979 = vpop.f32.mrb[0].mxu0
  %3980 = vdwg.mxu0
  %3981 = vmatprep.subr.mxu0 0.0
  %v3982 = vand.u32 %v143, 4294901760
  %v3983 = vsub.f32 %v143, %v3982
  %v3984 = vand.u32 %v3983, 4294901760
  %3985 = vmatpush1.msra.mxu0 %v3984
  %3986 = vmatprep.subr.mxu0 0.0
  %v3987 = vand.u32 %v144, 4294901760
  %v3988 = vsub.f32 %v144, %v3987
  %v3989 = vand.u32 %v3988, 4294901760
  %3990 = vmatpush1.msra.mxu0 %v3989
  %3991 = vmatprep.subr.mxu0 0.0
  %v3992 = vand.u32 %v145, 4294901760
  %v3993 = vsub.f32 %v145, %v3992
  %v3994 = vand.u32 %v3993, 4294901760
  %3995 = vmatpush1.msra.mxu0 %v3994
  %3996 = vmatprep.subr.mxu0 0.0
  %v3997 = vand.u32 %v146, 4294901760
  %v3998 = vsub.f32 %v146, %v3997
  %v3999 = vand.u32 %v3998, 4294901760
  %4000 = vmatpush1.msra.mxu0 %v3999
  %4001 = vmatprep.subr.mxu0 0.0
  %v4002 = vand.u32 %v147, 4294901760
  %v4003 = vsub.f32 %v147, %v4002
  %v4004 = vand.u32 %v4003, 4294901760
  %4005 = vmatpush1.msra.mxu0 %v4004
  %4006 = vmatprep.subr.mxu0 0.0
  %v4007 = vand.u32 %v148, 4294901760
  %v4008 = vsub.f32 %v148, %v4007
  %v4009 = vand.u32 %v4008, 4294901760
  %4010 = vmatpush1.msra.mxu0 %v4009
  %4011 = vmatprep.subr.mxu0 0.0
  %v4012 = vand.u32 %v149, 4294901760
  %v4013 = vsub.f32 %v149, %v4012
  %v4014 = vand.u32 %v4013, 4294901760
  %4015 = vmatpush1.msra.mxu0 %v4014
  %4016 = vmatprep.subr.mxu0 0.0
  %v4017 = vand.u32 %v150, 4294901760
  %v4018 = vsub.f32 %v150, %v4017
  %v4019 = vand.u32 %v4018, 4294901760
  %4020 = vmatpush1.msra.mxu0 %v4019
  %4021 = vmatprep.subr.mxu0 0.0
  %v4022 = vand.u32 %v151, 4294901760
  %v4023 = vsub.f32 %v151, %v4022
  %v4024 = vand.u32 %v4023, 4294901760
  %4025 = vmatpush1.msra.mxu0 %v4024
  %4026 = vmatprep.subr.mxu0 0.0
  %v4027 = vand.u32 %v152, 4294901760
  %v4028 = vsub.f32 %v152, %v4027
  %v4029 = vand.u32 %v4028, 4294901760
  %4030 = vmatpush1.msra.mxu0 %v4029
  %4031 = vmatprep.subr.mxu0 0.0
  %v4032 = vand.u32 %v153, 4294901760
  %v4033 = vsub.f32 %v153, %v4032
  %v4034 = vand.u32 %v4033, 4294901760
  %4035 = vmatpush1.msra.mxu0 %v4034
  %4036 = vmatprep.subr.mxu0 0.0
  %v4037 = vand.u32 %v154, 4294901760
  %v4038 = vsub.f32 %v154, %v4037
  %v4039 = vand.u32 %v4038, 4294901760
  %4040 = vmatpush1.msra.mxu0 %v4039
  %4041 = vmatprep.subr.mxu0 0.0
  %v4042 = vand.u32 %v155, 4294901760
  %v4043 = vsub.f32 %v155, %v4042
  %v4044 = vand.u32 %v4043, 4294901760
  %4045 = vmatpush1.msra.mxu0 %v4044
  %4046 = vmatprep.subr.mxu0 0.0
  %v4047 = vand.u32 %v156, 4294901760
  %v4048 = vsub.f32 %v156, %v4047
  %v4049 = vand.u32 %v4048, 4294901760
  %4050 = vmatpush1.msra.mxu0 %v4049
  %4051 = vmatprep.subr.mxu0 0.0
  %v4052 = vand.u32 %v157, 4294901760
  %v4053 = vsub.f32 %v157, %v4052
  %v4054 = vand.u32 %v4053, 4294901760
  %4055 = vmatpush1.msra.mxu0 %v4054
  %4056 = vmatprep.subr.mxu0 0.0
  %v4057 = vand.u32 %v158, 4294901760
  %v4058 = vsub.f32 %v158, %v4057
  %v4059 = vand.u32 %v4058, 4294901760
  %4060 = vmatpush1.msra.mxu0 %v4059
  %4061 = vmatprep.subr.mxu0 0.0
  %v4062 = vand.u32 %v159, 4294901760
  %v4063 = vsub.f32 %v159, %v4062
  %v4064 = vand.u32 %v4063, 4294901760
  %4065 = vmatpush1.msra.mxu0 %v4064
  %4066 = vmatprep.subr.mxu0 0.0
  %v4067 = vand.u32 %v160, 4294901760
  %v4068 = vsub.f32 %v160, %v4067
  %v4069 = vand.u32 %v4068, 4294901760
  %4070 = vmatpush1.msra.mxu0 %v4069
  %4071 = vmatprep.subr.mxu0 0.0
  %v4072 = vand.u32 %v161, 4294901760
  %v4073 = vsub.f32 %v161, %v4072
  %v4074 = vand.u32 %v4073, 4294901760
  %4075 = vmatpush1.msra.mxu0 %v4074
  %4076 = vmatprep.subr.mxu0 0.0
  %v4077 = vand.u32 %v162, 4294901760
  %v4078 = vsub.f32 %v162, %v4077
  %v4079 = vand.u32 %v4078, 4294901760
  %4080 = vmatpush1.msra.mxu0 %v4079
  %4081 = vmatprep.subr.mxu0 0.0
  %v4082 = vand.u32 %v163, 4294901760
  %v4083 = vsub.f32 %v163, %v4082
  %v4084 = vand.u32 %v4083, 4294901760
  %4085 = vmatpush1.msra.mxu0 %v4084
  %4086 = vmatprep.subr.mxu0 0.0
  %v4087 = vand.u32 %v164, 4294901760
  %v4088 = vsub.f32 %v164, %v4087
  %v4089 = vand.u32 %v4088, 4294901760
  %4090 = vmatpush1.msra.mxu0 %v4089
  %4091 = vmatprep.subr.mxu0 0.0
  %v4092 = vand.u32 %v165, 4294901760
  %v4093 = vsub.f32 %v165, %v4092
  %v4094 = vand.u32 %v4093, 4294901760
  %4095 = vmatpush1.msra.mxu0 %v4094
  %4096 = vmatprep.subr.mxu0 0.0
  %v4097 = vand.u32 %v166, 4294901760
  %v4098 = vsub.f32 %v166, %v4097
  %v4099 = vand.u32 %v4098, 4294901760
  %4100 = vmatpush1.msra.mxu0 %v4099
  %4101 = vmatprep.subr.mxu0 0.0
  %v4102 = vand.u32 %v167, 4294901760
  %v4103 = vsub.f32 %v167, %v4102
  %v4104 = vand.u32 %v4103, 4294901760
  %4105 = vmatpush1.msra.mxu0 %v4104
  %4106 = vmatprep.subr.mxu0 0.0
  %v4107 = vand.u32 %v168, 4294901760
  %v4108 = vsub.f32 %v168, %v4107
  %v4109 = vand.u32 %v4108, 4294901760
  %4110 = vmatpush1.msra.mxu0 %v4109
  %4111 = vmatprep.subr.mxu0 0.0
  %v4112 = vand.u32 %v169, 4294901760
  %v4113 = vsub.f32 %v169, %v4112
  %v4114 = vand.u32 %v4113, 4294901760
  %4115 = vmatpush1.msra.mxu0 %v4114
  %4116 = vmatprep.subr.mxu0 0.0
  %v4117 = vand.u32 %v170, 4294901760
  %v4118 = vsub.f32 %v170, %v4117
  %v4119 = vand.u32 %v4118, 4294901760
  %4120 = vmatpush1.msra.mxu0 %v4119
  %4121 = vmatprep.subr.mxu0 0.0
  %v4122 = vand.u32 %v171, 4294901760
  %v4123 = vsub.f32 %v171, %v4122
  %v4124 = vand.u32 %v4123, 4294901760
  %4125 = vmatpush1.msra.mxu0 %v4124
  %4126 = vmatprep.subr.mxu0 0.0
  %v4127 = vand.u32 %v172, 4294901760
  %v4128 = vsub.f32 %v172, %v4127
  %v4129 = vand.u32 %v4128, 4294901760
  %4130 = vmatpush1.msra.mxu0 %v4129
  %4131 = vmatprep.subr.mxu0 0.0
  %v4132 = vand.u32 %v173, 4294901760
  %v4133 = vsub.f32 %v173, %v4132
  %v4134 = vand.u32 %v4133, 4294901760
  %4135 = vmatpush1.msra.mxu0 %v4134
  %4136 = vmatprep.subr.mxu0 0.0
  %v4137 = vand.u32 %v174, 4294901760
  %v4138 = vsub.f32 %v174, %v4137
  %v4139 = vand.u32 %v4138, 4294901760
  %4140 = vmatpush1.msra.mxu0 %v4139
  %v4141 = vand.u32 %v22, 4294901760
  %4142 = vmatprep.mubr.f32.mxu0 %v4141
  %v4143 = vand.u32 %v21, 4294901760
  %4144 = vmatmul.mubr.f32.gmra.mrb[0].mxu0 %v4143
  %v4145 = vpop.f32.mrb[0].mxu0
  %v4146 = vadd.f32 %v3945, %v4145
  %v4147 = vpop.f32.mrb[0].mxu0
  %v4148 = vand.u32 %v30, 4294901760
  %4149 = vmatprep.mubr.f32.mxu0 %v4148
  %v4150 = vand.u32 %v29, 4294901760
  %4151 = vmatmul.mubr.f32.gmra.mrb[0].mxu0 %v4150
  %v4152 = vpop.f32.mrb[0].mxu0
  %v4153 = vadd.f32 %v3956, %v4152
  %v4154 = vpop.f32.mrb[0].mxu0
  %v4155 = vand.u32 %v38, 4294901760
  %4156 = vmatprep.mubr.f32.mxu0 %v4155
  %v4157 = vand.u32 %v37, 4294901760
  %4158 = vmatmul.mubr.f32.gmra.mrb[0].mxu0 %v4157
  %v4159 = vpop.f32.mrb[0].mxu0
  %v4160 = vadd.f32 %v3967, %v4159
  %v4161 = vpop.f32.mrb[0].mxu0
  %v4162 = vand.u32 %v46, 4294901760
  %4163 = vmatprep.mubr.f32.mxu0 %v4162
  %v4164 = vand.u32 %v45, 4294901760
  %4165 = vmatmul.mubr.f32.gmra.mrb[0].mxu0 %v4164
  %v4166 = vpop.f32.mrb[0].mxu0
  %v4167 = vadd.f32 %v3978, %v4166
  %v4168 = vpop.f32.mrb[0].mxu0
  %4169 = vdwg.mxu0
  %4170 = vmatprep.subr.mxu0 0.0
  %v4171 = vand.u32 %v143, 4294901760
  %4172 = vmatpush1.msra.mxu0 %v4171
  %4173 = vmatprep.subr.mxu0 0.0
  %v4174 = vand.u32 %v144, 4294901760
  %4175 = vmatpush1.msra.mxu0 %v4174
  %4176 = vmatprep.subr.mxu0 0.0
  %v4177 = vand.u32 %v145, 4294901760
  %4178 = vmatpush1.msra.mxu0 %v4177
  %4179 = vmatprep.subr.mxu0 0.0
  %v4180 = vand.u32 %v146, 4294901760
  %4181 = vmatpush1.msra.mxu0 %v4180
  %4182 = vmatprep.subr.mxu0 0.0
  %v4183 = vand.u32 %v147, 4294901760
  %4184 = vmatpush1.msra.mxu0 %v4183
  %4185 = vmatprep.subr.mxu0 0.0
  %v4186 = vand.u32 %v148, 4294901760
  %4187 = vmatpush1.msra.mxu0 %v4186
  %4188 = vmatprep.subr.mxu0 0.0
  %v4189 = vand.u32 %v149, 4294901760
  %4190 = vmatpush1.msra.mxu0 %v4189
  %4191 = vmatprep.subr.mxu0 0.0
  %v4192 = vand.u32 %v150, 4294901760
  %4193 = vmatpush1.msra.mxu0 %v4192
  %4194 = vmatprep.subr.mxu0 0.0
  %v4195 = vand.u32 %v151, 4294901760
  %4196 = vmatpush1.msra.mxu0 %v4195
  %4197 = vmatprep.subr.mxu0 0.0
  %v4198 = vand.u32 %v152, 4294901760
  %4199 = vmatpush1.msra.mxu0 %v4198
  %4200 = vmatprep.subr.mxu0 0.0
  %v4201 = vand.u32 %v153, 4294901760
  %4202 = vmatpush1.msra.mxu0 %v4201
  %4203 = vmatprep.subr.mxu0 0.0
  %v4204 = vand.u32 %v154, 4294901760
  %4205 = vmatpush1.msra.mxu0 %v4204
  %4206 = vmatprep.subr.mxu0 0.0
  %v4207 = vand.u32 %v155, 4294901760
  %4208 = vmatpush1.msra.mxu0 %v4207
  %4209 = vmatprep.subr.mxu0 0.0
  %v4210 = vand.u32 %v156, 4294901760
  %4211 = vmatpush1.msra.mxu0 %v4210
  %4212 = vmatprep.subr.mxu0 0.0
  %v4213 = vand.u32 %v157, 4294901760
  %4214 = vmatpush1.msra.mxu0 %v4213
  %4215 = vmatprep.subr.mxu0 0.0
  %v4216 = vand.u32 %v158, 4294901760
  %4217 = vmatpush1.msra.mxu0 %v4216
  %4218 = vmatprep.subr.mxu0 0.0
  %v4219 = vand.u32 %v159, 4294901760
  %4220 = vmatpush1.msra.mxu0 %v4219
  %4221 = vmatprep.subr.mxu0 0.0
  %v4222 = vand.u32 %v160, 4294901760
  %4223 = vmatpush1.msra.mxu0 %v4222
  %4224 = vmatprep.subr.mxu0 0.0
  %v4225 = vand.u32 %v161, 4294901760
  %4226 = vmatpush1.msra.mxu0 %v4225
  %4227 = vmatprep.subr.mxu0 0.0
  %v4228 = vand.u32 %v162, 4294901760
  %4229 = vmatpush1.msra.mxu0 %v4228
  %4230 = vmatprep.subr.mxu0 0.0
  %v4231 = vand.u32 %v163, 4294901760
  %4232 = vmatpush1.msra.mxu0 %v4231
  %4233 = vmatprep.subr.mxu0 0.0
  %v4234 = vand.u32 %v164, 4294901760
  %4235 = vmatpush1.msra.mxu0 %v4234
  %4236 = vmatprep.subr.mxu0 0.0
  %v4237 = vand.u32 %v165, 4294901760
  %4238 = vmatpush1.msra.mxu0 %v4237
  %4239 = vmatprep.subr.mxu0 0.0
  %v4240 = vand.u32 %v166, 4294901760
  %4241 = vmatpush1.msra.mxu0 %v4240
  %4242 = vmatprep.subr.mxu0 0.0
  %v4243 = vand.u32 %v167, 4294901760
  %4244 = vmatpush1.msra.mxu0 %v4243
  %4245 = vmatprep.subr.mxu0 0.0
  %v4246 = vand.u32 %v168, 4294901760
  %4247 = vmatpush1.msra.mxu0 %v4246
  %4248 = vmatprep.subr.mxu0 0.0
  %v4249 = vand.u32 %v169, 4294901760
  %4250 = vmatpush1.msra.mxu0 %v4249
  %4251 = vmatprep.subr.mxu0 0.0
  %v4252 = vand.u32 %v170, 4294901760
  %4253 = vmatpush1.msra.mxu0 %v4252
  %4254 = vmatprep.subr.mxu0 0.0
  %v4255 = vand.u32 %v171, 4294901760
  %4256 = vmatpush1.msra.mxu0 %v4255
  %4257 = vmatprep.subr.mxu0 0.0
  %v4258 = vand.u32 %v172, 4294901760
  %4259 = vmatpush1.msra.mxu0 %v4258
  %4260 = vmatprep.subr.mxu0 0.0
  %v4261 = vand.u32 %v173, 4294901760
  %4262 = vmatpush1.msra.mxu0 %v4261
  %4263 = vmatprep.subr.mxu0 0.0
  %v4264 = vand.u32 %v174, 4294901760
  %4265 = vmatpush1.msra.mxu0 %v4264
  %v4266 = vand.u32 %v22, 4294901760
  %4267 = vmatprep.mubr.f32.mxu0 %v4266
  %v4268 = vand.u32 %v21, 4294901760
  %4269 = vmatmul.mubr.f32.gmra.mrb[0].mxu0 %v4268
  %v4270 = vpop.f32.mrb[0].mxu0
  %v4271 = vadd.f32 %v4146, %v4270
  %v4272 = vpop.f32.mrb[0].mxu0
  %v4273 = vand.u32 %v30, 4294901760
  %4274 = vmatprep.mubr.f32.mxu0 %v4273
  %v4275 = vand.u32 %v29, 4294901760
  %4276 = vmatmul.mubr.f32.gmra.mrb[0].mxu0 %v4275
  %v4277 = vpop.f32.mrb[0].mxu0
  %v4278 = vadd.f32 %v4153, %v4277
  %v4279 = vpop.f32.mrb[0].mxu0
  %v4280 = vand.u32 %v38, 4294901760
  %4281 = vmatprep.mubr.f32.mxu0 %v4280
  %v4282 = vand.u32 %v37, 4294901760
  %4283 = vmatmul.mubr.f32.gmra.mrb[0].mxu0 %v4282
  %v4284 = vpop.f32.mrb[0].mxu0
  %v4285 = vadd.f32 %v4160, %v4284
  %v4286 = vpop.f32.mrb[0].mxu0
  %v4287 = vand.u32 %v46, 4294901760
  %4288 = vmatprep.mubr.f32.mxu0 %v4287
  %v4289 = vand.u32 %v45, 4294901760
  %4290 = vmatmul.mubr.f32.gmra.mrb[0].mxu0 %v4289
  %v4291 = vpop.f32.mrb[0].mxu0
  %v4292 = vadd.f32 %v4167, %v4291
  %v4293 = vpop.f32.mrb[0].mxu0
  %4294 = vdwg.mxu0
  %vm4295 = vcmask 523264
  %4296 = vst.msk [vmem:[%s3] sm:$0xff] %vm4295, %v4271
  %4297 = vst.msk [vmem:[%s3 + $0x8] sm:$0xff] %vm4295, %v4278
  %4298 = vst.msk [vmem:[%s3 + $0x10] sm:$0xff] %vm4295, %v4285
  %4299 = vst.msk [vmem:[%s3 + $0x18] sm:$0xff] %vm4295, %v4292
  %vm4300 = vcmp.le.f32.partialorder %v4271, %v4271
  %vm4301 = vcmp.le.f32.partialorder %v4278, %v4278
  %vm4302 = vcmp.le.f32.partialorder %v4285, %v4285
  %vm4303 = vcmp.le.f32.partialorder %v4292, %v4292
  %v4304 = vsel %vm4300, 1, 0
  %v4305 = vsel %vm4301, 1, 0
  %v4306 = vsel %vm4302, 1, 0
  %v4307 = vsel %vm4303, 1, 0
  %4308 = vrot.lane.b32.xlu0 %v4271, 1
  %v4309 = vpop.permute.xlu0 %4308
  %4310 = vrot.lane.b32.xlu0 %v4278, 1
  %v4311 = vpop.permute.xlu0 %4310
  %4312 = vrot.lane.b32.xlu0 %v4285, 1
  %v4313 = vpop.permute.xlu0 %4312
  %4314 = vrot.lane.b32.xlu0 %v4292, 1
  %v4315 = vpop.permute.xlu0 %4314
  %vm4316 = vcmp.le.f32.partialorder %v4309, %v4271
  %vm4317 = vcmp.le.f32.partialorder %v4311, %v4278
  %vm4318 = vcmp.le.f32.partialorder %v4313, %v4285
  %vm4319 = vcmp.le.f32.partialorder %v4315, %v4292
  %v4320 = vsel %vm4316, 1, 0
  %v4321 = vsel %vm4317, 1, 0
  %v4322 = vsel %vm4318, 1, 0
  %v4323 = vsel %vm4319, 1, 0
  %4324 = vrot.lane.b32.xlu0 %v4271, 2
  %v4325 = vpop.permute.xlu0 %4324
  %4326 = vrot.lane.b32.xlu0 %v4278, 2
  %v4327 = vpop.permute.xlu0 %4326
  %4328 = vrot.lane.b32.xlu0 %v4285, 2
  %v4329 = vpop.permute.xlu0 %4328
  %4330 = vrot.lane.b32.xlu0 %v4292, 2
  %v4331 = vpop.permute.xlu0 %4330
  %vm4332 = vcmp.le.f32.partialorder %v4325, %v4271
  %vm4333 = vcmp.le.f32.partialorder %v4327, %v4278
  %vm4334 = vcmp.le.f32.partialorder %v4329, %v4285
  %vm4335 = vcmp.le.f32.partialorder %v4331, %v4292
  %v4336 = vsel %vm4332, 1, 0
  %v4337 = vsel %vm4333, 1, 0
  %v4338 = vsel %vm4334, 1, 0
  %v4339 = vsel %vm4335, 1, 0
  %v4340 = vadd.s32 %v4304, %v4336
  %v4341 = vadd.s32 %v4305, %v4337
  %v4342 = vadd.s32 %v4306, %v4338
  %v4343 = vadd.s32 %v4307, %v4339
  %4344 = vrot.lane.b32.xlu0 %v4271, 3
  %v4345 = vpop.permute.xlu0 %4344
  %4346 = vrot.lane.b32.xlu0 %v4278, 3
  %v4347 = vpop.permute.xlu0 %4346
  %4348 = vrot.lane.b32.xlu0 %v4285, 3
  %v4349 = vpop.permute.xlu0 %4348
  %4350 = vrot.lane.b32.xlu0 %v4292, 3
  %v4351 = vpop.permute.xlu0 %4350
  %vm4352 = vcmp.le.f32.partialorder %v4345, %v4271
  %vm4353 = vcmp.le.f32.partialorder %v4347, %v4278
  %vm4354 = vcmp.le.f32.partialorder %v4349, %v4285
  %vm4355 = vcmp.le.f32.partialorder %v4351, %v4292
  %v4356 = vsel %vm4352, 1, 0
  %v4357 = vsel %vm4353, 1, 0
  %v4358 = vsel %vm4354, 1, 0
  %v4359 = vsel %vm4355, 1, 0
  %v4360 = vadd.s32 %v4320, %v4356
  %v4361 = vadd.s32 %v4321, %v4357
  %v4362 = vadd.s32 %v4322, %v4358
  %v4363 = vadd.s32 %v4323, %v4359
  %4364 = vrot.lane.b32.xlu0 %v4271, 4
  %v4365 = vpop.permute.xlu0 %4364
  %4366 = vrot.lane.b32.xlu0 %v4278, 4
  %v4367 = vpop.permute.xlu0 %4366
  %4368 = vrot.lane.b32.xlu0 %v4285, 4
  %v4369 = vpop.permute.xlu0 %4368
  %4370 = vrot.lane.b32.xlu0 %v4292, 4
  %v4371 = vpop.permute.xlu0 %4370
  %vm4372 = vcmp.le.f32.partialorder %v4365, %v4271
  %vm4373 = vcmp.le.f32.partialorder %v4367, %v4278
  %vm4374 = vcmp.le.f32.partialorder %v4369, %v4285
  %vm4375 = vcmp.le.f32.partialorder %v4371, %v4292
  %v4376 = vsel %vm4372, 1, 0
  %v4377 = vsel %vm4373, 1, 0
  %v4378 = vsel %vm4374, 1, 0
  %v4379 = vsel %vm4375, 1, 0
  %v4380 = vadd.s32 %v4340, %v4376
  %v4381 = vadd.s32 %v4341, %v4377
  %v4382 = vadd.s32 %v4342, %v4378
  %v4383 = vadd.s32 %v4343, %v4379
  %4384 = vrot.lane.b32.xlu0 %v4271, 5
  %v4385 = vpop.permute.xlu0 %4384
  %4386 = vrot.lane.b32.xlu0 %v4278, 5
  %v4387 = vpop.permute.xlu0 %4386
  %4388 = vrot.lane.b32.xlu0 %v4285, 5
  %v4389 = vpop.permute.xlu0 %4388
  %4390 = vrot.lane.b32.xlu0 %v4292, 5
  %v4391 = vpop.permute.xlu0 %4390
  %vm4392 = vcmp.le.f32.partialorder %v4385, %v4271
  %vm4393 = vcmp.le.f32.partialorder %v4387, %v4278
  %vm4394 = vcmp.le.f32.partialorder %v4389, %v4285
  %vm4395 = vcmp.le.f32.partialorder %v4391, %v4292
  %v4396 = vsel %vm4392, 1, 0
  %v4397 = vsel %vm4393, 1, 0
  %v4398 = vsel %vm4394, 1, 0
  %v4399 = vsel %vm4395, 1, 0
  %v4400 = vadd.s32 %v4360, %v4396
  %v4401 = vadd.s32 %v4361, %v4397
  %v4402 = vadd.s32 %v4362, %v4398
  %v4403 = vadd.s32 %v4363, %v4399
  %4404 = vrot.lane.b32.xlu0 %v4271, 6
  %v4405 = vpop.permute.xlu0 %4404
  %4406 = vrot.lane.b32.xlu0 %v4278, 6
  %v4407 = vpop.permute.xlu0 %4406
  %4408 = vrot.lane.b32.xlu0 %v4285, 6
  %v4409 = vpop.permute.xlu0 %4408
  %4410 = vrot.lane.b32.xlu0 %v4292, 6
  %v4411 = vpop.permute.xlu0 %4410
  %vm4412 = vcmp.le.f32.partialorder %v4405, %v4271
  %vm4413 = vcmp.le.f32.partialorder %v4407, %v4278
  %vm4414 = vcmp.le.f32.partialorder %v4409, %v4285
  %vm4415 = vcmp.le.f32.partialorder %v4411, %v4292
  %v4416 = vsel %vm4412, 1, 0
  %v4417 = vsel %vm4413, 1, 0
  %v4418 = vsel %vm4414, 1, 0
  %v4419 = vsel %vm4415, 1, 0
  %v4420 = vadd.s32 %v4380, %v4416
  %v4421 = vadd.s32 %v4381, %v4417
  %v4422 = vadd.s32 %v4382, %v4418
  %v4423 = vadd.s32 %v4383, %v4419
  %4424 = vrot.lane.b32.xlu0 %v4271, 7
  %v4425 = vpop.permute.xlu0 %4424
  %4426 = vrot.lane.b32.xlu0 %v4278, 7
  %v4427 = vpop.permute.xlu0 %4426
  %4428 = vrot.lane.b32.xlu0 %v4285, 7
  %v4429 = vpop.permute.xlu0 %4428
  %4430 = vrot.lane.b32.xlu0 %v4292, 7
  %v4431 = vpop.permute.xlu0 %4430
  %vm4432 = vcmp.le.f32.partialorder %v4425, %v4271
  %vm4433 = vcmp.le.f32.partialorder %v4427, %v4278
  %vm4434 = vcmp.le.f32.partialorder %v4429, %v4285
  %vm4435 = vcmp.le.f32.partialorder %v4431, %v4292
  %v4436 = vsel %vm4432, 1, 0
  %v4437 = vsel %vm4433, 1, 0
  %v4438 = vsel %vm4434, 1, 0
  %v4439 = vsel %vm4435, 1, 0
  %v4440 = vadd.s32 %v4400, %v4436
  %v4441 = vadd.s32 %v4401, %v4437
  %v4442 = vadd.s32 %v4402, %v4438
  %v4443 = vadd.s32 %v4403, %v4439
  %4444 = vrot.lane.b32.xlu0 %v4271, 8
  %v4445 = vpop.permute.xlu0 %4444
  %4446 = vrot.lane.b32.xlu0 %v4278, 8
  %v4447 = vpop.permute.xlu0 %4446
  %4448 = vrot.lane.b32.xlu0 %v4285, 8
  %v4449 = vpop.permute.xlu0 %4448
  %4450 = vrot.lane.b32.xlu0 %v4292, 8
  %v4451 = vpop.permute.xlu0 %4450
  %vm4452 = vcmp.le.f32.partialorder %v4445, %v4271
  %vm4453 = vcmp.le.f32.partialorder %v4447, %v4278
  %vm4454 = vcmp.le.f32.partialorder %v4449, %v4285
  %vm4455 = vcmp.le.f32.partialorder %v4451, %v4292
  %v4456 = vsel %vm4452, 1, 0
  %v4457 = vsel %vm4453, 1, 0
  %v4458 = vsel %vm4454, 1, 0
  %v4459 = vsel %vm4455, 1, 0
  %v4460 = vadd.s32 %v4420, %v4456
  %v4461 = vadd.s32 %v4421, %v4457
  %v4462 = vadd.s32 %v4422, %v4458
  %v4463 = vadd.s32 %v4423, %v4459
  %4464 = vrot.lane.b32.xlu0 %v4271, 9
  %v4465 = vpop.permute.xlu0 %4464
  %4466 = vrot.lane.b32.xlu0 %v4278, 9
  %v4467 = vpop.permute.xlu0 %4466
  %4468 = vrot.lane.b32.xlu0 %v4285, 9
  %v4469 = vpop.permute.xlu0 %4468
  %4470 = vrot.lane.b32.xlu0 %v4292, 9
  %v4471 = vpop.permute.xlu0 %4470
  %vm4472 = vcmp.le.f32.partialorder %v4465, %v4271
  %vm4473 = vcmp.le.f32.partialorder %v4467, %v4278
  %vm4474 = vcmp.le.f32.partialorder %v4469, %v4285
  %vm4475 = vcmp.le.f32.partialorder %v4471, %v4292
  %v4476 = vsel %vm4472, 1, 0
  %v4477 = vsel %vm4473, 1, 0
  %v4478 = vsel %vm4474, 1, 0
  %v4479 = vsel %vm4475, 1, 0
  %v4480 = vadd.s32 %v4440, %v4476
  %v4481 = vadd.s32 %v4441, %v4477
  %v4482 = vadd.s32 %v4442, %v4478
  %v4483 = vadd.s32 %v4443, %v4479
  %4484 = vrot.lane.b32.xlu0 %v4271, 10
  %v4485 = vpop.permute.xlu0 %4484
  %4486 = vrot.lane.b32.xlu0 %v4278, 10
  %v4487 = vpop.permute.xlu0 %4486
  %4488 = vrot.lane.b32.xlu0 %v4285, 10
  %v4489 = vpop.permute.xlu0 %4488
  %4490 = vrot.lane.b32.xlu0 %v4292, 10
  %v4491 = vpop.permute.xlu0 %4490
  %vm4492 = vcmp.le.f32.partialorder %v4485, %v4271
  %vm4493 = vcmp.le.f32.partialorder %v4487, %v4278
  %vm4494 = vcmp.le.f32.partialorder %v4489, %v4285
  %vm4495 = vcmp.le.f32.partialorder %v4491, %v4292
  %v4496 = vsel %vm4492, 1, 0
  %v4497 = vsel %vm4493, 1, 0
  %v4498 = vsel %vm4494, 1, 0
  %v4499 = vsel %vm4495, 1, 0
  %v4500 = vadd.s32 %v4460, %v4496
  %v4501 = vadd.s32 %v4461, %v4497
  %v4502 = vadd.s32 %v4462, %v4498
  %v4503 = vadd.s32 %v4463, %v4499
  %4504 = vrot.lane.b32.xlu0 %v4271, 11
  %v4505 = vpop.permute.xlu0 %4504
  %4506 = vrot.lane.b32.xlu0 %v4278, 11
  %v4507 = vpop.permute.xlu0 %4506
  %4508 = vrot.lane.b32.xlu0 %v4285, 11
  %v4509 = vpop.permute.xlu0 %4508
  %4510 = vrot.lane.b32.xlu0 %v4292, 11
  %v4511 = vpop.permute.xlu0 %4510
  %vm4512 = vcmp.le.f32.partialorder %v4505, %v4271
  %vm4513 = vcmp.le.f32.partialorder %v4507, %v4278
  %vm4514 = vcmp.le.f32.partialorder %v4509, %v4285
  %vm4515 = vcmp.le.f32.partialorder %v4511, %v4292
  %v4516 = vsel %vm4512, 1, 0
  %v4517 = vsel %vm4513, 1, 0
  %v4518 = vsel %vm4514, 1, 0
  %v4519 = vsel %vm4515, 1, 0
  %v4520 = vadd.s32 %v4480, %v4516
  %v4521 = vadd.s32 %v4481, %v4517
  %v4522 = vadd.s32 %v4482, %v4518
  %v4523 = vadd.s32 %v4483, %v4519
  %4524 = vrot.lane.b32.xlu0 %v4271, 12
  %v4525 = vpop.permute.xlu0 %4524
  %4526 = vrot.lane.b32.xlu0 %v4278, 12
  %v4527 = vpop.permute.xlu0 %4526
  %4528 = vrot.lane.b32.xlu0 %v4285, 12
  %v4529 = vpop.permute.xlu0 %4528
  %4530 = vrot.lane.b32.xlu0 %v4292, 12
  %v4531 = vpop.permute.xlu0 %4530
  %vm4532 = vcmp.le.f32.partialorder %v4525, %v4271
  %vm4533 = vcmp.le.f32.partialorder %v4527, %v4278
  %vm4534 = vcmp.le.f32.partialorder %v4529, %v4285
  %vm4535 = vcmp.le.f32.partialorder %v4531, %v4292
  %v4536 = vsel %vm4532, 1, 0
  %v4537 = vsel %vm4533, 1, 0
  %v4538 = vsel %vm4534, 1, 0
  %v4539 = vsel %vm4535, 1, 0
  %v4540 = vadd.s32 %v4500, %v4536
  %v4541 = vadd.s32 %v4501, %v4537
  %v4542 = vadd.s32 %v4502, %v4538
  %v4543 = vadd.s32 %v4503, %v4539
  %4544 = vrot.lane.b32.xlu0 %v4271, 13
  %v4545 = vpop.permute.xlu0 %4544
  %4546 = vrot.lane.b32.xlu0 %v4278, 13
  %v4547 = vpop.permute.xlu0 %4546
  %4548 = vrot.lane.b32.xlu0 %v4285, 13
  %v4549 = vpop.permute.xlu0 %4548
  %4550 = vrot.lane.b32.xlu0 %v4292, 13
  %v4551 = vpop.permute.xlu0 %4550
  %vm4552 = vcmp.le.f32.partialorder %v4545, %v4271
  %vm4553 = vcmp.le.f32.partialorder %v4547, %v4278
  %vm4554 = vcmp.le.f32.partialorder %v4549, %v4285
  %vm4555 = vcmp.le.f32.partialorder %v4551, %v4292
  %v4556 = vsel %vm4552, 1, 0
  %v4557 = vsel %vm4553, 1, 0
  %v4558 = vsel %vm4554, 1, 0
  %v4559 = vsel %vm4555, 1, 0
  %v4560 = vadd.s32 %v4520, %v4556
  %v4561 = vadd.s32 %v4521, %v4557
  %v4562 = vadd.s32 %v4522, %v4558
  %v4563 = vadd.s32 %v4523, %v4559
  %4564 = vrot.lane.b32.xlu0 %v4271, 14
  %v4565 = vpop.permute.xlu0 %4564
  %4566 = vrot.lane.b32.xlu0 %v4278, 14
  %v4567 = vpop.permute.xlu0 %4566
  %4568 = vrot.lane.b32.xlu0 %v4285, 14
  %v4569 = vpop.permute.xlu0 %4568
  %4570 = vrot.lane.b32.xlu0 %v4292, 14
  %v4571 = vpop.permute.xlu0 %4570
  %vm4572 = vcmp.le.f32.partialorder %v4565, %v4271
  %vm4573 = vcmp.le.f32.partialorder %v4567, %v4278
  %vm4574 = vcmp.le.f32.partialorder %v4569, %v4285
  %vm4575 = vcmp.le.f32.partialorder %v4571, %v4292
  %v4576 = vsel %vm4572, 1, 0
  %v4577 = vsel %vm4573, 1, 0
  %v4578 = vsel %vm4574, 1, 0
  %v4579 = vsel %vm4575, 1, 0
  %v4580 = vadd.s32 %v4540, %v4576
  %v4581 = vadd.s32 %v4541, %v4577
  %v4582 = vadd.s32 %v4542, %v4578
  %v4583 = vadd.s32 %v4543, %v4579
  %4584 = vrot.lane.b32.xlu0 %v4271, 15
  %v4585 = vpop.permute.xlu0 %4584
  %4586 = vrot.lane.b32.xlu0 %v4278, 15
  %v4587 = vpop.permute.xlu0 %4586
  %4588 = vrot.lane.b32.xlu0 %v4285, 15
  %v4589 = vpop.permute.xlu0 %4588
  %4590 = vrot.lane.b32.xlu0 %v4292, 15
  %v4591 = vpop.permute.xlu0 %4590
  %vm4592 = vcmp.le.f32.partialorder %v4585, %v4271
  %vm4593 = vcmp.le.f32.partialorder %v4587, %v4278
  %vm4594 = vcmp.le.f32.partialorder %v4589, %v4285
  %vm4595 = vcmp.le.f32.partialorder %v4591, %v4292
  %v4596 = vsel %vm4592, 1, 0
  %v4597 = vsel %vm4593, 1, 0
  %v4598 = vsel %vm4594, 1, 0
  %v4599 = vsel %vm4595, 1, 0
  %v4600 = vadd.s32 %v4560, %v4596
  %v4601 = vadd.s32 %v4561, %v4597
  %v4602 = vadd.s32 %v4562, %v4598
  %v4603 = vadd.s32 %v4563, %v4599
  %4604 = vrot.lane.b32.xlu0 %v4271, 16
  %v4605 = vpop.permute.xlu0 %4604
  %4606 = vrot.lane.b32.xlu0 %v4278, 16
  %v4607 = vpop.permute.xlu0 %4606
  %4608 = vrot.lane.b32.xlu0 %v4285, 16
  %v4609 = vpop.permute.xlu0 %4608
  %4610 = vrot.lane.b32.xlu0 %v4292, 16
  %v4611 = vpop.permute.xlu0 %4610
  %vm4612 = vcmp.le.f32.partialorder %v4605, %v4271
  %vm4613 = vcmp.le.f32.partialorder %v4607, %v4278
  %vm4614 = vcmp.le.f32.partialorder %v4609, %v4285
  %vm4615 = vcmp.le.f32.partialorder %v4611, %v4292
  %v4616 = vsel %vm4612, 1, 0
  %v4617 = vsel %vm4613, 1, 0
  %v4618 = vsel %vm4614, 1, 0
  %v4619 = vsel %vm4615, 1, 0
  %v4620 = vadd.s32 %v4580, %v4616
  %v4621 = vadd.s32 %v4581, %v4617
  %v4622 = vadd.s32 %v4582, %v4618
  %v4623 = vadd.s32 %v4583, %v4619
  %4624 = vrot.lane.b32.xlu0 %v4271, 17
  %v4625 = vpop.permute.xlu0 %4624
  %4626 = vrot.lane.b32.xlu0 %v4278, 17
  %v4627 = vpop.permute.xlu0 %4626
  %4628 = vrot.lane.b32.xlu0 %v4285, 17
  %v4629 = vpop.permute.xlu0 %4628
  %4630 = vrot.lane.b32.xlu0 %v4292, 17
  %v4631 = vpop.permute.xlu0 %4630
  %vm4632 = vcmp.le.f32.partialorder %v4625, %v4271
  %vm4633 = vcmp.le.f32.partialorder %v4627, %v4278
  %vm4634 = vcmp.le.f32.partialorder %v4629, %v4285
  %vm4635 = vcmp.le.f32.partialorder %v4631, %v4292
  %v4636 = vsel %vm4632, 1, 0
  %v4637 = vsel %vm4633, 1, 0
  %v4638 = vsel %vm4634, 1, 0
  %v4639 = vsel %vm4635, 1, 0
  %v4640 = vadd.s32 %v4600, %v4636
  %v4641 = vadd.s32 %v4601, %v4637
  %v4642 = vadd.s32 %v4602, %v4638
  %v4643 = vadd.s32 %v4603, %v4639
  %4644 = vrot.lane.b32.xlu0 %v4271, 18
  %v4645 = vpop.permute.xlu0 %4644
  %4646 = vrot.lane.b32.xlu0 %v4278, 18
  %v4647 = vpop.permute.xlu0 %4646
  %4648 = vrot.lane.b32.xlu0 %v4285, 18
  %v4649 = vpop.permute.xlu0 %4648
  %4650 = vrot.lane.b32.xlu0 %v4292, 18
  %v4651 = vpop.permute.xlu0 %4650
  %vm4652 = vcmp.le.f32.partialorder %v4645, %v4271
  %vm4653 = vcmp.le.f32.partialorder %v4647, %v4278
  %vm4654 = vcmp.le.f32.partialorder %v4649, %v4285
  %vm4655 = vcmp.le.f32.partialorder %v4651, %v4292
  %v4656 = vsel %vm4652, 1, 0
  %v4657 = vsel %vm4653, 1, 0
  %v4658 = vsel %vm4654, 1, 0
  %v4659 = vsel %vm4655, 1, 0
  %v4660 = vadd.s32 %v4620, %v4656
  %v4661 = vadd.s32 %v4621, %v4657
  %v4662 = vadd.s32 %v4622, %v4658
  %v4663 = vadd.s32 %v4623, %v4659
  %4664 = vrot.lane.b32.xlu0 %v4271, 19
  %v4665 = vpop.permute.xlu0 %4664
  %4666 = vrot.lane.b32.xlu0 %v4278, 19
  %v4667 = vpop.permute.xlu0 %4666
  %4668 = vrot.lane.b32.xlu0 %v4285, 19
  %v4669 = vpop.permute.xlu0 %4668
  %4670 = vrot.lane.b32.xlu0 %v4292, 19
  %v4671 = vpop.permute.xlu0 %4670
  %vm4672 = vcmp.le.f32.partialorder %v4665, %v4271
  %vm4673 = vcmp.le.f32.partialorder %v4667, %v4278
  %vm4674 = vcmp.le.f32.partialorder %v4669, %v4285
  %vm4675 = vcmp.le.f32.partialorder %v4671, %v4292
  %v4676 = vsel %vm4672, 1, 0
  %v4677 = vsel %vm4673, 1, 0
  %v4678 = vsel %vm4674, 1, 0
  %v4679 = vsel %vm4675, 1, 0
  %v4680 = vadd.s32 %v4640, %v4676
  %v4681 = vadd.s32 %v4641, %v4677
  %v4682 = vadd.s32 %v4642, %v4678
  %v4683 = vadd.s32 %v4643, %v4679
  %4684 = vrot.lane.b32.xlu0 %v4271, 20
  %v4685 = vpop.permute.xlu0 %4684
  %4686 = vrot.lane.b32.xlu0 %v4278, 20
  %v4687 = vpop.permute.xlu0 %4686
  %4688 = vrot.lane.b32.xlu0 %v4285, 20
  %v4689 = vpop.permute.xlu0 %4688
  %4690 = vrot.lane.b32.xlu0 %v4292, 20
  %v4691 = vpop.permute.xlu0 %4690
  %vm4692 = vcmp.le.f32.partialorder %v4685, %v4271
  %vm4693 = vcmp.le.f32.partialorder %v4687, %v4278
  %vm4694 = vcmp.le.f32.partialorder %v4689, %v4285
  %vm4695 = vcmp.le.f32.partialorder %v4691, %v4292
  %v4696 = vsel %vm4692, 1, 0
  %v4697 = vsel %vm4693, 1, 0
  %v4698 = vsel %vm4694, 1, 0
  %v4699 = vsel %vm4695, 1, 0
  %v4700 = vadd.s32 %v4660, %v4696
  %v4701 = vadd.s32 %v4661, %v4697
  %v4702 = vadd.s32 %v4662, %v4698
  %v4703 = vadd.s32 %v4663, %v4699
  %4704 = vrot.lane.b32.xlu0 %v4271, 21
  %v4705 = vpop.permute.xlu0 %4704
  %4706 = vrot.lane.b32.xlu0 %v4278, 21
  %v4707 = vpop.permute.xlu0 %4706
  %4708 = vrot.lane.b32.xlu0 %v4285, 21
  %v4709 = vpop.permute.xlu0 %4708
  %4710 = vrot.lane.b32.xlu0 %v4292, 21
  %v4711 = vpop.permute.xlu0 %4710
  %vm4712 = vcmp.le.f32.partialorder %v4705, %v4271
  %vm4713 = vcmp.le.f32.partialorder %v4707, %v4278
  %vm4714 = vcmp.le.f32.partialorder %v4709, %v4285
  %vm4715 = vcmp.le.f32.partialorder %v4711, %v4292
  %v4716 = vsel %vm4712, 1, 0
  %v4717 = vsel %vm4713, 1, 0
  %v4718 = vsel %vm4714, 1, 0
  %v4719 = vsel %vm4715, 1, 0
  %v4720 = vadd.s32 %v4680, %v4716
  %v4721 = vadd.s32 %v4681, %v4717
  %v4722 = vadd.s32 %v4682, %v4718
  %v4723 = vadd.s32 %v4683, %v4719
  %4724 = vrot.lane.b32.xlu0 %v4271, 22
  %v4725 = vpop.permute.xlu0 %4724
  %4726 = vrot.lane.b32.xlu0 %v4278, 22
  %v4727 = vpop.permute.xlu0 %4726
  %4728 = vrot.lane.b32.xlu0 %v4285, 22
  %v4729 = vpop.permute.xlu0 %4728
  %4730 = vrot.lane.b32.xlu0 %v4292, 22
  %v4731 = vpop.permute.xlu0 %4730
  %vm4732 = vcmp.le.f32.partialorder %v4725, %v4271
  %vm4733 = vcmp.le.f32.partialorder %v4727, %v4278
  %vm4734 = vcmp.le.f32.partialorder %v4729, %v4285
  %vm4735 = vcmp.le.f32.partialorder %v4731, %v4292
  %v4736 = vsel %vm4732, 1, 0
  %v4737 = vsel %vm4733, 1, 0
  %v4738 = vsel %vm4734, 1, 0
  %v4739 = vsel %vm4735, 1, 0
  %v4740 = vadd.s32 %v4700, %v4736
  %v4741 = vadd.s32 %v4701, %v4737
  %v4742 = vadd.s32 %v4702, %v4738
  %v4743 = vadd.s32 %v4703, %v4739
  %4744 = vrot.lane.b32.xlu0 %v4271, 23
  %v4745 = vpop.permute.xlu0 %4744
  %4746 = vrot.lane.b32.xlu0 %v4278, 23
  %v4747 = vpop.permute.xlu0 %4746
  %4748 = vrot.lane.b32.xlu0 %v4285, 23
  %v4749 = vpop.permute.xlu0 %4748
  %4750 = vrot.lane.b32.xlu0 %v4292, 23
  %v4751 = vpop.permute.xlu0 %4750
  %vm4752 = vcmp.le.f32.partialorder %v4745, %v4271
  %vm4753 = vcmp.le.f32.partialorder %v4747, %v4278
  %vm4754 = vcmp.le.f32.partialorder %v4749, %v4285
  %vm4755 = vcmp.le.f32.partialorder %v4751, %v4292
  %v4756 = vsel %vm4752, 1, 0
  %v4757 = vsel %vm4753, 1, 0
  %v4758 = vsel %vm4754, 1, 0
  %v4759 = vsel %vm4755, 1, 0
  %v4760 = vadd.s32 %v4720, %v4756
  %v4761 = vadd.s32 %v4721, %v4757
  %v4762 = vadd.s32 %v4722, %v4758
  %v4763 = vadd.s32 %v4723, %v4759
  %4764 = vrot.lane.b32.xlu0 %v4271, 24
  %v4765 = vpop.permute.xlu0 %4764
  %4766 = vrot.lane.b32.xlu0 %v4278, 24
  %v4767 = vpop.permute.xlu0 %4766
  %4768 = vrot.lane.b32.xlu0 %v4285, 24
  %v4769 = vpop.permute.xlu0 %4768
  %4770 = vrot.lane.b32.xlu0 %v4292, 24
  %v4771 = vpop.permute.xlu0 %4770
  %vm4772 = vcmp.le.f32.partialorder %v4765, %v4271
  %vm4773 = vcmp.le.f32.partialorder %v4767, %v4278
  %vm4774 = vcmp.le.f32.partialorder %v4769, %v4285
  %vm4775 = vcmp.le.f32.partialorder %v4771, %v4292
  %v4776 = vsel %vm4772, 1, 0
  %v4777 = vsel %vm4773, 1, 0
  %v4778 = vsel %vm4774, 1, 0
  %v4779 = vsel %vm4775, 1, 0
  %v4780 = vadd.s32 %v4740, %v4776
  %v4781 = vadd.s32 %v4741, %v4777
  %v4782 = vadd.s32 %v4742, %v4778
  %v4783 = vadd.s32 %v4743, %v4779
  %4784 = vrot.lane.b32.xlu0 %v4271, 25
  %v4785 = vpop.permute.xlu0 %4784
  %4786 = vrot.lane.b32.xlu0 %v4278, 25
  %v4787 = vpop.permute.xlu0 %4786
  %4788 = vrot.lane.b32.xlu0 %v4285, 25
  %v4789 = vpop.permute.xlu0 %4788
  %4790 = vrot.lane.b32.xlu0 %v4292, 25
  %v4791 = vpop.permute.xlu0 %4790
  %vm4792 = vcmp.le.f32.partialorder %v4785, %v4271
  %vm4793 = vcmp.le.f32.partialorder %v4787, %v4278
  %vm4794 = vcmp.le.f32.partialorder %v4789, %v4285
  %vm4795 = vcmp.le.f32.partialorder %v4791, %v4292
  %v4796 = vsel %vm4792, 1, 0
  %v4797 = vsel %vm4793, 1, 0
  %v4798 = vsel %vm4794, 1, 0
  %v4799 = vsel %vm4795, 1, 0
  %v4800 = vadd.s32 %v4760, %v4796
  %v4801 = vadd.s32 %v4761, %v4797
  %v4802 = vadd.s32 %v4762, %v4798
  %v4803 = vadd.s32 %v4763, %v4799
  %4804 = vrot.lane.b32.xlu0 %v4271, 26
  %v4805 = vpop.permute.xlu0 %4804
  %4806 = vrot.lane.b32.xlu0 %v4278, 26
  %v4807 = vpop.permute.xlu0 %4806
  %4808 = vrot.lane.b32.xlu0 %v4285, 26
  %v4809 = vpop.permute.xlu0 %4808
  %4810 = vrot.lane.b32.xlu0 %v4292, 26
  %v4811 = vpop.permute.xlu0 %4810
  %vm4812 = vcmp.le.f32.partialorder %v4805, %v4271
  %vm4813 = vcmp.le.f32.partialorder %v4807, %v4278
  %vm4814 = vcmp.le.f32.partialorder %v4809, %v4285
  %vm4815 = vcmp.le.f32.partialorder %v4811, %v4292
  %v4816 = vsel %vm4812, 1, 0
  %v4817 = vsel %vm4813, 1, 0
  %v4818 = vsel %vm4814, 1, 0
  %v4819 = vsel %vm4815, 1, 0
  %v4820 = vadd.s32 %v4780, %v4816
  %v4821 = vadd.s32 %v4781, %v4817
  %v4822 = vadd.s32 %v4782, %v4818
  %v4823 = vadd.s32 %v4783, %v4819
  %4824 = vrot.lane.b32.xlu0 %v4271, 27
  %v4825 = vpop.permute.xlu0 %4824
  %4826 = vrot.lane.b32.xlu0 %v4278, 27
  %v4827 = vpop.permute.xlu0 %4826
  %4828 = vrot.lane.b32.xlu0 %v4285, 27
  %v4829 = vpop.permute.xlu0 %4828
  %4830 = vrot.lane.b32.xlu0 %v4292, 27
  %v4831 = vpop.permute.xlu0 %4830
  %vm4832 = vcmp.le.f32.partialorder %v4825, %v4271
  %vm4833 = vcmp.le.f32.partialorder %v4827, %v4278
  %vm4834 = vcmp.le.f32.partialorder %v4829, %v4285
  %vm4835 = vcmp.le.f32.partialorder %v4831, %v4292
  %v4836 = vsel %vm4832, 1, 0
  %v4837 = vsel %vm4833, 1, 0
  %v4838 = vsel %vm4834, 1, 0
  %v4839 = vsel %vm4835, 1, 0
  %v4840 = vadd.s32 %v4800, %v4836
  %v4841 = vadd.s32 %v4801, %v4837
  %v4842 = vadd.s32 %v4802, %v4838
  %v4843 = vadd.s32 %v4803, %v4839
  %4844 = vrot.lane.b32.xlu0 %v4271, 28
  %v4845 = vpop.permute.xlu0 %4844
  %4846 = vrot.lane.b32.xlu0 %v4278, 28
  %v4847 = vpop.permute.xlu0 %4846
  %4848 = vrot.lane.b32.xlu0 %v4285, 28
  %v4849 = vpop.permute.xlu0 %4848
  %4850 = vrot.lane.b32.xlu0 %v4292, 28
  %v4851 = vpop.permute.xlu0 %4850
  %vm4852 = vcmp.le.f32.partialorder %v4845, %v4271
  %vm4853 = vcmp.le.f32.partialorder %v4847, %v4278
  %vm4854 = vcmp.le.f32.partialorder %v4849, %v4285
  %vm4855 = vcmp.le.f32.partialorder %v4851, %v4292
  %v4856 = vsel %vm4852, 1, 0
  %v4857 = vsel %vm4853, 1, 0
  %v4858 = vsel %vm4854, 1, 0
  %v4859 = vsel %vm4855, 1, 0
  %v4860 = vadd.s32 %v4820, %v4856
  %v4861 = vadd.s32 %v4821, %v4857
  %v4862 = vadd.s32 %v4822, %v4858
  %v4863 = vadd.s32 %v4823, %v4859
  %4864 = vrot.lane.b32.xlu0 %v4271, 29
  %v4865 = vpop.permute.xlu0 %4864
  %4866 = vrot.lane.b32.xlu0 %v4278, 29
  %v4867 = vpop.permute.xlu0 %4866
  %4868 = vrot.lane.b32.xlu0 %v4285, 29
  %v4869 = vpop.permute.xlu0 %4868
  %4870 = vrot.lane.b32.xlu0 %v4292, 29
  %v4871 = vpop.permute.xlu0 %4870
  %vm4872 = vcmp.le.f32.partialorder %v4865, %v4271
  %vm4873 = vcmp.le.f32.partialorder %v4867, %v4278
  %vm4874 = vcmp.le.f32.partialorder %v4869, %v4285
  %vm4875 = vcmp.le.f32.partialorder %v4871, %v4292
  %v4876 = vsel %vm4872, 1, 0
  %v4877 = vsel %vm4873, 1, 0
  %v4878 = vsel %vm4874, 1, 0
  %v4879 = vsel %vm4875, 1, 0
  %v4880 = vadd.s32 %v4840, %v4876
  %v4881 = vadd.s32 %v4841, %v4877
  %v4882 = vadd.s32 %v4842, %v4878
  %v4883 = vadd.s32 %v4843, %v4879
  %4884 = vrot.lane.b32.xlu0 %v4271, 30
  %v4885 = vpop.permute.xlu0 %4884
  %4886 = vrot.lane.b32.xlu0 %v4278, 30
  %v4887 = vpop.permute.xlu0 %4886
  %4888 = vrot.lane.b32.xlu0 %v4285, 30
  %v4889 = vpop.permute.xlu0 %4888
  %4890 = vrot.lane.b32.xlu0 %v4292, 30
  %v4891 = vpop.permute.xlu0 %4890
  %vm4892 = vcmp.le.f32.partialorder %v4885, %v4271
  %vm4893 = vcmp.le.f32.partialorder %v4887, %v4278
  %vm4894 = vcmp.le.f32.partialorder %v4889, %v4285
  %vm4895 = vcmp.le.f32.partialorder %v4891, %v4292
  %v4896 = vsel %vm4892, 1, 0
  %v4897 = vsel %vm4893, 1, 0
  %v4898 = vsel %vm4894, 1, 0
  %v4899 = vsel %vm4895, 1, 0
  %v4900 = vadd.s32 %v4860, %v4896
  %v4901 = vadd.s32 %v4861, %v4897
  %v4902 = vadd.s32 %v4862, %v4898
  %v4903 = vadd.s32 %v4863, %v4899
  %4904 = vrot.lane.b32.xlu0 %v4271, 31
  %v4905 = vpop.permute.xlu0 %4904
  %4906 = vrot.lane.b32.xlu0 %v4278, 31
  %v4907 = vpop.permute.xlu0 %4906
  %4908 = vrot.lane.b32.xlu0 %v4285, 31
  %v4909 = vpop.permute.xlu0 %4908
  %4910 = vrot.lane.b32.xlu0 %v4292, 31
  %v4911 = vpop.permute.xlu0 %4910
  %vm4912 = vcmp.le.f32.partialorder %v4905, %v4271
  %vm4913 = vcmp.le.f32.partialorder %v4907, %v4278
  %vm4914 = vcmp.le.f32.partialorder %v4909, %v4285
  %vm4915 = vcmp.le.f32.partialorder %v4911, %v4292
  %v4916 = vsel %vm4912, 1, 0
  %v4917 = vsel %vm4913, 1, 0
  %v4918 = vsel %vm4914, 1, 0
  %v4919 = vsel %vm4915, 1, 0
  %v4920 = vadd.s32 %v4880, %v4916
  %v4921 = vadd.s32 %v4881, %v4917
  %v4922 = vadd.s32 %v4882, %v4918
  %v4923 = vadd.s32 %v4883, %v4919
  %4924 = vrot.lane.b32.xlu0 %v4271, 32
  %v4925 = vpop.permute.xlu0 %4924
  %4926 = vrot.lane.b32.xlu0 %v4278, 32
  %v4927 = vpop.permute.xlu0 %4926
  %4928 = vrot.lane.b32.xlu0 %v4285, 32
  %v4929 = vpop.permute.xlu0 %4928
  %4930 = vrot.lane.b32.xlu0 %v4292, 32
  %v4931 = vpop.permute.xlu0 %4930
  %vm4932 = vcmp.le.f32.partialorder %v4925, %v4271
  %vm4933 = vcmp.le.f32.partialorder %v4927, %v4278
  %vm4934 = vcmp.le.f32.partialorder %v4929, %v4285
  %vm4935 = vcmp.le.f32.partialorder %v4931, %v4292
  %v4936 = vsel %vm4932, 1, 0
  %v4937 = vsel %vm4933, 1, 0
  %v4938 = vsel %vm4934, 1, 0
  %v4939 = vsel %vm4935, 1, 0
  %v4940 = vadd.s32 %v4900, %v4936
  %v4941 = vadd.s32 %v4901, %v4937
  %v4942 = vadd.s32 %v4902, %v4938
  %v4943 = vadd.s32 %v4903, %v4939
  %4944 = vrot.lane.b32.xlu0 %v4271, 33
  %v4945 = vpop.permute.xlu0 %4944
  %4946 = vrot.lane.b32.xlu0 %v4278, 33
  %v4947 = vpop.permute.xlu0 %4946
  %4948 = vrot.lane.b32.xlu0 %v4285, 33
  %v4949 = vpop.permute.xlu0 %4948
  %4950 = vrot.lane.b32.xlu0 %v4292, 33
  %v4951 = vpop.permute.xlu0 %4950
  %vm4952 = vcmp.le.f32.partialorder %v4945, %v4271
  %vm4953 = vcmp.le.f32.partialorder %v4947, %v4278
  %vm4954 = vcmp.le.f32.partialorder %v4949, %v4285
  %vm4955 = vcmp.le.f32.partialorder %v4951, %v4292
  %v4956 = vsel %vm4952, 1, 0
  %v4957 = vsel %vm4953, 1, 0
  %v4958 = vsel %vm4954, 1, 0
  %v4959 = vsel %vm4955, 1, 0
  %v4960 = vadd.s32 %v4920, %v4956
  %v4961 = vadd.s32 %v4921, %v4957
  %v4962 = vadd.s32 %v4922, %v4958
  %v4963 = vadd.s32 %v4923, %v4959
  %4964 = vrot.lane.b32.xlu0 %v4271, 34
  %v4965 = vpop.permute.xlu0 %4964
  %4966 = vrot.lane.b32.xlu0 %v4278, 34
  %v4967 = vpop.permute.xlu0 %4966
  %4968 = vrot.lane.b32.xlu0 %v4285, 34
  %v4969 = vpop.permute.xlu0 %4968
  %4970 = vrot.lane.b32.xlu0 %v4292, 34
  %v4971 = vpop.permute.xlu0 %4970
  %vm4972 = vcmp.le.f32.partialorder %v4965, %v4271
  %vm4973 = vcmp.le.f32.partialorder %v4967, %v4278
  %vm4974 = vcmp.le.f32.partialorder %v4969, %v4285
  %vm4975 = vcmp.le.f32.partialorder %v4971, %v4292
  %v4976 = vsel %vm4972, 1, 0
  %v4977 = vsel %vm4973, 1, 0
  %v4978 = vsel %vm4974, 1, 0
  %v4979 = vsel %vm4975, 1, 0
  %v4980 = vadd.s32 %v4940, %v4976
  %v4981 = vadd.s32 %v4941, %v4977
  %v4982 = vadd.s32 %v4942, %v4978
  %v4983 = vadd.s32 %v4943, %v4979
  %4984 = vrot.lane.b32.xlu0 %v4271, 35
  %v4985 = vpop.permute.xlu0 %4984
  %4986 = vrot.lane.b32.xlu0 %v4278, 35
  %v4987 = vpop.permute.xlu0 %4986
  %4988 = vrot.lane.b32.xlu0 %v4285, 35
  %v4989 = vpop.permute.xlu0 %4988
  %4990 = vrot.lane.b32.xlu0 %v4292, 35
  %v4991 = vpop.permute.xlu0 %4990
  %vm4992 = vcmp.le.f32.partialorder %v4985, %v4271
  %vm4993 = vcmp.le.f32.partialorder %v4987, %v4278
  %vm4994 = vcmp.le.f32.partialorder %v4989, %v4285
  %vm4995 = vcmp.le.f32.partialorder %v4991, %v4292
  %v4996 = vsel %vm4992, 1, 0
  %v4997 = vsel %vm4993, 1, 0
  %v4998 = vsel %vm4994, 1, 0
  %v4999 = vsel %vm4995, 1, 0
  %v5000 = vadd.s32 %v4960, %v4996
  %v5001 = vadd.s32 %v4961, %v4997
  %v5002 = vadd.s32 %v4962, %v4998
  %v5003 = vadd.s32 %v4963, %v4999
  %5004 = vrot.lane.b32.xlu0 %v4271, 36
  %v5005 = vpop.permute.xlu0 %5004
  %5006 = vrot.lane.b32.xlu0 %v4278, 36
  %v5007 = vpop.permute.xlu0 %5006
  %5008 = vrot.lane.b32.xlu0 %v4285, 36
  %v5009 = vpop.permute.xlu0 %5008
  %5010 = vrot.lane.b32.xlu0 %v4292, 36
  %v5011 = vpop.permute.xlu0 %5010
  %vm5012 = vcmp.le.f32.partialorder %v5005, %v4271
  %vm5013 = vcmp.le.f32.partialorder %v5007, %v4278
  %vm5014 = vcmp.le.f32.partialorder %v5009, %v4285
  %vm5015 = vcmp.le.f32.partialorder %v5011, %v4292
  %v5016 = vsel %vm5012, 1, 0
  %v5017 = vsel %vm5013, 1, 0
  %v5018 = vsel %vm5014, 1, 0
  %v5019 = vsel %vm5015, 1, 0
  %v5020 = vadd.s32 %v4980, %v5016
  %v5021 = vadd.s32 %v4981, %v5017
  %v5022 = vadd.s32 %v4982, %v5018
  %v5023 = vadd.s32 %v4983, %v5019
  %5024 = vrot.lane.b32.xlu0 %v4271, 37
  %v5025 = vpop.permute.xlu0 %5024
  %5026 = vrot.lane.b32.xlu0 %v4278, 37
  %v5027 = vpop.permute.xlu0 %5026
  %5028 = vrot.lane.b32.xlu0 %v4285, 37
  %v5029 = vpop.permute.xlu0 %5028
  %5030 = vrot.lane.b32.xlu0 %v4292, 37
  %v5031 = vpop.permute.xlu0 %5030
  %vm5032 = vcmp.le.f32.partialorder %v5025, %v4271
  %vm5033 = vcmp.le.f32.partialorder %v5027, %v4278
  %vm5034 = vcmp.le.f32.partialorder %v5029, %v4285
  %vm5035 = vcmp.le.f32.partialorder %v5031, %v4292
  %v5036 = vsel %vm5032, 1, 0
  %v5037 = vsel %vm5033, 1, 0
  %v5038 = vsel %vm5034, 1, 0
  %v5039 = vsel %vm5035, 1, 0
  %v5040 = vadd.s32 %v5000, %v5036
  %v5041 = vadd.s32 %v5001, %v5037
  %v5042 = vadd.s32 %v5002, %v5038
  %v5043 = vadd.s32 %v5003, %v5039
  %5044 = vrot.lane.b32.xlu0 %v4271, 38
  %v5045 = vpop.permute.xlu0 %5044
  %5046 = vrot.lane.b32.xlu0 %v4278, 38
  %v5047 = vpop.permute.xlu0 %5046
  %5048 = vrot.lane.b32.xlu0 %v4285, 38
  %v5049 = vpop.permute.xlu0 %5048
  %5050 = vrot.lane.b32.xlu0 %v4292, 38
  %v5051 = vpop.permute.xlu0 %5050
  %vm5052 = vcmp.le.f32.partialorder %v5045, %v4271
  %vm5053 = vcmp.le.f32.partialorder %v5047, %v4278
  %vm5054 = vcmp.le.f32.partialorder %v5049, %v4285
  %vm5055 = vcmp.le.f32.partialorder %v5051, %v4292
  %v5056 = vsel %vm5052, 1, 0
  %v5057 = vsel %vm5053, 1, 0
  %v5058 = vsel %vm5054, 1, 0
  %v5059 = vsel %vm5055, 1, 0
  %v5060 = vadd.s32 %v5020, %v5056
  %v5061 = vadd.s32 %v5021, %v5057
  %v5062 = vadd.s32 %v5022, %v5058
  %v5063 = vadd.s32 %v5023, %v5059
  %5064 = vrot.lane.b32.xlu0 %v4271, 39
  %v5065 = vpop.permute.xlu0 %5064
  %5066 = vrot.lane.b32.xlu0 %v4278, 39
  %v5067 = vpop.permute.xlu0 %5066
  %5068 = vrot.lane.b32.xlu0 %v4285, 39
  %v5069 = vpop.permute.xlu0 %5068
  %5070 = vrot.lane.b32.xlu0 %v4292, 39
  %v5071 = vpop.permute.xlu0 %5070
  %vm5072 = vcmp.le.f32.partialorder %v5065, %v4271
  %vm5073 = vcmp.le.f32.partialorder %v5067, %v4278
  %vm5074 = vcmp.le.f32.partialorder %v5069, %v4285
  %vm5075 = vcmp.le.f32.partialorder %v5071, %v4292
  %v5076 = vsel %vm5072, 1, 0
  %v5077 = vsel %vm5073, 1, 0
  %v5078 = vsel %vm5074, 1, 0
  %v5079 = vsel %vm5075, 1, 0
  %v5080 = vadd.s32 %v5040, %v5076
  %v5081 = vadd.s32 %v5041, %v5077
  %v5082 = vadd.s32 %v5042, %v5078
  %v5083 = vadd.s32 %v5043, %v5079
  %5084 = vrot.lane.b32.xlu0 %v4271, 40
  %v5085 = vpop.permute.xlu0 %5084
  %5086 = vrot.lane.b32.xlu0 %v4278, 40
  %v5087 = vpop.permute.xlu0 %5086
  %5088 = vrot.lane.b32.xlu0 %v4285, 40
  %v5089 = vpop.permute.xlu0 %5088
  %5090 = vrot.lane.b32.xlu0 %v4292, 40
  %v5091 = vpop.permute.xlu0 %5090
  %vm5092 = vcmp.le.f32.partialorder %v5085, %v4271
  %vm5093 = vcmp.le.f32.partialorder %v5087, %v4278
  %vm5094 = vcmp.le.f32.partialorder %v5089, %v4285
  %vm5095 = vcmp.le.f32.partialorder %v5091, %v4292
  %v5096 = vsel %vm5092, 1, 0
  %v5097 = vsel %vm5093, 1, 0
  %v5098 = vsel %vm5094, 1, 0
  %v5099 = vsel %vm5095, 1, 0
  %v5100 = vadd.s32 %v5060, %v5096
  %v5101 = vadd.s32 %v5061, %v5097
  %v5102 = vadd.s32 %v5062, %v5098
  %v5103 = vadd.s32 %v5063, %v5099
  %5104 = vrot.lane.b32.xlu0 %v4271, 41
  %v5105 = vpop.permute.xlu0 %5104
  %5106 = vrot.lane.b32.xlu0 %v4278, 41
  %v5107 = vpop.permute.xlu0 %5106
  %5108 = vrot.lane.b32.xlu0 %v4285, 41
  %v5109 = vpop.permute.xlu0 %5108
  %5110 = vrot.lane.b32.xlu0 %v4292, 41
  %v5111 = vpop.permute.xlu0 %5110
  %vm5112 = vcmp.le.f32.partialorder %v5105, %v4271
  %vm5113 = vcmp.le.f32.partialorder %v5107, %v4278
  %vm5114 = vcmp.le.f32.partialorder %v5109, %v4285
  %vm5115 = vcmp.le.f32.partialorder %v5111, %v4292
  %v5116 = vsel %vm5112, 1, 0
  %v5117 = vsel %vm5113, 1, 0
  %v5118 = vsel %vm5114, 1, 0
  %v5119 = vsel %vm5115, 1, 0
  %v5120 = vadd.s32 %v5080, %v5116
  %v5121 = vadd.s32 %v5081, %v5117
  %v5122 = vadd.s32 %v5082, %v5118
  %v5123 = vadd.s32 %v5083, %v5119
  %5124 = vrot.lane.b32.xlu0 %v4271, 42
  %v5125 = vpop.permute.xlu0 %5124
  %5126 = vrot.lane.b32.xlu0 %v4278, 42
  %v5127 = vpop.permute.xlu0 %5126
  %5128 = vrot.lane.b32.xlu0 %v4285, 42
  %v5129 = vpop.permute.xlu0 %5128
  %5130 = vrot.lane.b32.xlu0 %v4292, 42
  %v5131 = vpop.permute.xlu0 %5130
  %vm5132 = vcmp.le.f32.partialorder %v5125, %v4271
  %vm5133 = vcmp.le.f32.partialorder %v5127, %v4278
  %vm5134 = vcmp.le.f32.partialorder %v5129, %v4285
  %vm5135 = vcmp.le.f32.partialorder %v5131, %v4292
  %v5136 = vsel %vm5132, 1, 0
  %v5137 = vsel %vm5133, 1, 0
  %v5138 = vsel %vm5134, 1, 0
  %v5139 = vsel %vm5135, 1, 0
  %v5140 = vadd.s32 %v5100, %v5136
  %v5141 = vadd.s32 %v5101, %v5137
  %v5142 = vadd.s32 %v5102, %v5138
  %v5143 = vadd.s32 %v5103, %v5139
  %5144 = vrot.lane.b32.xlu0 %v4271, 43
  %v5145 = vpop.permute.xlu0 %5144
  %5146 = vrot.lane.b32.xlu0 %v4278, 43
  %v5147 = vpop.permute.xlu0 %5146
  %5148 = vrot.lane.b32.xlu0 %v4285, 43
  %v5149 = vpop.permute.xlu0 %5148
  %5150 = vrot.lane.b32.xlu0 %v4292, 43
  %v5151 = vpop.permute.xlu0 %5150
  %vm5152 = vcmp.le.f32.partialorder %v5145, %v4271
  %vm5153 = vcmp.le.f32.partialorder %v5147, %v4278
  %vm5154 = vcmp.le.f32.partialorder %v5149, %v4285
  %vm5155 = vcmp.le.f32.partialorder %v5151, %v4292
  %v5156 = vsel %vm5152, 1, 0
  %v5157 = vsel %vm5153, 1, 0
  %v5158 = vsel %vm5154, 1, 0
  %v5159 = vsel %vm5155, 1, 0
  %v5160 = vadd.s32 %v5120, %v5156
  %v5161 = vadd.s32 %v5121, %v5157
  %v5162 = vadd.s32 %v5122, %v5158
  %v5163 = vadd.s32 %v5123, %v5159
  %5164 = vrot.lane.b32.xlu0 %v4271, 44
  %v5165 = vpop.permute.xlu0 %5164
  %5166 = vrot.lane.b32.xlu0 %v4278, 44
  %v5167 = vpop.permute.xlu0 %5166
  %5168 = vrot.lane.b32.xlu0 %v4285, 44
  %v5169 = vpop.permute.xlu0 %5168
  %5170 = vrot.lane.b32.xlu0 %v4292, 44
  %v5171 = vpop.permute.xlu0 %5170
  %vm5172 = vcmp.le.f32.partialorder %v5165, %v4271
  %vm5173 = vcmp.le.f32.partialorder %v5167, %v4278
  %vm5174 = vcmp.le.f32.partialorder %v5169, %v4285
  %vm5175 = vcmp.le.f32.partialorder %v5171, %v4292
  %v5176 = vsel %vm5172, 1, 0
  %v5177 = vsel %vm5173, 1, 0
  %v5178 = vsel %vm5174, 1, 0
  %v5179 = vsel %vm5175, 1, 0
  %v5180 = vadd.s32 %v5140, %v5176
  %v5181 = vadd.s32 %v5141, %v5177
  %v5182 = vadd.s32 %v5142, %v5178
  %v5183 = vadd.s32 %v5143, %v5179
  %5184 = vrot.lane.b32.xlu0 %v4271, 45
  %v5185 = vpop.permute.xlu0 %5184
  %5186 = vrot.lane.b32.xlu0 %v4278, 45
  %v5187 = vpop.permute.xlu0 %5186
  %5188 = vrot.lane.b32.xlu0 %v4285, 45
  %v5189 = vpop.permute.xlu0 %5188
  %5190 = vrot.lane.b32.xlu0 %v4292, 45
  %v5191 = vpop.permute.xlu0 %5190
  %vm5192 = vcmp.le.f32.partialorder %v5185, %v4271
  %vm5193 = vcmp.le.f32.partialorder %v5187, %v4278
  %vm5194 = vcmp.le.f32.partialorder %v5189, %v4285
  %vm5195 = vcmp.le.f32.partialorder %v5191, %v4292
  %v5196 = vsel %vm5192, 1, 0
  %v5197 = vsel %vm5193, 1, 0
  %v5198 = vsel %vm5194, 1, 0
  %v5199 = vsel %vm5195, 1, 0
  %v5200 = vadd.s32 %v5160, %v5196
  %v5201 = vadd.s32 %v5161, %v5197
  %v5202 = vadd.s32 %v5162, %v5198
  %v5203 = vadd.s32 %v5163, %v5199
  %5204 = vrot.lane.b32.xlu0 %v4271, 46
  %v5205 = vpop.permute.xlu0 %5204
  %5206 = vrot.lane.b32.xlu0 %v4278, 46
  %v5207 = vpop.permute.xlu0 %5206
  %5208 = vrot.lane.b32.xlu0 %v4285, 46
  %v5209 = vpop.permute.xlu0 %5208
  %5210 = vrot.lane.b32.xlu0 %v4292, 46
  %v5211 = vpop.permute.xlu0 %5210
  %vm5212 = vcmp.le.f32.partialorder %v5205, %v4271
  %vm5213 = vcmp.le.f32.partialorder %v5207, %v4278
  %vm5214 = vcmp.le.f32.partialorder %v5209, %v4285
  %vm5215 = vcmp.le.f32.partialorder %v5211, %v4292
  %v5216 = vsel %vm5212, 1, 0
  %v5217 = vsel %vm5213, 1, 0
  %v5218 = vsel %vm5214, 1, 0
  %v5219 = vsel %vm5215, 1, 0
  %v5220 = vadd.s32 %v5180, %v5216
  %v5221 = vadd.s32 %v5181, %v5217
  %v5222 = vadd.s32 %v5182, %v5218
  %v5223 = vadd.s32 %v5183, %v5219
  %5224 = vrot.lane.b32.xlu0 %v4271, 47
  %v5225 = vpop.permute.xlu0 %5224
  %5226 = vrot.lane.b32.xlu0 %v4278, 47
  %v5227 = vpop.permute.xlu0 %5226
  %5228 = vrot.lane.b32.xlu0 %v4285, 47
  %v5229 = vpop.permute.xlu0 %5228
  %5230 = vrot.lane.b32.xlu0 %v4292, 47
  %v5231 = vpop.permute.xlu0 %5230
  %vm5232 = vcmp.le.f32.partialorder %v5225, %v4271
  %vm5233 = vcmp.le.f32.partialorder %v5227, %v4278
  %vm5234 = vcmp.le.f32.partialorder %v5229, %v4285
  %vm5235 = vcmp.le.f32.partialorder %v5231, %v4292
  %v5236 = vsel %vm5232, 1, 0
  %v5237 = vsel %vm5233, 1, 0
  %v5238 = vsel %vm5234, 1, 0
  %v5239 = vsel %vm5235, 1, 0
  %v5240 = vadd.s32 %v5200, %v5236
  %v5241 = vadd.s32 %v5201, %v5237
  %v5242 = vadd.s32 %v5202, %v5238
  %v5243 = vadd.s32 %v5203, %v5239
  %5244 = vrot.lane.b32.xlu0 %v4271, 48
  %v5245 = vpop.permute.xlu0 %5244
  %5246 = vrot.lane.b32.xlu0 %v4278, 48
  %v5247 = vpop.permute.xlu0 %5246
  %5248 = vrot.lane.b32.xlu0 %v4285, 48
  %v5249 = vpop.permute.xlu0 %5248
  %5250 = vrot.lane.b32.xlu0 %v4292, 48
  %v5251 = vpop.permute.xlu0 %5250
  %vm5252 = vcmp.le.f32.partialorder %v5245, %v4271
  %vm5253 = vcmp.le.f32.partialorder %v5247, %v4278
  %vm5254 = vcmp.le.f32.partialorder %v5249, %v4285
  %vm5255 = vcmp.le.f32.partialorder %v5251, %v4292
  %v5256 = vsel %vm5252, 1, 0
  %v5257 = vsel %vm5253, 1, 0
  %v5258 = vsel %vm5254, 1, 0
  %v5259 = vsel %vm5255, 1, 0
  %v5260 = vadd.s32 %v5220, %v5256
  %v5261 = vadd.s32 %v5221, %v5257
  %v5262 = vadd.s32 %v5222, %v5258
  %v5263 = vadd.s32 %v5223, %v5259
  %5264 = vrot.lane.b32.xlu0 %v4271, 49
  %v5265 = vpop.permute.xlu0 %5264
  %5266 = vrot.lane.b32.xlu0 %v4278, 49
  %v5267 = vpop.permute.xlu0 %5266
  %5268 = vrot.lane.b32.xlu0 %v4285, 49
  %v5269 = vpop.permute.xlu0 %5268
  %5270 = vrot.lane.b32.xlu0 %v4292, 49
  %v5271 = vpop.permute.xlu0 %5270
  %vm5272 = vcmp.le.f32.partialorder %v5265, %v4271
  %vm5273 = vcmp.le.f32.partialorder %v5267, %v4278
  %vm5274 = vcmp.le.f32.partialorder %v5269, %v4285
  %vm5275 = vcmp.le.f32.partialorder %v5271, %v4292
  %v5276 = vsel %vm5272, 1, 0
  %v5277 = vsel %vm5273, 1, 0
  %v5278 = vsel %vm5274, 1, 0
  %v5279 = vsel %vm5275, 1, 0
  %v5280 = vadd.s32 %v5240, %v5276
  %v5281 = vadd.s32 %v5241, %v5277
  %v5282 = vadd.s32 %v5242, %v5278
  %v5283 = vadd.s32 %v5243, %v5279
  %5284 = vrot.lane.b32.xlu0 %v4271, 50
  %v5285 = vpop.permute.xlu0 %5284
  %5286 = vrot.lane.b32.xlu0 %v4278, 50
  %v5287 = vpop.permute.xlu0 %5286
  %5288 = vrot.lane.b32.xlu0 %v4285, 50
  %v5289 = vpop.permute.xlu0 %5288
  %5290 = vrot.lane.b32.xlu0 %v4292, 50
  %v5291 = vpop.permute.xlu0 %5290
  %vm5292 = vcmp.le.f32.partialorder %v5285, %v4271
  %vm5293 = vcmp.le.f32.partialorder %v5287, %v4278
  %vm5294 = vcmp.le.f32.partialorder %v5289, %v4285
  %vm5295 = vcmp.le.f32.partialorder %v5291, %v4292
  %v5296 = vsel %vm5292, 1, 0
  %v5297 = vsel %vm5293, 1, 0
  %v5298 = vsel %vm5294, 1, 0
  %v5299 = vsel %vm5295, 1, 0
  %v5300 = vadd.s32 %v5260, %v5296
  %v5301 = vadd.s32 %v5261, %v5297
  %v5302 = vadd.s32 %v5262, %v5298
  %v5303 = vadd.s32 %v5263, %v5299
  %5304 = vrot.lane.b32.xlu0 %v4271, 51
  %v5305 = vpop.permute.xlu0 %5304
  %5306 = vrot.lane.b32.xlu0 %v4278, 51
  %v5307 = vpop.permute.xlu0 %5306
  %5308 = vrot.lane.b32.xlu0 %v4285, 51
  %v5309 = vpop.permute.xlu0 %5308
  %5310 = vrot.lane.b32.xlu0 %v4292, 51
  %v5311 = vpop.permute.xlu0 %5310
  %vm5312 = vcmp.le.f32.partialorder %v5305, %v4271
  %vm5313 = vcmp.le.f32.partialorder %v5307, %v4278
  %vm5314 = vcmp.le.f32.partialorder %v5309, %v4285
  %vm5315 = vcmp.le.f32.partialorder %v5311, %v4292
  %v5316 = vsel %vm5312, 1, 0
  %v5317 = vsel %vm5313, 1, 0
  %v5318 = vsel %vm5314, 1, 0
  %v5319 = vsel %vm5315, 1, 0
  %v5320 = vadd.s32 %v5280, %v5316
  %v5321 = vadd.s32 %v5281, %v5317
  %v5322 = vadd.s32 %v5282, %v5318
  %v5323 = vadd.s32 %v5283, %v5319
  %5324 = vrot.lane.b32.xlu0 %v4271, 52
  %v5325 = vpop.permute.xlu0 %5324
  %5326 = vrot.lane.b32.xlu0 %v4278, 52
  %v5327 = vpop.permute.xlu0 %5326
  %5328 = vrot.lane.b32.xlu0 %v4285, 52
  %v5329 = vpop.permute.xlu0 %5328
  %5330 = vrot.lane.b32.xlu0 %v4292, 52
  %v5331 = vpop.permute.xlu0 %5330
  %vm5332 = vcmp.le.f32.partialorder %v5325, %v4271
  %vm5333 = vcmp.le.f32.partialorder %v5327, %v4278
  %vm5334 = vcmp.le.f32.partialorder %v5329, %v4285
  %vm5335 = vcmp.le.f32.partialorder %v5331, %v4292
  %v5336 = vsel %vm5332, 1, 0
  %v5337 = vsel %vm5333, 1, 0
  %v5338 = vsel %vm5334, 1, 0
  %v5339 = vsel %vm5335, 1, 0
  %v5340 = vadd.s32 %v5300, %v5336
  %v5341 = vadd.s32 %v5301, %v5337
  %v5342 = vadd.s32 %v5302, %v5338
  %v5343 = vadd.s32 %v5303, %v5339
  %5344 = vrot.lane.b32.xlu0 %v4271, 53
  %v5345 = vpop.permute.xlu0 %5344
  %5346 = vrot.lane.b32.xlu0 %v4278, 53
  %v5347 = vpop.permute.xlu0 %5346
  %5348 = vrot.lane.b32.xlu0 %v4285, 53
  %v5349 = vpop.permute.xlu0 %5348
  %5350 = vrot.lane.b32.xlu0 %v4292, 53
  %v5351 = vpop.permute.xlu0 %5350
  %vm5352 = vcmp.le.f32.partialorder %v5345, %v4271
  %vm5353 = vcmp.le.f32.partialorder %v5347, %v4278
  %vm5354 = vcmp.le.f32.partialorder %v5349, %v4285
  %vm5355 = vcmp.le.f32.partialorder %v5351, %v4292
  %v5356 = vsel %vm5352, 1, 0
  %v5357 = vsel %vm5353, 1, 0
  %v5358 = vsel %vm5354, 1, 0
  %v5359 = vsel %vm5355, 1, 0
  %v5360 = vadd.s32 %v5320, %v5356
  %v5361 = vadd.s32 %v5321, %v5357
  %v5362 = vadd.s32 %v5322, %v5358
  %v5363 = vadd.s32 %v5323, %v5359
  %5364 = vrot.lane.b32.xlu0 %v4271, 54
  %v5365 = vpop.permute.xlu0 %5364
  %5366 = vrot.lane.b32.xlu0 %v4278, 54
  %v5367 = vpop.permute.xlu0 %5366
  %5368 = vrot.lane.b32.xlu0 %v4285, 54
  %v5369 = vpop.permute.xlu0 %5368
  %5370 = vrot.lane.b32.xlu0 %v4292, 54
  %v5371 = vpop.permute.xlu0 %5370
  %vm5372 = vcmp.le.f32.partialorder %v5365, %v4271
  %vm5373 = vcmp.le.f32.partialorder %v5367, %v4278
  %vm5374 = vcmp.le.f32.partialorder %v5369, %v4285
  %vm5375 = vcmp.le.f32.partialorder %v5371, %v4292
  %v5376 = vsel %vm5372, 1, 0
  %v5377 = vsel %vm5373, 1, 0
  %v5378 = vsel %vm5374, 1, 0
  %v5379 = vsel %vm5375, 1, 0
  %v5380 = vadd.s32 %v5340, %v5376
  %v5381 = vadd.s32 %v5341, %v5377
  %v5382 = vadd.s32 %v5342, %v5378
  %v5383 = vadd.s32 %v5343, %v5379
  %5384 = vrot.lane.b32.xlu0 %v4271, 55
  %v5385 = vpop.permute.xlu0 %5384
  %5386 = vrot.lane.b32.xlu0 %v4278, 55
  %v5387 = vpop.permute.xlu0 %5386
  %5388 = vrot.lane.b32.xlu0 %v4285, 55
  %v5389 = vpop.permute.xlu0 %5388
  %5390 = vrot.lane.b32.xlu0 %v4292, 55
  %v5391 = vpop.permute.xlu0 %5390
  %vm5392 = vcmp.le.f32.partialorder %v5385, %v4271
  %vm5393 = vcmp.le.f32.partialorder %v5387, %v4278
  %vm5394 = vcmp.le.f32.partialorder %v5389, %v4285
  %vm5395 = vcmp.le.f32.partialorder %v5391, %v4292
  %v5396 = vsel %vm5392, 1, 0
  %v5397 = vsel %vm5393, 1, 0
  %v5398 = vsel %vm5394, 1, 0
  %v5399 = vsel %vm5395, 1, 0
  %v5400 = vadd.s32 %v5360, %v5396
  %v5401 = vadd.s32 %v5361, %v5397
  %v5402 = vadd.s32 %v5362, %v5398
  %v5403 = vadd.s32 %v5363, %v5399
  %5404 = vrot.lane.b32.xlu0 %v4271, 56
  %v5405 = vpop.permute.xlu0 %5404
  %5406 = vrot.lane.b32.xlu0 %v4278, 56
  %v5407 = vpop.permute.xlu0 %5406
  %5408 = vrot.lane.b32.xlu0 %v4285, 56
  %v5409 = vpop.permute.xlu0 %5408
  %5410 = vrot.lane.b32.xlu0 %v4292, 56
  %v5411 = vpop.permute.xlu0 %5410
  %vm5412 = vcmp.le.f32.partialorder %v5405, %v4271
  %vm5413 = vcmp.le.f32.partialorder %v5407, %v4278
  %vm5414 = vcmp.le.f32.partialorder %v5409, %v4285
  %vm5415 = vcmp.le.f32.partialorder %v5411, %v4292
  %v5416 = vsel %vm5412, 1, 0
  %v5417 = vsel %vm5413, 1, 0
  %v5418 = vsel %vm5414, 1, 0
  %v5419 = vsel %vm5415, 1, 0
  %v5420 = vadd.s32 %v5380, %v5416
  %v5421 = vadd.s32 %v5381, %v5417
  %v5422 = vadd.s32 %v5382, %v5418
  %v5423 = vadd.s32 %v5383, %v5419
  %5424 = vrot.lane.b32.xlu0 %v4271, 57
  %v5425 = vpop.permute.xlu0 %5424
  %5426 = vrot.lane.b32.xlu0 %v4278, 57
  %v5427 = vpop.permute.xlu0 %5426
  %5428 = vrot.lane.b32.xlu0 %v4285, 57
  %v5429 = vpop.permute.xlu0 %5428
  %5430 = vrot.lane.b32.xlu0 %v4292, 57
  %v5431 = vpop.permute.xlu0 %5430
  %vm5432 = vcmp.le.f32.partialorder %v5425, %v4271
  %vm5433 = vcmp.le.f32.partialorder %v5427, %v4278
  %vm5434 = vcmp.le.f32.partialorder %v5429, %v4285
  %vm5435 = vcmp.le.f32.partialorder %v5431, %v4292
  %v5436 = vsel %vm5432, 1, 0
  %v5437 = vsel %vm5433, 1, 0
  %v5438 = vsel %vm5434, 1, 0
  %v5439 = vsel %vm5435, 1, 0
  %v5440 = vadd.s32 %v5400, %v5436
  %v5441 = vadd.s32 %v5401, %v5437
  %v5442 = vadd.s32 %v5402, %v5438
  %v5443 = vadd.s32 %v5403, %v5439
  %5444 = vrot.lane.b32.xlu0 %v4271, 58
  %v5445 = vpop.permute.xlu0 %5444
  %5446 = vrot.lane.b32.xlu0 %v4278, 58
  %v5447 = vpop.permute.xlu0 %5446
  %5448 = vrot.lane.b32.xlu0 %v4285, 58
  %v5449 = vpop.permute.xlu0 %5448
  %5450 = vrot.lane.b32.xlu0 %v4292, 58
  %v5451 = vpop.permute.xlu0 %5450
  %vm5452 = vcmp.le.f32.partialorder %v5445, %v4271
  %vm5453 = vcmp.le.f32.partialorder %v5447, %v4278
  %vm5454 = vcmp.le.f32.partialorder %v5449, %v4285
  %vm5455 = vcmp.le.f32.partialorder %v5451, %v4292
  %v5456 = vsel %vm5452, 1, 0
  %v5457 = vsel %vm5453, 1, 0
  %v5458 = vsel %vm5454, 1, 0
  %v5459 = vsel %vm5455, 1, 0
  %v5460 = vadd.s32 %v5420, %v5456
  %v5461 = vadd.s32 %v5421, %v5457
  %v5462 = vadd.s32 %v5422, %v5458
  %v5463 = vadd.s32 %v5423, %v5459
  %5464 = vrot.lane.b32.xlu0 %v4271, 59
  %v5465 = vpop.permute.xlu0 %5464
  %5466 = vrot.lane.b32.xlu0 %v4278, 59
  %v5467 = vpop.permute.xlu0 %5466
  %5468 = vrot.lane.b32.xlu0 %v4285, 59
  %v5469 = vpop.permute.xlu0 %5468
  %5470 = vrot.lane.b32.xlu0 %v4292, 59
  %v5471 = vpop.permute.xlu0 %5470
  %vm5472 = vcmp.le.f32.partialorder %v5465, %v4271
  %vm5473 = vcmp.le.f32.partialorder %v5467, %v4278
  %vm5474 = vcmp.le.f32.partialorder %v5469, %v4285
  %vm5475 = vcmp.le.f32.partialorder %v5471, %v4292
  %v5476 = vsel %vm5472, 1, 0
  %v5477 = vsel %vm5473, 1, 0
  %v5478 = vsel %vm5474, 1, 0
  %v5479 = vsel %vm5475, 1, 0
  %v5480 = vadd.s32 %v5440, %v5476
  %v5481 = vadd.s32 %v5441, %v5477
  %v5482 = vadd.s32 %v5442, %v5478
  %v5483 = vadd.s32 %v5443, %v5479
  %5484 = vrot.lane.b32.xlu0 %v4271, 60
  %v5485 = vpop.permute.xlu0 %5484
  %5486 = vrot.lane.b32.xlu0 %v4278, 60
  %v5487 = vpop.permute.xlu0 %5486
  %5488 = vrot.lane.b32.xlu0 %v4285, 60
  %v5489 = vpop.permute.xlu0 %5488
  %5490 = vrot.lane.b32.xlu0 %v4292, 60
  %v5491 = vpop.permute.xlu0 %5490
  %vm5492 = vcmp.le.f32.partialorder %v5485, %v4271
  %vm5493 = vcmp.le.f32.partialorder %v5487, %v4278
  %vm5494 = vcmp.le.f32.partialorder %v5489, %v4285
  %vm5495 = vcmp.le.f32.partialorder %v5491, %v4292
  %v5496 = vsel %vm5492, 1, 0
  %v5497 = vsel %vm5493, 1, 0
  %v5498 = vsel %vm5494, 1, 0
  %v5499 = vsel %vm5495, 1, 0
  %v5500 = vadd.s32 %v5460, %v5496
  %v5501 = vadd.s32 %v5461, %v5497
  %v5502 = vadd.s32 %v5462, %v5498
  %v5503 = vadd.s32 %v5463, %v5499
  %5504 = vrot.lane.b32.xlu0 %v4271, 61
  %v5505 = vpop.permute.xlu0 %5504
  %5506 = vrot.lane.b32.xlu0 %v4278, 61
  %v5507 = vpop.permute.xlu0 %5506
  %5508 = vrot.lane.b32.xlu0 %v4285, 61
  %v5509 = vpop.permute.xlu0 %5508
  %5510 = vrot.lane.b32.xlu0 %v4292, 61
  %v5511 = vpop.permute.xlu0 %5510
  %vm5512 = vcmp.le.f32.partialorder %v5505, %v4271
  %vm5513 = vcmp.le.f32.partialorder %v5507, %v4278
  %vm5514 = vcmp.le.f32.partialorder %v5509, %v4285
  %vm5515 = vcmp.le.f32.partialorder %v5511, %v4292
  %v5516 = vsel %vm5512, 1, 0
  %v5517 = vsel %vm5513, 1, 0
  %v5518 = vsel %vm5514, 1, 0
  %v5519 = vsel %vm5515, 1, 0
  %v5520 = vadd.s32 %v5480, %v5516
  %v5521 = vadd.s32 %v5481, %v5517
  %v5522 = vadd.s32 %v5482, %v5518
  %v5523 = vadd.s32 %v5483, %v5519
  %5524 = vrot.lane.b32.xlu0 %v4271, 62
  %v5525 = vpop.permute.xlu0 %5524
  %5526 = vrot.lane.b32.xlu0 %v4278, 62
  %v5527 = vpop.permute.xlu0 %5526
  %5528 = vrot.lane.b32.xlu0 %v4285, 62
  %v5529 = vpop.permute.xlu0 %5528
  %5530 = vrot.lane.b32.xlu0 %v4292, 62
  %v5531 = vpop.permute.xlu0 %5530
  %vm5532 = vcmp.le.f32.partialorder %v5525, %v4271
  %vm5533 = vcmp.le.f32.partialorder %v5527, %v4278
  %vm5534 = vcmp.le.f32.partialorder %v5529, %v4285
  %vm5535 = vcmp.le.f32.partialorder %v5531, %v4292
  %v5536 = vsel %vm5532, 1, 0
  %v5537 = vsel %vm5533, 1, 0
  %v5538 = vsel %vm5534, 1, 0
  %v5539 = vsel %vm5535, 1, 0
  %v5540 = vadd.s32 %v5500, %v5536
  %v5541 = vadd.s32 %v5501, %v5537
  %v5542 = vadd.s32 %v5502, %v5538
  %v5543 = vadd.s32 %v5503, %v5539
  %5544 = vrot.lane.b32.xlu0 %v4271, 63
  %v5545 = vpop.permute.xlu0 %5544
  %5546 = vrot.lane.b32.xlu0 %v4278, 63
  %v5547 = vpop.permute.xlu0 %5546
  %5548 = vrot.lane.b32.xlu0 %v4285, 63
  %v5549 = vpop.permute.xlu0 %5548
  %5550 = vrot.lane.b32.xlu0 %v4292, 63
  %v5551 = vpop.permute.xlu0 %5550
  %vm5552 = vcmp.le.f32.partialorder %v5545, %v4271
  %vm5553 = vcmp.le.f32.partialorder %v5547, %v4278
  %vm5554 = vcmp.le.f32.partialorder %v5549, %v4285
  %vm5555 = vcmp.le.f32.partialorder %v5551, %v4292
  %v5556 = vsel %vm5552, 1, 0
  %v5557 = vsel %vm5553, 1, 0
  %v5558 = vsel %vm5554, 1, 0
  %v5559 = vsel %vm5555, 1, 0
  %v5560 = vadd.s32 %v5520, %v5556
  %v5561 = vadd.s32 %v5521, %v5557
  %v5562 = vadd.s32 %v5522, %v5558
  %v5563 = vadd.s32 %v5523, %v5559
  %v5564 = vadd.s32 %v5540, %v5560
  %v5565 = vadd.s32 %v5541, %v5561
  %v5566 = vadd.s32 %v5542, %v5562
  %v5567 = vadd.s32 %v5543, %v5563
  %vm5568 = vcmp.ge.s32.totalorder %v5564, 32
  %vm5569 = vcmp.ge.s32.totalorder %v5565, 32
  %vm5570 = vcmp.ge.s32.totalorder %v5566, 32
  %vm5571 = vcmp.ge.s32.totalorder %v5567, 32
  %v5572 = vsel %vm5568, %v4271, 1e+30
  %v5573 = vsel %vm5569, %v4278, 1e+30
  %v5574 = vsel %vm5570, %v4285, 1e+30
  %v5575 = vsel %vm5571, %v4292, 1e+30
  %5576 = vmin.xlane.f32.xlu0 %v5572
  %v5577 = vpop.xlane.xlu0 %5576
  %5578 = vmin.xlane.f32.xlu0 %v5573
  %v5579 = vpop.xlane.xlu0 %5578
  %5580 = vmin.xlane.f32.xlu0 %v5574
  %v5581 = vpop.xlane.xlu0 %5580
  %5582 = vmin.xlane.f32.xlu0 %v5575
  %v5583 = vpop.xlane.xlu0 %5582
  %vm5584 = vcmp.gt.f32.partialorder %v4271, %v5577
  %vm5585 = vcmp.gt.f32.partialorder %v4278, %v5579
  %vm5586 = vcmp.gt.f32.partialorder %v4285, %v5581
  %vm5587 = vcmp.gt.f32.partialorder %v4292, %v5583
  %vm5588 = vmpackc.low %vm5585, %vm5584
  %vm5589 = vmpackc.low %vm5587, %vm5586
  %vm5590 = vmpackc.even %vm5589, %vm5588
  %v5591 = vsel %vm5590, 16843009, 0
  %v5592 = vunpack.c.0.s8 %v5591
  %v5593 = vunpack.c.1.s8 %v5591
  %v5594 = vunpack.c.2.s8 %v5591
  %v5595 = vunpack.c.3.s8 %v5591
  %v5596 = vpack.c.b16 %v5592, %v5592
  %v5597 = vpack.c.b8 %v5596, %v5596
  %v5598 = vpack.c.b16 %v5593, %v5593
  %v5599 = vpack.c.b8 %v5598, %v5598
  %v5600 = vpack.c.b16 %v5594, %v5594
  %v5601 = vpack.c.b8 %v5600, %v5600
  %v5602 = vpack.c.b16 %v5595, %v5595
  %v5603 = vpack.c.b8 %v5602, %v5602
  %vm5604 = vcmask 517120
  %5605 = vst.msk [vmem:[%s2] sm:$0x3] %vm5604, %v5597
  %5606 = vst.msk [vmem:[%s2 + $0x2] sm:$0x3] %vm5604, %v5599
  %5607 = vst.msk [vmem:[%s2 + $0x4] sm:$0x3] %vm5604, %v5601
  %5608 = vst.msk [vmem:[%s2 + $0x6] sm:$0x3] %vm5604, %v5603
  // Predicated region
  $region10: #{phash_pallas.1} parent=0 // pred_check
    _
  $region11: #{phash_pallas.1} parent=0 // pred_check_branch
    %5610 = sbr.rel (0) target = $region13
  $region12: #{phash_pallas.1} parent=0 // pred_region
    _
  $region13: #{phash_pallas.1} parent=0 // pred_fallthru
    _
  // Predicated region
  $region14: #{phash_pallas.1} parent=0 // pred_check
    _
  $region15: #{phash_pallas.1} parent=0 // pred_check_branch
    %5612 = sbr.rel (0) target = $region17
  $region16: #{phash_pallas.1} parent=0 // pred_region
    _
  $region17: #{phash_pallas.1} parent=0 // pred_fallthru
    _
  // Predicated region
  $region18: #{phash_pallas.1} parent=0 // pred_check
    _
  $region19: #{phash_pallas.1} parent=0 // pred_check_branch
    %5614 = sbr.rel (0) target = $region21
  $region20: #{phash_pallas.1} parent=0 // pred_region
    _
  $region21: #{phash_pallas.1} parent=0 // pred_fallthru
    _
  // Predicated region
  $region22: #{phash_pallas.1} parent=0 // pred_check
    _
  $region23: #{phash_pallas.1} parent=0 // pred_check_branch
    %5616 = sbr.rel (0) target = $region25
  $region24: #{phash_pallas.1} parent=0 // pred_region
    _
  $region25: #{phash_pallas.1} parent=0 // pred_fallthru
    _

</llo_original>
